<compile_context>
chip_gen: v6e
topology: v6e:2x2x1
jax: 0.10.0
libtpu: 0.0.40
codegen_flags: <defaults>
</compile_context>

<pallas_src>
import jax
import jax.numpy as jnp
from jax.experimental import pallas as pl
from jax.experimental.pallas import tpu as pltpu

Z_DIM = 100
EMB_DIM = 10
IN_DIM = Z_DIM + EMB_DIM          # 110
IN_PAD = 128                      # lane-padded layer-1 contraction dim
H1, H2, H3 = 256, 512, 1024
OUT_DIM = 784
OUT_PAD = 896                     # 7 * 128 -> lane-dense output stores
NUM_CLASSES = 10
LEAK = 0.2


def _bf16_vpu_available():
    """v6e/v7x have a packed-bf16 VALU; v2-v5 do not -> keep activation math f32 there."""
    try:
        kind = jax.devices()[0].device_kind.lower()
    except Exception:
        return True
    return not any(tag in kind for tag in ("v2", "v3", "v4", "v5"))


ACT_DTYPE = jnp.bfloat16 if _bf16_vpu_available() else jnp.float32


def generator_mlp_kernel(x_ref,
                         w1_ref, b1_ref,
                         w2_ref, b2_ref,
                         w3_ref, b3_ref,
                         w4_ref, b4_ref,
                         o_ref):
    """4 MXU matmuls (bf16 operands, f32 accumulate); activations on VPU, tanh on EUP."""

    def affine_leaky(acc_f32, b_ref):
        # bias-add + LeakyReLU(0.2) in ACT_DTYPE (bf16 on v6e/v7x, f32 on v5e).
        h = acc_f32.astype(ACT_DTYPE) + b_ref[...].astype(ACT_DTYPE)
        h = jnp.maximum(h, LEAK * h)              # single vmax per element
        return h.astype(jnp.bfloat16)             # next MXU input (no-op if already bf16)

    x = x_ref[...]                                                     # (TB, 128) bf16
    h = affine_leaky(jnp.dot(x, w1_ref[...],
                             preferred_element_type=jnp.float32), b1_ref)   # (TB, 256)
    h = affine_leaky(jnp.dot(h, w2_ref[...],
                             preferred_element_type=jnp.float32), b2_ref)   # (TB, 512)
    h = affine_leaky(jnp.dot(h, w3_ref[...],
                             preferred_element_type=jnp.float32), b3_ref)   # (TB, 1024)
    h = jnp.dot(h, w4_ref[...], preferred_element_type=jnp.float32) + b4_ref[...]
    o_ref[...] = jnp.tanh(h)                                           # (TB, 896) f32


def _pick_batch_tile(b):
    """Large tiles amortize per-step overhead; keep >=2 grid steps when possible
    so v7x can shard the 'parallel' batch axis across both TensorCores."""
    for tb in (512, 256, 128):
        if b >= 2 * tb:
            return tb
    if b > 128:
        return 128
    # tiny batch: single full-extent tile, 8-row aligned
    return max(8, ((b + 7) // 8) * 8)


def _resident_spec(shape):
    """Weights/biases: constant block index -> DMA'd once, VMEM-resident across
    the grid; request a single pipeline buffer (the second would never be used)."""
    idx = lambda i: (0, 0)
    buffered = getattr(pl, "Buffered", None)
    if buffered is not None:
        try:
            return pl.BlockSpec(shape, idx, pipeline_mode=buffered(1))
        except TypeError:
            pass
    return pl.BlockSpec(shape, idx)


def generator_forward(z, labels, kparams):
    """z: (B, 100) f32, labels: (B,) int32 -> (B, 784) f32."""
    B = z.shape[0]

    # Glue (exact, tiny): embedding gather + concat + zero lane-padding to 128.
    # TODO(synk): fold embed @ w1[100:110] into layer 1 and cross-call-prefetch
    # weights (P10) to shave tiny-batch latency further.
    c = jnp.take(kparams["embed"], labels, axis=0)                    # (B, 10) f32
    x = jnp.concatenate(
        [z.astype(jnp.float32), c,
         jnp.zeros((B, IN_PAD - IN_DIM), jnp.float32)], axis=1)       # (B, 128)
    x = x.astype(jnp.bfloat16)

    tb = _pick_batch_tile(B)
    b_pad = ((B + tb - 1) // tb) * tb
    if b_pad != B:
        x = jnp.pad(x, ((0, b_pad - B), (0, 0)))
    grid = (b_pad // tb,)

    in_specs = [
        pl.BlockSpec((tb, IN_PAD), lambda i: (i, 0)),
        _resident_spec((IN_PAD, H1)),  _resident_spec((1, H1)),
        _resident_spec((H1, H2)),      _resident_spec((1, H2)),
        _resident_spec((H2, H3)),      _resident_spec((1, H3)),
        _resident_spec((H3, OUT_PAD)), _resident_spec((1, OUT_PAD)),
    ]
    out_spec = pl.BlockSpec((tb, OUT_PAD), lambda i: (i, 0))

    matmul_macs = IN_PAD * H1 + H1 * H2 + H2 * H3 + H3 * OUT_PAD
    weight_bytes = 2 * matmul_macs                                    # bf16 weights
    bias_bytes = 4 * (H1 + H2 + H3 + OUT_PAD)
    cost = pl.CostEstimate(
        flops=2 * b_pad * matmul_macs,
        transcendentals=b_pad * OUT_PAD,                              # tanh
        bytes_accessed=weight_bytes + bias_bytes
        + b_pad * IN_PAD * 2 + b_pad * OUT_PAD * 4)

    out = pl.pallas_call(
        generator_mlp_kernel,
        out_shape=jax.ShapeDtypeStruct((b_pad, OUT_PAD), jnp.float32),
        grid=grid,
        in_specs=in_specs,
        out_specs=out_spec,
        compiler_params=pltpu.CompilerParams(
            dimension_semantics=("parallel",),
            vmem_limit_bytes=48 << 20),
        cost_estimate=cost,
    )(x,
      kparams["w1"], kparams["b1"],
      kparams["w2"], kparams["b2"],
      kparams["w3"], kparams["b3"],
      kparams["w4"], kparams["b4"])

    return out[:B, :OUT_DIM]


generator_forward = jax.jit(generator_forward)


def init_params(key):
    """f32 'PyTorch-layout' params (W stored as (in, out) so x @ W == x @ W_torch.T)."""
    keys = jax.random.split(key, 9)

    def lin(kw, kb, fan_in, fan_out):
        bound = 1.0 / jnp.sqrt(float(fan_in))
        w = jax.random.uniform(kw, (fan_in, fan_out), jnp.float32, -bound, bound)
        b = jax.random.uniform(kb, (fan_out,), jnp.float32, -bound, bound)
        return w, b

    w1, b1 = lin(keys[1], keys[2], IN_DIM, H1)
    w2, b2 = lin(keys[3], keys[4], H1, H2)
    w3, b3 = lin(keys[5], keys[6], H2, H3)
    w4, b4 = lin(keys[7], keys[8], H3, OUT_DIM)
    return {
        "embed": jax.random.normal(keys[0], (NUM_CLASSES, EMB_DIM), jnp.float32),
        "w1": w1, "b1": b1, "w2": w2, "b2": b2,
        "w3": w3, "b3": b3, "w4": w4, "b4": b4,
    }


def prep_kernel_params(p):
    """bf16 weights, zero-padded to lane-friendly shapes; f32 (1, H) biases."""
    w1 = jnp.zeros((IN_PAD, H1), jnp.float32).at[:IN_DIM, :].set(p["w1"])
    w4 = jnp.zeros((H3, OUT_PAD), jnp.float32).at[:, :OUT_DIM].set(p["w4"])
    b4 = jnp.zeros((1, OUT_PAD), jnp.float32).at[:, :OUT_DIM].set(p["b4"][None, :])
    return {
        "embed": p["embed"],
        "w1": w1.astype(jnp.bfloat16), "b1": p["b1"][None, :],
        "w2": p["w2"].astype(jnp.bfloat16), "b2": p["b2"][None, :],
        "w3": p["w3"].astype(jnp.bfloat16), "b3": p["b3"][None, :],
        "w4": w4.astype(jnp.bfloat16), "b4": b4,
    }


def reference_forward(z, labels, p):
    """Pure-JAX f32 reference (module semantics)."""
    c = jnp.take(p["embed"], labels, axis=0)
    x = jnp.concatenate([z, c], axis=1)
    lrelu = lambda v: jnp.maximum(v, LEAK * v)
    h = lrelu(x @ p["w1"] + p["b1"])
    h = lrelu(h @ p["w2"] + p["b2"])
    h = lrelu(h @ p["w3"] + p["b3"])
    return jnp.tanh(h @ p["w4"] + p["b4"])


if __name__ == "__main__":
    key = jax.random.PRNGKey(0)
    k_param, k_z, k_lab = jax.random.split(key, 3)

    params = init_params(k_param)
    kparams = prep_kernel_params(params)

    # Small-batch path (single full-extent tile) and a tiled, padded,
    # multi-step-grid path.
    for B in (8, 200):
        kz, klab = jax.random.split(jax.random.fold_in(k_z, B))
        z = jax.random.normal(kz, (B, Z_DIM), jnp.float32)
        labels = jax.random.randint(klab, (B,), 0, NUM_CLASSES, jnp.int32)

        out = jax.block_until_ready(generator_forward(z, labels, kparams))
        ref = jax.block_until_ready(reference_forward(z, labels, params))

        assert out.shape == (B, OUT_DIM), out.shape
        # bf16 weights (+ bf16 activations on v6e/v7x) vs f32 reference.
        err = float(jnp.max(jnp.abs(out - ref)))
        assert err < 5e-2, (B, err)

    print("KERNEL_OK")
</pallas_src>

<mosaic_0001>
module attributes {stable_mosaic.version = 11 : i64} {
  func.func @generator_mlp_kernel(%arg0: i32, %arg1: memref<8x128xbf16, #tpu.memory_space<vmem>>, %arg2: memref<128x256xbf16, #tpu.memory_space<vmem>>, %arg3: memref<1x256xf32, #tpu.memory_space<vmem>>, %arg4: memref<256x512xbf16, #tpu.memory_space<vmem>>, %arg5: memref<1x512xf32, #tpu.memory_space<vmem>>, %arg6: memref<512x1024xbf16, #tpu.memory_space<vmem>>, %arg7: memref<1x1024xf32, #tpu.memory_space<vmem>>, %arg8: memref<1024x896xbf16, #tpu.memory_space<vmem>>, %arg9: memref<1x896xf32, #tpu.memory_space<vmem>>, %arg10: memref<8x896xf32, #tpu.memory_space<vmem>>) attributes {dimension_semantics = [#tpu.dimension_semantics<parallel>], iteration_bounds = array<i64: 1>, scalar_prefetch = 0 : i64, scratch_operands = 0 : i64, tpu.core_type = #tpu.core_type<tc>, window_params = [{transform_indices = @transform_0, window_bounds = array<i64: 8, 128>}, {pipeline_mode = #tpu.pipeline_mode<synchronous>, transform_indices = @transform_1, window_bounds = array<i64: 128, 256>}, {pipeline_mode = #tpu.pipeline_mode<synchronous>, transform_indices = @transform_2, window_bounds = array<i64: 1, 256>}, {pipeline_mode = #tpu.pipeline_mode<synchronous>, transform_indices = @transform_3, window_bounds = array<i64: 256, 512>}, {pipeline_mode = #tpu.pipeline_mode<synchronous>, transform_indices = @transform_4, window_bounds = array<i64: 1, 512>}, {pipeline_mode = #tpu.pipeline_mode<synchronous>, transform_indices = @transform_5, window_bounds = array<i64: 512, 1024>}, {pipeline_mode = #tpu.pipeline_mode<synchronous>, transform_indices = @transform_6, window_bounds = array<i64: 1, 1024>}, {pipeline_mode = #tpu.pipeline_mode<synchronous>, transform_indices = @transform_7, window_bounds = array<i64: 1024, 896>}, {pipeline_mode = #tpu.pipeline_mode<synchronous>, transform_indices = @transform_8, window_bounds = array<i64: 1, 896>}, {transform_indices = @transform_9, window_bounds = array<i64: 8, 896>}]} {
    %c0 = arith.constant 0 : index
    %c0_0 = arith.constant 0 : index
    %0 = vector.load %arg1[%c0, %c0_0] : memref<8x128xbf16, #tpu.memory_space<vmem>>, vector<8x128xbf16>
    %c0_1 = arith.constant 0 : index
    %c0_2 = arith.constant 0 : index
    %1 = vector.load %arg2[%c0_1, %c0_2] : memref<128x256xbf16, #tpu.memory_space<vmem>>, vector<128x256xbf16>
    %cst = arith.constant dense<0.000000e+00> : vector<8x256xf32>
    %2 = tpu.matmul %0, %1, %cst {dimension_numbers = #tpu.dot_dimension_numbers<[1], [0], [0], [1], [0, 0, 1, 1], [], []>} : vector<8x128xbf16>, vector<128x256xbf16>, vector<8x256xf32> -> vector<8x256xf32>
    %3 = arith.truncf %2 : vector<8x256xf32> to vector<8x256xbf16>
    %c0_3 = arith.constant 0 : index
    %c0_4 = arith.constant 0 : index
    %4 = vector.load %arg3[%c0_3, %c0_4] : memref<1x256xf32, #tpu.memory_space<vmem>>, vector<1x256xf32>
    %5 = arith.truncf %4 : vector<1x256xf32> to vector<1x256xbf16>
    %6 = vector.broadcast %5 : vector<1x256xbf16> to vector<8x256xbf16>
    %7 = arith.addf %3, %6 : vector<8x256xbf16>
    %cst_5 = arith.constant 2.001950e-01 : bf16
    %8 = vector.broadcast %cst_5 : bf16 to vector<8x256xbf16>
    %9 = arith.mulf %8, %7 : vector<8x256xbf16>
    %10 = arith.maximumf %7, %9 : vector<8x256xbf16>
    %c0_6 = arith.constant 0 : index
    %c0_7 = arith.constant 0 : index
    %11 = vector.load %arg4[%c0_6, %c0_7] : memref<256x512xbf16, #tpu.memory_space<vmem>>, vector<256x512xbf16>
    %cst_8 = arith.constant dense<0.000000e+00> : vector<8x512xf32>
    %12 = tpu.matmul %10, %11, %cst_8 {dimension_numbers = #tpu.dot_dimension_numbers<[1], [0], [0], [1], [0, 0, 1, 1], [], []>} : vector<8x256xbf16>, vector<256x512xbf16>, vector<8x512xf32> -> vector<8x512xf32>
    %13 = arith.truncf %12 : vector<8x512xf32> to vector<8x512xbf16>
    %c0_9 = arith.constant 0 : index
    %c0_10 = arith.constant 0 : index
    %14 = vector.load %arg5[%c0_9, %c0_10] : memref<1x512xf32, #tpu.memory_space<vmem>>, vector<1x512xf32>
    %15 = arith.truncf %14 : vector<1x512xf32> to vector<1x512xbf16>
    %16 = vector.broadcast %15 : vector<1x512xbf16> to vector<8x512xbf16>
    %17 = arith.addf %13, %16 : vector<8x512xbf16>
    %cst_11 = arith.constant 2.001950e-01 : bf16
    %18 = vector.broadcast %cst_11 : bf16 to vector<8x512xbf16>
    %19 = arith.mulf %18, %17 : vector<8x512xbf16>
    %20 = arith.maximumf %17, %19 : vector<8x512xbf16>
    %c0_12 = arith.constant 0 : index
    %c0_13 = arith.constant 0 : index
    %21 = vector.load %arg6[%c0_12, %c0_13] : memref<512x1024xbf16, #tpu.memory_space<vmem>>, vector<512x1024xbf16>
    %cst_14 = arith.constant dense<0.000000e+00> : vector<8x1024xf32>
    %22 = tpu.matmul %20, %21, %cst_14 {dimension_numbers = #tpu.dot_dimension_numbers<[1], [0], [0], [1], [0, 0, 1, 1], [], []>} : vector<8x512xbf16>, vector<512x1024xbf16>, vector<8x1024xf32> -> vector<8x1024xf32>
    %23 = arith.truncf %22 : vector<8x1024xf32> to vector<8x1024xbf16>
    %c0_15 = arith.constant 0 : index
    %c0_16 = arith.constant 0 : index
    %24 = vector.load %arg7[%c0_15, %c0_16] : memref<1x1024xf32, #tpu.memory_space<vmem>>, vector<1x1024xf32>
    %25 = arith.truncf %24 : vector<1x1024xf32> to vector<1x1024xbf16>
    %26 = vector.broadcast %25 : vector<1x1024xbf16> to vector<8x1024xbf16>
    %27 = arith.addf %23, %26 : vector<8x1024xbf16>
    %cst_17 = arith.constant 2.001950e-01 : bf16
    %28 = vector.broadcast %cst_17 : bf16 to vector<8x1024xbf16>
    %29 = arith.mulf %28, %27 : vector<8x1024xbf16>
    %30 = arith.maximumf %27, %29 : vector<8x1024xbf16>
    %c0_18 = arith.constant 0 : index
    %c0_19 = arith.constant 0 : index
    %31 = vector.load %arg8[%c0_18, %c0_19] : memref<1024x896xbf16, #tpu.memory_space<vmem>>, vector<1024x896xbf16>
    %cst_20 = arith.constant dense<0.000000e+00> : vector<8x896xf32>
    %32 = tpu.matmul %30, %31, %cst_20 {dimension_numbers = #tpu.dot_dimension_numbers<[1], [0], [0], [1], [0, 0, 1, 1], [], []>} : vector<8x1024xbf16>, vector<1024x896xbf16>, vector<8x896xf32> -> vector<8x896xf32>
    %c0_21 = arith.constant 0 : index
    %c0_22 = arith.constant 0 : index
    %33 = vector.load %arg9[%c0_21, %c0_22] : memref<1x896xf32, #tpu.memory_space<vmem>>, vector<1x896xf32>
    %34 = vector.broadcast %33 : vector<1x896xf32> to vector<8x896xf32>
    %35 = arith.addf %32, %34 : vector<8x896xf32>
    %36 = math.tanh %35 : vector<8x896xf32>
    %c0_23 = arith.constant 0 : index
    %c0_24 = arith.constant 0 : index
    %37 = vector.load %arg10[%c0_23, %c0_24] : memref<8x896xf32, #tpu.memory_space<vmem>>, vector<8x896xf32>
    tpu.vector_store %arg10[%c0_23, %c0_24], %36 {strides = array<i32>} : memref<8x896xf32, #tpu.memory_space<vmem>>, vector<8x896xf32>,
    return
  }
  func.func @transform_0(%arg0: i32) -> (i32, i32) {
    %c0_i32 = arith.constant 0 : i32
    %c0_i32_0 = arith.constant 0 : i32
    return %arg0, %c0_i32 : i32, i32
  }
  func.func @transform_1(%arg0: i32) -> (i32, i32) {
    %c0_i32 = arith.constant 0 : i32
    %c0_i32_0 = arith.constant 0 : i32
    %c0_i32_1 = arith.constant 0 : i32
    return %c0_i32, %c0_i32_0 : i32, i32
  }
  func.func @transform_2(%arg0: i32) -> (i32, i32) {
    %c0_i32 = arith.constant 0 : i32
    %c0_i32_0 = arith.constant 0 : i32
    %c0_i32_1 = arith.constant 0 : i32
    return %c0_i32, %c0_i32_0 : i32, i32
  }
  func.func @transform_3(%arg0: i32) -> (i32, i32) {
    %c0_i32 = arith.constant 0 : i32
    %c0_i32_0 = arith.constant 0 : i32
    %c0_i32_1 = arith.constant 0 : i32
    return %c0_i32, %c0_i32_0 : i32, i32
  }
  func.func @transform_4(%arg0: i32) -> (i32, i32) {
    %c0_i32 = arith.constant 0 : i32
    %c0_i32_0 = arith.constant 0 : i32
    %c0_i32_1 = arith.constant 0 : i32
    return %c0_i32, %c0_i32_0 : i32, i32
  }
  func.func @transform_5(%arg0: i32) -> (i32, i32) {
    %c0_i32 = arith.constant 0 : i32
    %c0_i32_0 = arith.constant 0 : i32
    %c0_i32_1 = arith.constant 0 : i32
    return %c0_i32, %c0_i32_0 : i32, i32
  }
  func.func @transform_6(%arg0: i32) -> (i32, i32) {
    %c0_i32 = arith.constant 0 : i32
    %c0_i32_0 = arith.constant 0 : i32
    %c0_i32_1 = arith.constant 0 : i32
    return %c0_i32, %c0_i32_0 : i32, i32
  }
  func.func @transform_7(%arg0: i32) -> (i32, i32) {
    %c0_i32 = arith.constant 0 : i32
    %c0_i32_0 = arith.constant 0 : i32
    %c0_i32_1 = arith.constant 0 : i32
    return %c0_i32, %c0_i32_0 : i32, i32
  }
  func.func @transform_8(%arg0: i32) -> (i32, i32) {
    %c0_i32 = arith.constant 0 : i32
    %c0_i32_0 = arith.constant 0 : i32
    %c0_i32_1 = arith.constant 0 : i32
    return %c0_i32, %c0_i32_0 : i32, i32
  }
  func.func @transform_9(%arg0: i32) -> (i32, i32) {
    %c0_i32 = arith.constant 0 : i32
    %c0_i32_0 = arith.constant 0 : i32
    return %arg0, %c0_i32 : i32, i32
  }
}

</mosaic_0001>

<llo_original>
// kernel: generator_forward.1
$region0: #{generator_forward.1}
  #allocation0 [shape = 'u32[]', space=smem, size = 0x4, offset = 0x4, fixed_abs, tag = 'smem constant byte address 0x4 - core index']
  #allocation1 [shape = 'u32[144,128]{1,0:T(1,128)}', space=vmem, size = 0x12000, scoped, tag = 'internal scratch']
  %s0 = inlined_call_operand.vmem [shape: bf16[8,128], index: 0, kind: input, shape index: {}]
  %s1 = inlined_call_operand.hbm [shape: bf16[128,256], index: 1, kind: input, shape index: {}]
  %s2 = inlined_call_operand.hbm [shape: f32[1,256], index: 2, kind: input, shape index: {}]
  %s3 = inlined_call_operand.hbm [shape: bf16[256,512], index: 3, kind: input, shape index: {}]
  %s4 = inlined_call_operand.hbm [shape: f32[1,512], index: 4, kind: input, shape index: {}]
  %s5 = inlined_call_operand.hbm [shape: bf16[512,1024], index: 5, kind: input, shape index: {}]
  %s6 = inlined_call_operand.hbm [shape: f32[1,1024], index: 6, kind: input, shape index: {}]
  %s7 = inlined_call_operand.hbm [shape: bf16[1024,896], index: 7, kind: input, shape index: {}]
  %s8 = inlined_call_operand.hbm [shape: f32[1,896], index: 8, kind: input, shape index: {}]
  %s9 = inlined_call_operand.hbm [shape: f32[8,896], index: 9, kind: output, shape index: {}]
  %s10 = sld [smem:[#allocation0]]
  $region78: #{generator_forward.1} parent=0
    _
  %s12 = ssub.s32 1, %s10
  %s13 = scalar_select 0, %s12, %s10
  $region1: #{generator_forward.1} parent=0
    #allocation2 [shape = 'u8[65536]{0}', space=vmem, size = 0x10000, scoped, tag = 'input window, operand 1, single buffered']
    #allocation3 [shape = 's32[1]{0}', space=sflag, size = 0x4, scoped, tag = 'scoped memory for generator_forward.1']
    #allocation4 [shape = 's32[1]{0}', space=sflag, size = 0x4, scoped, tag = 'scoped memory for generator_forward.1']
    #allocation5 [shape = 'u8[1024]{0}', space=vmem, size = 0x400, scoped, tag = 'input window, operand 2, single buffered']
    #allocation6 [shape = 's32[1]{0}', space=sflag, size = 0x4, scoped, tag = 'scoped memory for generator_forward.1']
    #allocation7 [shape = 'u8[262144]{0}', space=vmem, size = 0x40000, scoped, tag = 'input window, operand 3, single buffered']
    #allocation8 [shape = 'u8[2048]{0}', space=vmem, size = 0x800, scoped, tag = 'input window, operand 4, single buffered']
    #allocation9 [shape = 's32[1]{0}', space=sflag, size = 0x4, scoped, tag = 'scoped memory for generator_forward.1']
    #allocation10 [shape = 'u8[1048576]{0}', space=vmem, size = 0x100000, scoped, tag = 'input window, operand 5, single buffered']
    #allocation11 [shape = 'u8[4096]{0}', space=vmem, size = 0x1000, scoped, tag = 'input window, operand 6, single buffered']
    #allocation12 [shape = 's32[1]{0}', space=sflag, size = 0x4, scoped, tag = 'scoped memory for generator_forward.1']
    #allocation13 [shape = 'u8[1835008]{0}', space=vmem, size = 0x1c0000, scoped, tag = 'input window, operand 7, single buffered']
    #allocation14 [shape = 'u8[3584]{0}', space=vmem, size = 0x1000, scoped, tag = 'input window, operand 8, single buffered']
    #allocation15 [shape = 's32[1]{0}', space=sflag, size = 0x4, scoped, tag = 'scoped memory for generator_forward.1']
    #allocation16 [shape = 'u8[28672]{0}', space=vmem, size = 0x7000, scoped, tag = 'output window, operand 0, single buffered']
    %14 = vsyncpa [#allocation3], 0
    %15 = vsyncpa [#allocation6], 0
    %16 = vsyncpa [#allocation9], 0
    %17 = vsyncpa [#allocation12], 0
    %18 = vsyncpa [#allocation15], 0
    %19 = vsyncpa [#allocation4], 0
    // Predicated region
    $region2: #{generator_forward.1} parent=1 // pred_check
      _
    $region3: #{generator_forward.1} parent=1 // pred_check_branch
      %21 = sbr.rel (0) target = $region5
    $region4: #{generator_forward.1} parent=1 // pred_region
      _
    $region5: #{generator_forward.1} parent=1 // pred_fallthru
      _
    // Predicated region
    $region6: #{generator_forward.1} parent=1 // pred_check
      _
    $region7: #{generator_forward.1} parent=1 // pred_check_branch
      %23 = sbr.rel (0) target = $region9
    $region8: #{generator_forward.1} parent=1 // pred_region
      %s25 = ssub.s32 2048, 2048
      %26 = vsyncadd [#allocation3], %s25
      %s27 = sshll.u32 [#allocation2], 4
      %s28 = int_to_ptr.vmem [resolvable:$true] %s27
      %33 = dma.hbm_to_vmem [thread:$0]  %s1, 2048, %s28, [#allocation3], 128, 128, 8
    $region9: #{generator_forward.1} parent=1 // pred_fallthru
      _
    // Predicated region
    $region10: #{generator_forward.1} parent=1 // pred_check
      _
    $region11: #{generator_forward.1} parent=1 // pred_check_branch
      %35 = sbr.rel (0) target = $region13
    $region12: #{generator_forward.1} parent=1 // pred_region
      %s37 = ssub.s32 32, 32
      %38 = vsyncadd [#allocation6], %s37
      %s40 = sshll.u32 [#allocation5], 4
      %s41 = int_to_ptr.vmem [resolvable:$true] %s40
      %43 = dma.hbm_to_vmem [thread:$0]  %s2, 32, %s41, [#allocation6]
    $region13: #{generator_forward.1} parent=1 // pred_fallthru
      _
    // Predicated region
    $region14: #{generator_forward.1} parent=1 // pred_check
      _
    $region15: #{generator_forward.1} parent=1 // pred_check_branch
      %45 = sbr.rel (0) target = $region17
    $region16: #{generator_forward.1} parent=1 // pred_region
      %s47 = ssub.s32 8192, 8192
      %48 = vsyncadd [#allocation6], %s47
      %s49 = sshll.u32 [#allocation7], 4
      %s50 = int_to_ptr.vmem [resolvable:$true] %s49
      %55 = dma.hbm_to_vmem [thread:$0]  %s3, 8192, %s50, [#allocation6], 256, 256, 16
    $region17: #{generator_forward.1} parent=1 // pred_fallthru
      _
    // Predicated region
    $region18: #{generator_forward.1} parent=1 // pred_check
      _
    $region19: #{generator_forward.1} parent=1 // pred_check_branch
      %57 = sbr.rel (0) target = $region21
    $region20: #{generator_forward.1} parent=1 // pred_region
      %s59 = ssub.s32 64, 64
      %60 = vsyncadd [#allocation9], %s59
      %s62 = sshll.u32 [#allocation8], 4
      %s63 = int_to_ptr.vmem [resolvable:$true] %s62
      %65 = dma.hbm_to_vmem [thread:$0]  %s4, 64, %s63, [#allocation9]
    $region21: #{generator_forward.1} parent=1 // pred_fallthru
      _
    // Predicated region
    $region22: #{generator_forward.1} parent=1 // pred_check
      _
    $region23: #{generator_forward.1} parent=1 // pred_check_branch
      %67 = sbr.rel (0) target = $region25
    $region24: #{generator_forward.1} parent=1 // pred_region
      %s69 = ssub.s32 32768, 32768
      %70 = vsyncadd [#allocation9], %s69
      %s71 = sshll.u32 [#allocation10], 4
      %s72 = int_to_ptr.vmem [resolvable:$true] %s71
      %77 = dma.hbm_to_vmem [thread:$0]  %s5, 32768, %s72, [#allocation9], 512, 512, 32
    $region25: #{generator_forward.1} parent=1 // pred_fallthru
      _
    // Predicated region
    $region26: #{generator_forward.1} parent=1 // pred_check
      _
    $region27: #{generator_forward.1} parent=1 // pred_check_branch
      %79 = sbr.rel (0) target = $region29
    $region28: #{generator_forward.1} parent=1 // pred_region
      %s81 = ssub.s32 128, 128
      %82 = vsyncadd [#allocation12], %s81
      %s84 = sshll.u32 [#allocation11], 4
      %s85 = int_to_ptr.vmem [resolvable:$true] %s84
      %87 = dma.hbm_to_vmem [thread:$0]  %s6, 128, %s85, [#allocation12]
    $region29: #{generator_forward.1} parent=1 // pred_fallthru
      _
    // Predicated region
    $region30: #{generator_forward.1} parent=1 // pred_check
      _
    $region31: #{generator_forward.1} parent=1 // pred_check_branch
      %89 = sbr.rel (0) target = $region33
    $region32: #{generator_forward.1} parent=1 // pred_region
      %s91 = ssub.s32 57344, 57344
      %92 = vsyncadd [#allocation12], %s91
      %s93 = sshll.u32 [#allocation13], 4
      %s94 = int_to_ptr.vmem [resolvable:$true] %s93
      %99 = dma.hbm_to_vmem [thread:$0]  %s7, 57344, %s94, [#allocation12], 448, 448, 28
    $region33: #{generator_forward.1} parent=1 // pred_fallthru
      _
    // Predicated region
    $region34: #{generator_forward.1} parent=1 // pred_check
      _
    $region35: #{generator_forward.1} parent=1 // pred_check_branch
      %101 = sbr.rel (0) target = $region37
    $region36: #{generator_forward.1} parent=1 // pred_region
      %s103 = ssub.s32 112, 112
      %104 = vsyncadd [#allocation15], %s103
      %s106 = sshll.u32 [#allocation14], 4
      %s107 = int_to_ptr.vmem [resolvable:$true] %s106
      %109 = dma.hbm_to_vmem [thread:$0]  %s8, 112, %s107, [#allocation15]
    $region37: #{generator_forward.1} parent=1 // pred_fallthru
      _
    // Predicated region
    $region38: #{generator_forward.1} parent=1 // pred_check
      _
    $region39: #{generator_forward.1} parent=1 // pred_check_branch
      %111 = sbr.rel (0) target = $region41
    $region40: #{generator_forward.1} parent=1 // pred_region
      %112 = dma.done [#allocation3], 2048
    $region41: #{generator_forward.1} parent=1 // pred_fallthru
      _
    // Predicated region
    $region42: #{generator_forward.1} parent=1 // pred_check
      _
    $region43: #{generator_forward.1} parent=1 // pred_check_branch
      %114 = sbr.rel (0) target = $region45
    $region44: #{generator_forward.1} parent=1 // pred_region
      %115 = dma.done [#allocation6], 32
    $region45: #{generator_forward.1} parent=1 // pred_fallthru
      _
    // Predicated region
    $region46: #{generator_forward.1} parent=1 // pred_check
      _
    $region47: #{generator_forward.1} parent=1 // pred_check_branch
      %117 = sbr.rel (0) target = $region49
    $region48: #{generator_forward.1} parent=1 // pred_region
      %118 = dma.done [#allocation6], 8192
    $region49: #{generator_forward.1} parent=1 // pred_fallthru
      _
    // Predicated region
    $region50: #{generator_forward.1} parent=1 // pred_check
      _
    $region51: #{generator_forward.1} parent=1 // pred_check_branch
      %120 = sbr.rel (0) target = $region53
    $region52: #{generator_forward.1} parent=1 // pred_region
      %121 = dma.done [#allocation9], 64
    $region53: #{generator_forward.1} parent=1 // pred_fallthru
      _
    // Predicated region
    $region54: #{generator_forward.1} parent=1 // pred_check
      _
    $region55: #{generator_forward.1} parent=1 // pred_check_branch
      %123 = sbr.rel (0) target = $region57
    $region56: #{generator_forward.1} parent=1 // pred_region
      %124 = dma.done [#allocation9], 32768
    $region57: #{generator_forward.1} parent=1 // pred_fallthru
      _
    // Predicated region
    $region58: #{generator_forward.1} parent=1 // pred_check
      _
    $region59: #{generator_forward.1} parent=1 // pred_check_branch
      %126 = sbr.rel (0) target = $region61
    $region60: #{generator_forward.1} parent=1 // pred_region
      %127 = dma.done [#allocation12], 128
    $region61: #{generator_forward.1} parent=1 // pred_fallthru
      _
    // Predicated region
    $region62: #{generator_forward.1} parent=1 // pred_check
      _
    $region63: #{generator_forward.1} parent=1 // pred_check_branch
      %129 = sbr.rel (0) target = $region65
    $region64: #{generator_forward.1} parent=1 // pred_region
      %130 = dma.done [#allocation12], 57344
    $region65: #{generator_forward.1} parent=1 // pred_fallthru
      _
    // Predicated region
    $region66: #{generator_forward.1} parent=1 // pred_check
      _
    $region67: #{generator_forward.1} parent=1 // pred_check_branch
      %132 = sbr.rel (0) target = $region69
    $region68: #{generator_forward.1} parent=1 // pred_region
      %133 = dma.done [#allocation15], 112
    $region69: #{generator_forward.1} parent=1 // pred_fallthru
      _
    %v136 = vld [vmem:[%s0] sm:$0xf]
    %v137 = vld [vmem:[#allocation2] sm:$0xff]
    %v138 = vld [vmem:[#allocation2 + $0x8] sm:$0xff]
    %v139 = vld [vmem:[#allocation2 + $0x10] sm:$0xff]
    %v140 = vld [vmem:[#allocation2 + $0x18] sm:$0xff]
    %v141 = vld [vmem:[#allocation2 + $0x20] sm:$0xff]
    %v142 = vld [vmem:[#allocation2 + $0x28] sm:$0xff]
    %v143 = vld [vmem:[#allocation2 + $0x30] sm:$0xff]
    %v144 = vld [vmem:[#allocation2 + $0x38] sm:$0xff]
    %v145 = vld [vmem:[#allocation2 + $0x40] sm:$0xff]
    %v146 = vld [vmem:[#allocation2 + $0x48] sm:$0xff]
    %v147 = vld [vmem:[#allocation2 + $0x50] sm:$0xff]
    %v148 = vld [vmem:[#allocation2 + $0x58] sm:$0xff]
    %v149 = vld [vmem:[#allocation2 + $0x60] sm:$0xff]
    %v150 = vld [vmem:[#allocation2 + $0x68] sm:$0xff]
    %v151 = vld [vmem:[#allocation2 + $0x70] sm:$0xff]
    %v152 = vld [vmem:[#allocation2 + $0x78] sm:$0xff]
    %v169 = vunpack.c.l.b16 %v137
    %v170 = vunpack.c.h.b16 %v137
    %v171 = vunpack.c.l.b16 %v138
    %v172 = vunpack.c.h.b16 %v138
    %v173 = vunpack.c.l.b16 %v139
    %v174 = vunpack.c.h.b16 %v139
    %v175 = vunpack.c.l.b16 %v140
    %v176 = vunpack.c.h.b16 %v140
    %v177 = vunpack.c.l.b16 %v141
    %v178 = vunpack.c.h.b16 %v141
    %v179 = vunpack.c.l.b16 %v142
    %v180 = vunpack.c.h.b16 %v142
    %v181 = vunpack.c.l.b16 %v143
    %v182 = vunpack.c.h.b16 %v143
    %v183 = vunpack.c.l.b16 %v144
    %v184 = vunpack.c.h.b16 %v144
    %v185 = vunpack.c.l.b16 %v145
    %v186 = vunpack.c.h.b16 %v145
    %v187 = vunpack.c.l.b16 %v146
    %v188 = vunpack.c.h.b16 %v146
    %v189 = vunpack.c.l.b16 %v147
    %v190 = vunpack.c.h.b16 %v147
    %v191 = vunpack.c.l.b16 %v148
    %v192 = vunpack.c.h.b16 %v148
    %v193 = vunpack.c.l.b16 %v149
    %v194 = vunpack.c.h.b16 %v149
    %v195 = vunpack.c.l.b16 %v150
    %v196 = vunpack.c.h.b16 %v150
    %v197 = vunpack.c.l.b16 %v151
    %v198 = vunpack.c.h.b16 %v151
    %v199 = vunpack.c.l.b16 %v152
    %v200 = vunpack.c.h.b16 %v152
    %v201 = vpack.c.b16 %v171, %v169
    %v202 = vpack.c.b16 %v172, %v170
    %v203 = vpack.c.b16 %v175, %v173
    %v204 = vpack.c.b16 %v176, %v174
    %v205 = vpack.c.b16 %v179, %v177
    %v206 = vpack.c.b16 %v180, %v178
    %v207 = vpack.c.b16 %v183, %v181
    %v208 = vpack.c.b16 %v184, %v182
    %v209 = vpack.c.b16 %v187, %v185
    %v210 = vpack.c.b16 %v188, %v186
    %v211 = vpack.c.b16 %v191, %v189
    %v212 = vpack.c.b16 %v192, %v190
    %v213 = vpack.c.b16 %v195, %v193
    %v214 = vpack.c.b16 %v196, %v194
    %v215 = vpack.c.b16 %v199, %v197
    %v216 = vpack.c.b16 %v200, %v198
    %233 = vmatprep.subr.bf16.mxu0 %v216
    %234 = vmatpush1.bf16.msra.mxu0 %v215
    %235 = vmatprep.subr.bf16.mxu0 %v214
    %236 = vmatpush1.bf16.msra.mxu0 %v213
    %237 = vmatprep.subr.bf16.mxu0 %v212
    %238 = vmatpush1.bf16.msra.mxu0 %v211
    %239 = vmatprep.subr.bf16.mxu0 %v210
    %240 = vmatpush1.bf16.msra.mxu0 %v209
    %241 = vmatprep.subr.bf16.mxu0 %v208
    %242 = vmatpush1.bf16.msra.mxu0 %v207
    %243 = vmatprep.subr.bf16.mxu0 %v206
    %244 = vmatpush1.bf16.msra.mxu0 %v205
    %245 = vmatprep.subr.bf16.mxu0 %v204
    %246 = vmatpush1.bf16.msra.mxu0 %v203
    %247 = vmatprep.subr.bf16.mxu0 %v202
    %248 = vmatpush1.bf16.msra.mxu0 %v201
    %249 = vmatprep.subr.bf16.mxu0 0
    %250 = vmatpush2.bf16.msra.mxu0 0
    %251 = vmatprep.subr.bf16.mxu0 0
    %252 = vmatpush2.bf16.msra.mxu0 0
    %253 = vmatprep.subr.bf16.mxu0 0
    %254 = vmatpush2.bf16.msra.mxu0 0
    %255 = vmatprep.subr.bf16.mxu0 0
    %256 = vmatpush2.bf16.msra.mxu0 0
    %257 = vmatprep.subr.bf16.mxu0 0
    %258 = vmatpush2.bf16.msra.mxu0 0
    %259 = vmatprep.subr.bf16.mxu0 0
    %260 = vmatpush2.bf16.msra.mxu0 0
    %261 = vmatprep.subr.bf16.mxu0 0
    %262 = vmatpush2.bf16.msra.mxu0 0
    %263 = vmatprep.subr.bf16.mxu0 0
    %264 = vmatpush2.bf16.msra.mxu0 0
    %265 = vmatprep.mubr.bf16.mxu0 0
    %266 = vmatmul.mubr.bf16.gmra.mxu0 %v136
    %v267 = vpop.f32.mrf.mxu0
    %v268 = vadd.f32 0.0, %v267
    %v269 = vpop.f32.mrf.mxu0
    %v270 = vadd.f32 0.0, %v269
    %v271 = vpop.f32.mrf.mxu0
    %v272 = vpop.f32.mrf.mxu0
    %273 = vdwg.mxu0
    %v274 = vpack.c.bf16 %v268, %v268
    %v275 = vpack.c.bf16 %v270, %v270
    %v276 = vld [vmem:[#allocation5] sm:$0x3]
    %v278 = vlaneseq
    %v279 = vshrl.u32 %v278, 7
    %v280 = vsub.s32 0, %v279
    %v281 = vrot.slane %v276, %v280
    %v282 = vlaneseq
    %v283 = vshrl.u32 %v282, 7
    %v284 = vsub.s32 1, %v283
    %v285 = vrot.slane %v276, %v284
    %v288 = vpack.c.bf16 %v281, %v281
    %v289 = vpack.c.bf16 %v285, %v285
    %v291 = vpack.i.b16 %v288, %v288
    %v293 = vlaneseq
    %v294 = vshrl.u32 %v293, 7
    %v295 = vsub.s32 0, %v294
    %v296 = vrot.slane %v291, %v295
    %v298 = vpack.i.b16 %v289, %v289
    %v300 = vlaneseq
    %v301 = vshrl.u32 %v300, 7
    %v302 = vsub.s32 0, %v301
    %v303 = vrot.slane %v298, %v302
    %v304 = vadd.bf16 %v274, %v296
    %v305 = vadd.bf16 %v275, %v303
    %v306 = vmul.bf16 %v304, 1045249613
    %v307 = vmul.bf16 %v305, 1045249613
    %v308 = vmax.bf16 %v304, %v306
    %v309 = vmax.bf16 %v305, %v307
    %v310 = vld [vmem:[#allocation7] sm:$0xff]
    %v311 = vld [vmem:[#allocation7 + $0x8] sm:$0xff]
    %v312 = vld [vmem:[#allocation7 + $0x10] sm:$0xff]
    %v313 = vld [vmem:[#allocation7 + $0x18] sm:$0xff]
    %v314 = vld [vmem:[#allocation7 + $0x20] sm:$0xff]
    %v315 = vld [vmem:[#allocation7 + $0x28] sm:$0xff]
    %v316 = vld [vmem:[#allocation7 + $0x30] sm:$0xff]
    %v317 = vld [vmem:[#allocation7 + $0x38] sm:$0xff]
    %v318 = vld [vmem:[#allocation7 + $0x40] sm:$0xff]
    %v319 = vld [vmem:[#allocation7 + $0x48] sm:$0xff]
    %v320 = vld [vmem:[#allocation7 + $0x50] sm:$0xff]
    %v321 = vld [vmem:[#allocation7 + $0x58] sm:$0xff]
    %v322 = vld [vmem:[#allocation7 + $0x60] sm:$0xff]
    %v323 = vld [vmem:[#allocation7 + $0x68] sm:$0xff]
    %v324 = vld [vmem:[#allocation7 + $0x70] sm:$0xff]
    %v325 = vld [vmem:[#allocation7 + $0x78] sm:$0xff]
    %v326 = vld [vmem:[#allocation7 + $0x80] sm:$0xff]
    %v327 = vld [vmem:[#allocation7 + $0x88] sm:$0xff]
    %v328 = vld [vmem:[#allocation7 + $0x90] sm:$0xff]
    %v329 = vld [vmem:[#allocation7 + $0x98] sm:$0xff]
    %v330 = vld [vmem:[#allocation7 + $0xa0] sm:$0xff]
    %v331 = vld [vmem:[#allocation7 + $0xa8] sm:$0xff]
    %v332 = vld [vmem:[#allocation7 + $0xb0] sm:$0xff]
    %v333 = vld [vmem:[#allocation7 + $0xb8] sm:$0xff]
    %v334 = vld [vmem:[#allocation7 + $0xc0] sm:$0xff]
    %v335 = vld [vmem:[#allocation7 + $0xc8] sm:$0xff]
    %v336 = vld [vmem:[#allocation7 + $0xd0] sm:$0xff]
    %v337 = vld [vmem:[#allocation7 + $0xd8] sm:$0xff]
    %v338 = vld [vmem:[#allocation7 + $0xe0] sm:$0xff]
    %v339 = vld [vmem:[#allocation7 + $0xe8] sm:$0xff]
    %v340 = vld [vmem:[#allocation7 + $0xf0] sm:$0xff]
    %v341 = vld [vmem:[#allocation7 + $0xf8] sm:$0xff]
    %v342 = vld [vmem:[#allocation7 + $0x100] sm:$0xff]
    %v343 = vld [vmem:[#allocation7 + $0x108] sm:$0xff]
    %v344 = vld [vmem:[#allocation7 + $0x110] sm:$0xff]
    %v345 = vld [vmem:[#allocation7 + $0x118] sm:$0xff]
    %v346 = vld [vmem:[#allocation7 + $0x120] sm:$0xff]
    %v347 = vld [vmem:[#allocation7 + $0x128] sm:$0xff]
    %v348 = vld [vmem:[#allocation7 + $0x130] sm:$0xff]
    %v349 = vld [vmem:[#allocation7 + $0x138] sm:$0xff]
    %v350 = vld [vmem:[#allocation7 + $0x140] sm:$0xff]
    %v351 = vld [vmem:[#allocation7 + $0x148] sm:$0xff]
    %v352 = vld [vmem:[#allocation7 + $0x150] sm:$0xff]
    %v353 = vld [vmem:[#allocation7 + $0x158] sm:$0xff]
    %v354 = vld [vmem:[#allocation7 + $0x160] sm:$0xff]
    %v355 = vld [vmem:[#allocation7 + $0x168] sm:$0xff]
    %v356 = vld [vmem:[#allocation7 + $0x170] sm:$0xff]
    %v357 = vld [vmem:[#allocation7 + $0x178] sm:$0xff]
    %v358 = vld [vmem:[#allocation7 + $0x180] sm:$0xff]
    %v359 = vld [vmem:[#allocation7 + $0x188] sm:$0xff]
    %v360 = vld [vmem:[#allocation7 + $0x190] sm:$0xff]
    %v361 = vld [vmem:[#allocation7 + $0x198] sm:$0xff]
    %v362 = vld [vmem:[#allocation7 + $0x1a0] sm:$0xff]
    %v363 = vld [vmem:[#allocation7 + $0x1a8] sm:$0xff]
    %v364 = vld [vmem:[#allocation7 + $0x1b0] sm:$0xff]
    %v365 = vld [vmem:[#allocation7 + $0x1b8] sm:$0xff]
    %v366 = vld [vmem:[#allocation7 + $0x1c0] sm:$0xff]
    %v367 = vld [vmem:[#allocation7 + $0x1c8] sm:$0xff]
    %v368 = vld [vmem:[#allocation7 + $0x1d0] sm:$0xff]
    %v369 = vld [vmem:[#allocation7 + $0x1d8] sm:$0xff]
    %v370 = vld [vmem:[#allocation7 + $0x1e0] sm:$0xff]
    %v371 = vld [vmem:[#allocation7 + $0x1e8] sm:$0xff]
    %v372 = vld [vmem:[#allocation7 + $0x1f0] sm:$0xff]
    %v373 = vld [vmem:[#allocation7 + $0x1f8] sm:$0xff]
    %v438 = vunpack.c.l.b16 %v310
    %v439 = vunpack.c.h.b16 %v310
    %v440 = vunpack.c.l.b16 %v311
    %v441 = vunpack.c.h.b16 %v311
    %v442 = vunpack.c.l.b16 %v312
    %v443 = vunpack.c.h.b16 %v312
    %v444 = vunpack.c.l.b16 %v313
    %v445 = vunpack.c.h.b16 %v313
    %v446 = vunpack.c.l.b16 %v314
    %v447 = vunpack.c.h.b16 %v314
    %v448 = vunpack.c.l.b16 %v315
    %v449 = vunpack.c.h.b16 %v315
    %v450 = vunpack.c.l.b16 %v316
    %v451 = vunpack.c.h.b16 %v316
    %v452 = vunpack.c.l.b16 %v317
    %v453 = vunpack.c.h.b16 %v317
    %v454 = vunpack.c.l.b16 %v318
    %v455 = vunpack.c.h.b16 %v318
    %v456 = vunpack.c.l.b16 %v319
    %v457 = vunpack.c.h.b16 %v319
    %v458 = vunpack.c.l.b16 %v320
    %v459 = vunpack.c.h.b16 %v320
    %v460 = vunpack.c.l.b16 %v321
    %v461 = vunpack.c.h.b16 %v321
    %v462 = vunpack.c.l.b16 %v322
    %v463 = vunpack.c.h.b16 %v322
    %v464 = vunpack.c.l.b16 %v323
    %v465 = vunpack.c.h.b16 %v323
    %v466 = vunpack.c.l.b16 %v324
    %v467 = vunpack.c.h.b16 %v324
    %v468 = vunpack.c.l.b16 %v325
    %v469 = vunpack.c.h.b16 %v325
    %v470 = vunpack.c.l.b16 %v326
    %v471 = vunpack.c.h.b16 %v326
    %v472 = vunpack.c.l.b16 %v327
    %v473 = vunpack.c.h.b16 %v327
    %v474 = vunpack.c.l.b16 %v328
    %v475 = vunpack.c.h.b16 %v328
    %v476 = vunpack.c.l.b16 %v329
    %v477 = vunpack.c.h.b16 %v329
    %v478 = vunpack.c.l.b16 %v330
    %v479 = vunpack.c.h.b16 %v330
    %v480 = vunpack.c.l.b16 %v331
    %v481 = vunpack.c.h.b16 %v331
    %v482 = vunpack.c.l.b16 %v332
    %v483 = vunpack.c.h.b16 %v332
    %v484 = vunpack.c.l.b16 %v333
    %v485 = vunpack.c.h.b16 %v333
    %v486 = vunpack.c.l.b16 %v334
    %v487 = vunpack.c.h.b16 %v334
    %v488 = vunpack.c.l.b16 %v335
    %v489 = vunpack.c.h.b16 %v335
    %v490 = vunpack.c.l.b16 %v336
    %v491 = vunpack.c.h.b16 %v336
    %v492 = vunpack.c.l.b16 %v337
    %v493 = vunpack.c.h.b16 %v337
    %v494 = vunpack.c.l.b16 %v338
    %v495 = vunpack.c.h.b16 %v338
    %v496 = vunpack.c.l.b16 %v339
    %v497 = vunpack.c.h.b16 %v339
    %v498 = vunpack.c.l.b16 %v340
    %v499 = vunpack.c.h.b16 %v340
    %v500 = vunpack.c.l.b16 %v341
    %v501 = vunpack.c.h.b16 %v341
    %v502 = vunpack.c.l.b16 %v342
    %v503 = vunpack.c.h.b16 %v342
    %v504 = vunpack.c.l.b16 %v343
    %v505 = vunpack.c.h.b16 %v343
    %v506 = vunpack.c.l.b16 %v344
    %v507 = vunpack.c.h.b16 %v344
    %v508 = vunpack.c.l.b16 %v345
    %v509 = vunpack.c.h.b16 %v345
    %v510 = vunpack.c.l.b16 %v346
    %v511 = vunpack.c.h.b16 %v346
    %v512 = vunpack.c.l.b16 %v347
    %v513 = vunpack.c.h.b16 %v347
    %v514 = vunpack.c.l.b16 %v348
    %v515 = vunpack.c.h.b16 %v348
    %v516 = vunpack.c.l.b16 %v349
    %v517 = vunpack.c.h.b16 %v349
    %v518 = vunpack.c.l.b16 %v350
    %v519 = vunpack.c.h.b16 %v350
    %v520 = vunpack.c.l.b16 %v351
    %v521 = vunpack.c.h.b16 %v351
    %v522 = vunpack.c.l.b16 %v352
    %v523 = vunpack.c.h.b16 %v352
    %v524 = vunpack.c.l.b16 %v353
    %v525 = vunpack.c.h.b16 %v353
    %v526 = vunpack.c.l.b16 %v354
    %v527 = vunpack.c.h.b16 %v354
    %v528 = vunpack.c.l.b16 %v355
    %v529 = vunpack.c.h.b16 %v355
    %v530 = vunpack.c.l.b16 %v356
    %v531 = vunpack.c.h.b16 %v356
    %v532 = vunpack.c.l.b16 %v357
    %v533 = vunpack.c.h.b16 %v357
    %v534 = vunpack.c.l.b16 %v358
    %v535 = vunpack.c.h.b16 %v358
    %v536 = vunpack.c.l.b16 %v359
    %v537 = vunpack.c.h.b16 %v359
    %v538 = vunpack.c.l.b16 %v360
    %v539 = vunpack.c.h.b16 %v360
    %v540 = vunpack.c.l.b16 %v361
    %v541 = vunpack.c.h.b16 %v361
    %v542 = vunpack.c.l.b16 %v362
    %v543 = vunpack.c.h.b16 %v362
    %v544 = vunpack.c.l.b16 %v363
    %v545 = vunpack.c.h.b16 %v363
    %v546 = vunpack.c.l.b16 %v364
    %v547 = vunpack.c.h.b16 %v364
    %v548 = vunpack.c.l.b16 %v365
    %v549 = vunpack.c.h.b16 %v365
    %v550 = vunpack.c.l.b16 %v366
    %v551 = vunpack.c.h.b16 %v366
    %v552 = vunpack.c.l.b16 %v367
    %v553 = vunpack.c.h.b16 %v367
    %v554 = vunpack.c.l.b16 %v368
    %v555 = vunpack.c.h.b16 %v368
    %v556 = vunpack.c.l.b16 %v369
    %v557 = vunpack.c.h.b16 %v369
    %v558 = vunpack.c.l.b16 %v370
    %v559 = vunpack.c.h.b16 %v370
    %v560 = vunpack.c.l.b16 %v371
    %v561 = vunpack.c.h.b16 %v371
    %v562 = vunpack.c.l.b16 %v372
    %v563 = vunpack.c.h.b16 %v372
    %v564 = vunpack.c.l.b16 %v373
    %v565 = vunpack.c.h.b16 %v373
    %v566 = vpack.c.b16 %v442, %v438
    %v567 = vpack.c.b16 %v443, %v439
    %v568 = vpack.c.b16 %v444, %v440
    %v569 = vpack.c.b16 %v445, %v441
    %v570 = vpack.c.b16 %v450, %v446
    %v571 = vpack.c.b16 %v451, %v447
    %v572 = vpack.c.b16 %v452, %v448
    %v573 = vpack.c.b16 %v453, %v449
    %v574 = vpack.c.b16 %v458, %v454
    %v575 = vpack.c.b16 %v459, %v455
    %v576 = vpack.c.b16 %v460, %v456
    %v577 = vpack.c.b16 %v461, %v457
    %v578 = vpack.c.b16 %v466, %v462
    %v579 = vpack.c.b16 %v467, %v463
    %v580 = vpack.c.b16 %v468, %v464
    %v581 = vpack.c.b16 %v469, %v465
    %v582 = vpack.c.b16 %v474, %v470
    %v583 = vpack.c.b16 %v475, %v471
    %v584 = vpack.c.b16 %v476, %v472
    %v585 = vpack.c.b16 %v477, %v473
    %v586 = vpack.c.b16 %v482, %v478
    %v587 = vpack.c.b16 %v483, %v479
    %v588 = vpack.c.b16 %v484, %v480
    %v589 = vpack.c.b16 %v485, %v481
    %v590 = vpack.c.b16 %v490, %v486
    %v591 = vpack.c.b16 %v491, %v487
    %v592 = vpack.c.b16 %v492, %v488
    %v593 = vpack.c.b16 %v493, %v489
    %v594 = vpack.c.b16 %v498, %v494
    %v595 = vpack.c.b16 %v499, %v495
    %v596 = vpack.c.b16 %v500, %v496
    %v597 = vpack.c.b16 %v501, %v497
    %v598 = vpack.c.b16 %v506, %v502
    %v599 = vpack.c.b16 %v507, %v503
    %v600 = vpack.c.b16 %v508, %v504
    %v601 = vpack.c.b16 %v509, %v505
    %v602 = vpack.c.b16 %v514, %v510
    %v603 = vpack.c.b16 %v515, %v511
    %v604 = vpack.c.b16 %v516, %v512
    %v605 = vpack.c.b16 %v517, %v513
    %v606 = vpack.c.b16 %v522, %v518
    %v607 = vpack.c.b16 %v523, %v519
    %v608 = vpack.c.b16 %v524, %v520
    %v609 = vpack.c.b16 %v525, %v521
    %v610 = vpack.c.b16 %v530, %v526
    %v611 = vpack.c.b16 %v531, %v527
    %v612 = vpack.c.b16 %v532, %v528
    %v613 = vpack.c.b16 %v533, %v529
    %v614 = vpack.c.b16 %v538, %v534
    %v615 = vpack.c.b16 %v539, %v535
    %v616 = vpack.c.b16 %v540, %v536
    %v617 = vpack.c.b16 %v541, %v537
    %v618 = vpack.c.b16 %v546, %v542
    %v619 = vpack.c.b16 %v547, %v543
    %v620 = vpack.c.b16 %v548, %v544
    %v621 = vpack.c.b16 %v549, %v545
    %v622 = vpack.c.b16 %v554, %v550
    %v623 = vpack.c.b16 %v555, %v551
    %v624 = vpack.c.b16 %v556, %v552
    %v625 = vpack.c.b16 %v557, %v553
    %v626 = vpack.c.b16 %v562, %v558
    %v627 = vpack.c.b16 %v563, %v559
    %v628 = vpack.c.b16 %v564, %v560
    %v629 = vpack.c.b16 %v565, %v561
    %694 = vmatprep.subr.bf16.mxu0 %v595
    %695 = vmatpush1.bf16.msra.mxu0 %v594
    %696 = vmatprep.subr.bf16.mxu0 %v591
    %697 = vmatpush1.bf16.msra.mxu0 %v590
    %698 = vmatprep.subr.bf16.mxu0 %v587
    %699 = vmatpush1.bf16.msra.mxu0 %v586
    %700 = vmatprep.subr.bf16.mxu0 %v583
    %701 = vmatpush1.bf16.msra.mxu0 %v582
    %702 = vmatprep.subr.bf16.mxu0 %v579
    %703 = vmatpush1.bf16.msra.mxu0 %v578
    %704 = vmatprep.subr.bf16.mxu0 %v575
    %705 = vmatpush1.bf16.msra.mxu0 %v574
    %706 = vmatprep.subr.bf16.mxu0 %v571
    %707 = vmatpush1.bf16.msra.mxu0 %v570
    %708 = vmatprep.subr.bf16.mxu0 %v567
    %709 = vmatpush1.bf16.msra.mxu0 %v566
    %710 = vmatprep.subr.bf16.mxu0 %v627
    %711 = vmatpush2.bf16.msra.mxu0 %v626
    %712 = vmatprep.subr.bf16.mxu0 %v623
    %713 = vmatpush2.bf16.msra.mxu0 %v622
    %714 = vmatprep.subr.bf16.mxu0 %v619
    %715 = vmatpush2.bf16.msra.mxu0 %v618
    %716 = vmatprep.subr.bf16.mxu0 %v615
    %717 = vmatpush2.bf16.msra.mxu0 %v614
    %718 = vmatprep.subr.bf16.mxu0 %v611
    %719 = vmatpush2.bf16.msra.mxu0 %v610
    %720 = vmatprep.subr.bf16.mxu0 %v607
    %721 = vmatpush2.bf16.msra.mxu0 %v606
    %722 = vmatprep.subr.bf16.mxu0 %v603
    %723 = vmatpush2.bf16.msra.mxu0 %v602
    %724 = vmatprep.subr.bf16.mxu0 %v599
    %725 = vmatpush2.bf16.msra.mxu0 %v598
    %726 = vmatprep.mubr.bf16.mxu0 %v309
    %727 = vmatmul.mubr.bf16.gmra.mxu0 %v308
    %v728 = vpop.f32.mrf.mxu0
    %v729 = vadd.f32 0.0, %v728
    %v730 = vpop.f32.mrf.mxu0
    %v731 = vadd.f32 0.0, %v730
    %v732 = vpop.f32.mrf.mxu0
    %v733 = vpop.f32.mrf.mxu0
    %734 = vdwg.mxu0
    %735 = vmatprep.subr.bf16.mxu0 %v597
    %736 = vmatpush1.bf16.msra.mxu0 %v596
    %737 = vmatprep.subr.bf16.mxu0 %v593
    %738 = vmatpush1.bf16.msra.mxu0 %v592
    %739 = vmatprep.subr.bf16.mxu0 %v589
    %740 = vmatpush1.bf16.msra.mxu0 %v588
    %741 = vmatprep.subr.bf16.mxu0 %v585
    %742 = vmatpush1.bf16.msra.mxu0 %v584
    %743 = vmatprep.subr.bf16.mxu0 %v581
    %744 = vmatpush1.bf16.msra.mxu0 %v580
    %745 = vmatprep.subr.bf16.mxu0 %v577
    %746 = vmatpush1.bf16.msra.mxu0 %v576
    %747 = vmatprep.subr.bf16.mxu0 %v573
    %748 = vmatpush1.bf16.msra.mxu0 %v572
    %749 = vmatprep.subr.bf16.mxu0 %v569
    %750 = vmatpush1.bf16.msra.mxu0 %v568
    %751 = vmatprep.subr.bf16.mxu0 %v629
    %752 = vmatpush2.bf16.msra.mxu0 %v628
    %753 = vmatprep.subr.bf16.mxu0 %v625
    %754 = vmatpush2.bf16.msra.mxu0 %v624
    %755 = vmatprep.subr.bf16.mxu0 %v621
    %756 = vmatpush2.bf16.msra.mxu0 %v620
    %757 = vmatprep.subr.bf16.mxu0 %v617
    %758 = vmatpush2.bf16.msra.mxu0 %v616
    %759 = vmatprep.subr.bf16.mxu0 %v613
    %760 = vmatpush2.bf16.msra.mxu0 %v612
    %761 = vmatprep.subr.bf16.mxu0 %v609
    %762 = vmatpush2.bf16.msra.mxu0 %v608
    %763 = vmatprep.subr.bf16.mxu0 %v605
    %764 = vmatpush2.bf16.msra.mxu0 %v604
    %765 = vmatprep.subr.bf16.mxu0 %v601
    %766 = vmatpush2.bf16.msra.mxu0 %v600
    %767 = vmatprep.mubr.bf16.mxu0 %v309
    %768 = vmatmul.mubr.bf16.gmra.mxu0 %v308
    %v769 = vpop.f32.mrf.mxu0
    %v770 = vadd.f32 0.0, %v769
    %v771 = vpop.f32.mrf.mxu0
    %v772 = vadd.f32 0.0, %v771
    %v773 = vpop.f32.mrf.mxu0
    %v774 = vpop.f32.mrf.mxu0
    %775 = vdwg.mxu0
    %v776 = vpack.c.bf16 %v729, %v729
    %v777 = vpack.c.bf16 %v731, %v731
    %v778 = vpack.c.bf16 %v770, %v770
    %v779 = vpack.c.bf16 %v772, %v772
    %v780 = vld [vmem:[#allocation8] sm:$0xf]
    %v782 = vlaneseq
    %v783 = vshrl.u32 %v782, 7
    %v784 = vsub.s32 0, %v783
    %v785 = vrot.slane %v780, %v784
    %v786 = vlaneseq
    %v787 = vshrl.u32 %v786, 7
    %v788 = vsub.s32 1, %v787
    %v789 = vrot.slane %v780, %v788
    %v790 = vlaneseq
    %v791 = vshrl.u32 %v790, 7
    %v792 = vsub.s32 2, %v791
    %v793 = vrot.slane %v780, %v792
    %v794 = vlaneseq
    %v795 = vshrl.u32 %v794, 7
    %v796 = vsub.s32 3, %v795
    %v797 = vrot.slane %v780, %v796
    %v802 = vpack.c.bf16 %v785, %v785
    %v803 = vpack.c.bf16 %v789, %v789
    %v804 = vpack.c.bf16 %v793, %v793
    %v805 = vpack.c.bf16 %v797, %v797
    %v807 = vpack.i.b16 %v802, %v802
    %v809 = vlaneseq
    %v810 = vshrl.u32 %v809, 7
    %v811 = vsub.s32 0, %v810
    %v812 = vrot.slane %v807, %v811
    %v814 = vpack.i.b16 %v803, %v803
    %v816 = vlaneseq
    %v817 = vshrl.u32 %v816, 7
    %v818 = vsub.s32 0, %v817
    %v819 = vrot.slane %v814, %v818
    %v821 = vpack.i.b16 %v804, %v804
    %v823 = vlaneseq
    %v824 = vshrl.u32 %v823, 7
    %v825 = vsub.s32 0, %v824
    %v826 = vrot.slane %v821, %v825
    %v828 = vpack.i.b16 %v805, %v805
    %v830 = vlaneseq
    %v831 = vshrl.u32 %v830, 7
    %v832 = vsub.s32 0, %v831
    %v833 = vrot.slane %v828, %v832
    %v834 = vadd.bf16 %v776, %v812
    %v835 = vadd.bf16 %v777, %v819
    %v836 = vadd.bf16 %v778, %v826
    %v837 = vadd.bf16 %v779, %v833
    %v838 = vmul.bf16 %v834, 1045249613
    %v839 = vmul.bf16 %v835, 1045249613
    %v840 = vmul.bf16 %v836, 1045249613
    %v841 = vmul.bf16 %v837, 1045249613
    %v842 = vmax.bf16 %v834, %v838
    %v843 = vmax.bf16 %v835, %v839
    %v844 = vmax.bf16 %v836, %v840
    %v845 = vmax.bf16 %v837, %v841
    %v846 = vld [vmem:[#allocation10] sm:$0xff]
    %v847 = vld [vmem:[#allocation10 + $0x8] sm:$0xff]
    %v848 = vld [vmem:[#allocation10 + $0x10] sm:$0xff]
    %v849 = vld [vmem:[#allocation10 + $0x18] sm:$0xff]
    %v850 = vld [vmem:[#allocation10 + $0x20] sm:$0xff]
    %v851 = vld [vmem:[#allocation10 + $0x28] sm:$0xff]
    %v852 = vld [vmem:[#allocation10 + $0x30] sm:$0xff]
    %v853 = vld [vmem:[#allocation10 + $0x38] sm:$0xff]
    %v854 = vld [vmem:[#allocation10 + $0x40] sm:$0xff]
    %v855 = vld [vmem:[#allocation10 + $0x48] sm:$0xff]
    %v856 = vld [vmem:[#allocation10 + $0x50] sm:$0xff]
    %v857 = vld [vmem:[#allocation10 + $0x58] sm:$0xff]
    %v858 = vld [vmem:[#allocation10 + $0x60] sm:$0xff]
    %v859 = vld [vmem:[#allocation10 + $0x68] sm:$0xff]
    %v860 = vld [vmem:[#allocation10 + $0x70] sm:$0xff]
    %v861 = vld [vmem:[#allocation10 + $0x78] sm:$0xff]
    %v862 = vld [vmem:[#allocation10 + $0x80] sm:$0xff]
    %v863 = vld [vmem:[#allocation10 + $0x88] sm:$0xff]
    %v864 = vld [vmem:[#allocation10 + $0x90] sm:$0xff]
    %v865 = vld [vmem:[#allocation10 + $0x98] sm:$0xff]
    %v866 = vld [vmem:[#allocation10 + $0xa0] sm:$0xff]
    %v867 = vld [vmem:[#allocation10 + $0xa8] sm:$0xff]
    %v868 = vld [vmem:[#allocation10 + $0xb0] sm:$0xff]
    %v869 = vld [vmem:[#allocation10 + $0xb8] sm:$0xff]
    %v870 = vld [vmem:[#allocation10 + $0xc0] sm:$0xff]
    %v871 = vld [vmem:[#allocation10 + $0xc8] sm:$0xff]
    %v872 = vld [vmem:[#allocation10 + $0xd0] sm:$0xff]
    %v873 = vld [vmem:[#allocation10 + $0xd8] sm:$0xff]
    %v874 = vld [vmem:[#allocation10 + $0xe0] sm:$0xff]
    %v875 = vld [vmem:[#allocation10 + $0xe8] sm:$0xff]
    %v876 = vld [vmem:[#allocation10 + $0xf0] sm:$0xff]
    %v877 = vld [vmem:[#allocation10 + $0xf8] sm:$0xff]
    %v878 = vld [vmem:[#allocation10 + $0x100] sm:$0xff]
    %v879 = vld [vmem:[#allocation10 + $0x108] sm:$0xff]
    %v880 = vld [vmem:[#allocation10 + $0x110] sm:$0xff]
    %v881 = vld [vmem:[#allocation10 + $0x118] sm:$0xff]
    %v882 = vld [vmem:[#allocation10 + $0x120] sm:$0xff]
    %v883 = vld [vmem:[#allocation10 + $0x128] sm:$0xff]
    %v884 = vld [vmem:[#allocation10 + $0x130] sm:$0xff]
    %v885 = vld [vmem:[#allocation10 + $0x138] sm:$0xff]
    %v886 = vld [vmem:[#allocation10 + $0x140] sm:$0xff]
    %v887 = vld [vmem:[#allocation10 + $0x148] sm:$0xff]
    %v888 = vld [vmem:[#allocation10 + $0x150] sm:$0xff]
    %v889 = vld [vmem:[#allocation10 + $0x158] sm:$0xff]
    %v890 = vld [vmem:[#allocation10 + $0x160] sm:$0xff]
    %v891 = vld [vmem:[#allocation10 + $0x168] sm:$0xff]
    %v892 = vld [vmem:[#allocation10 + $0x170] sm:$0xff]
    %v893 = vld [vmem:[#allocation10 + $0x178] sm:$0xff]
    %v894 = vld [vmem:[#allocation10 + $0x180] sm:$0xff]
    %v895 = vld [vmem:[#allocation10 + $0x188] sm:$0xff]
    %v896 = vld [vmem:[#allocation10 + $0x190] sm:$0xff]
    %v897 = vld [vmem:[#allocation10 + $0x198] sm:$0xff]
    %v898 = vld [vmem:[#allocation10 + $0x1a0] sm:$0xff]
    %v899 = vld [vmem:[#allocation10 + $0x1a8] sm:$0xff]
    %v900 = vld [vmem:[#allocation10 + $0x1b0] sm:$0xff]
    %v901 = vld [vmem:[#allocation10 + $0x1b8] sm:$0xff]
    %v902 = vld [vmem:[#allocation10 + $0x1c0] sm:$0xff]
    %v903 = vld [vmem:[#allocation10 + $0x1c8] sm:$0xff]
    %v904 = vld [vmem:[#allocation10 + $0x1d0] sm:$0xff]
    %v905 = vld [vmem:[#allocation10 + $0x1d8] sm:$0xff]
    %v906 = vld [vmem:[#allocation10 + $0x1e0] sm:$0xff]
    %v907 = vld [vmem:[#allocation10 + $0x1e8] sm:$0xff]
    %v908 = vld [vmem:[#allocation10 + $0x1f0] sm:$0xff]
    %v909 = vld [vmem:[#allocation10 + $0x1f8] sm:$0xff]
    %v910 = vld [vmem:[#allocation10 + $0x200] sm:$0xff]
    %v911 = vld [vmem:[#allocation10 + $0x208] sm:$0xff]
    %v912 = vld [vmem:[#allocation10 + $0x210] sm:$0xff]
    %v913 = vld [vmem:[#allocation10 + $0x218] sm:$0xff]
    %v914 = vld [vmem:[#allocation10 + $0x220] sm:$0xff]
    %v915 = vld [vmem:[#allocation10 + $0x228] sm:$0xff]
    %v916 = vld [vmem:[#allocation10 + $0x230] sm:$0xff]
    %v917 = vld [vmem:[#allocation10 + $0x238] sm:$0xff]
    %v918 = vld [vmem:[#allocation10 + $0x240] sm:$0xff]
    %v919 = vld [vmem:[#allocation10 + $0x248] sm:$0xff]
    %v920 = vld [vmem:[#allocation10 + $0x250] sm:$0xff]
    %v921 = vld [vmem:[#allocation10 + $0x258] sm:$0xff]
    %v922 = vld [vmem:[#allocation10 + $0x260] sm:$0xff]
    %v923 = vld [vmem:[#allocation10 + $0x268] sm:$0xff]
    %v924 = vld [vmem:[#allocation10 + $0x270] sm:$0xff]
    %v925 = vld [vmem:[#allocation10 + $0x278] sm:$0xff]
    %v926 = vld [vmem:[#allocation10 + $0x280] sm:$0xff]
    %v927 = vld [vmem:[#allocation10 + $0x288] sm:$0xff]
    %v928 = vld [vmem:[#allocation10 + $0x290] sm:$0xff]
    %v929 = vld [vmem:[#allocation10 + $0x298] sm:$0xff]
    %v930 = vld [vmem:[#allocation10 + $0x2a0] sm:$0xff]
    %v931 = vld [vmem:[#allocation10 + $0x2a8] sm:$0xff]
    %v932 = vld [vmem:[#allocation10 + $0x2b0] sm:$0xff]
    %v933 = vld [vmem:[#allocation10 + $0x2b8] sm:$0xff]
    %v934 = vld [vmem:[#allocation10 + $0x2c0] sm:$0xff]
    %v935 = vld [vmem:[#allocation10 + $0x2c8] sm:$0xff]
    %v936 = vld [vmem:[#allocation10 + $0x2d0] sm:$0xff]
    %v937 = vld [vmem:[#allocation10 + $0x2d8] sm:$0xff]
    %v938 = vld [vmem:[#allocation10 + $0x2e0] sm:$0xff]
    %v939 = vld [vmem:[#allocation10 + $0x2e8] sm:$0xff]
    %v940 = vld [vmem:[#allocation10 + $0x2f0] sm:$0xff]
    %v941 = vld [vmem:[#allocation10 + $0x2f8] sm:$0xff]
    %v942 = vld [vmem:[#allocation10 + $0x300] sm:$0xff]
    %v943 = vld [vmem:[#allocation10 + $0x308] sm:$0xff]
    %v944 = vld [vmem:[#allocation10 + $0x310] sm:$0xff]
    %v945 = vld [vmem:[#allocation10 + $0x318] sm:$0xff]
    %v946 = vld [vmem:[#allocation10 + $0x320] sm:$0xff]
    %v947 = vld [vmem:[#allocation10 + $0x328] sm:$0xff]
    %v948 = vld [vmem:[#allocation10 + $0x330] sm:$0xff]
    %v949 = vld [vmem:[#allocation10 + $0x338] sm:$0xff]
    %v950 = vld [vmem:[#allocation10 + $0x340] sm:$0xff]
    %v951 = vld [vmem:[#allocation10 + $0x348] sm:$0xff]
    %v952 = vld [vmem:[#allocation10 + $0x350] sm:$0xff]
    %v953 = vld [vmem:[#allocation10 + $0x358] sm:$0xff]
    %v954 = vld [vmem:[#allocation10 + $0x360] sm:$0xff]
    %v955 = vld [vmem:[#allocation10 + $0x368] sm:$0xff]
    %v956 = vld [vmem:[#allocation10 + $0x370] sm:$0xff]
    %v957 = vld [vmem:[#allocation10 + $0x378] sm:$0xff]
    %v958 = vld [vmem:[#allocation10 + $0x380] sm:$0xff]
    %v959 = vld [vmem:[#allocation10 + $0x388] sm:$0xff]
    %v960 = vld [vmem:[#allocation10 + $0x390] sm:$0xff]
    %v961 = vld [vmem:[#allocation10 + $0x398] sm:$0xff]
    %v962 = vld [vmem:[#allocation10 + $0x3a0] sm:$0xff]
    %v963 = vld [vmem:[#allocation10 + $0x3a8] sm:$0xff]
    %v964 = vld [vmem:[#allocation10 + $0x3b0] sm:$0xff]
    %v965 = vld [vmem:[#allocation10 + $0x3b8] sm:$0xff]
    %v966 = vld [vmem:[#allocation10 + $0x3c0] sm:$0xff]
    %v967 = vld [vmem:[#allocation10 + $0x3c8] sm:$0xff]
    %v968 = vld [vmem:[#allocation10 + $0x3d0] sm:$0xff]
    %v969 = vld [vmem:[#allocation10 + $0x3d8] sm:$0xff]
    %v970 = vld [vmem:[#allocation10 + $0x3e0] sm:$0xff]
    %v971 = vld [vmem:[#allocation10 + $0x3e8] sm:$0xff]
    %v972 = vld [vmem:[#allocation10 + $0x3f0] sm:$0xff]
    %v973 = vld [vmem:[#allocation10 + $0x3f8] sm:$0xff]
    %v974 = vld [vmem:[#allocation10 + $0x400] sm:$0xff]
    %v975 = vld [vmem:[#allocation10 + $0x408] sm:$0xff]
    %v976 = vld [vmem:[#allocation10 + $0x410] sm:$0xff]
    %v977 = vld [vmem:[#allocation10 + $0x418] sm:$0xff]
    %v978 = vld [vmem:[#allocation10 + $0x420] sm:$0xff]
    %v979 = vld [vmem:[#allocation10 + $0x428] sm:$0xff]
    %v980 = vld [vmem:[#allocation10 + $0x430] sm:$0xff]
    %v981 = vld [vmem:[#allocation10 + $0x438] sm:$0xff]
    %v982 = vld [vmem:[#allocation10 + $0x440] sm:$0xff]
    %v983 = vld [vmem:[#allocation10 + $0x448] sm:$0xff]
    %v984 = vld [vmem:[#allocation10 + $0x450] sm:$0xff]
    %v985 = vld [vmem:[#allocation10 + $0x458] sm:$0xff]
    %v986 = vld [vmem:[#allocation10 + $0x460] sm:$0xff]
    %v987 = vld [vmem:[#allocation10 + $0x468] sm:$0xff]
    %v988 = vld [vmem:[#allocation10 + $0x470] sm:$0xff]
    %v989 = vld [vmem:[#allocation10 + $0x478] sm:$0xff]
    %v990 = vld [vmem:[#allocation10 + $0x480] sm:$0xff]
    %v991 = vld [vmem:[#allocation10 + $0x488] sm:$0xff]
    %v992 = vld [vmem:[#allocation10 + $0x490] sm:$0xff]
    %v993 = vld [vmem:[#allocation10 + $0x498] sm:$0xff]
    %v994 = vld [vmem:[#allocation10 + $0x4a0] sm:$0xff]
    %v995 = vld [vmem:[#allocation10 + $0x4a8] sm:$0xff]
    %v996 = vld [vmem:[#allocation10 + $0x4b0] sm:$0xff]
    %v997 = vld [vmem:[#allocation10 + $0x4b8] sm:$0xff]
    %v998 = vld [vmem:[#allocation10 + $0x4c0] sm:$0xff]
    %v999 = vld [vmem:[#allocation10 + $0x4c8] sm:$0xff]
    %v1000 = vld [vmem:[#allocation10 + $0x4d0] sm:$0xff]
    %v1001 = vld [vmem:[#allocation10 + $0x4d8] sm:$0xff]
    %v1002 = vld [vmem:[#allocation10 + $0x4e0] sm:$0xff]
    %v1003 = vld [vmem:[#allocation10 + $0x4e8] sm:$0xff]
    %v1004 = vld [vmem:[#allocation10 + $0x4f0] sm:$0xff]
    %v1005 = vld [vmem:[#allocation10 + $0x4f8] sm:$0xff]
    %v1006 = vld [vmem:[#allocation10 + $0x500] sm:$0xff]
    %v1007 = vld [vmem:[#allocation10 + $0x508] sm:$0xff]
    %v1008 = vld [vmem:[#allocation10 + $0x510] sm:$0xff]
    %v1009 = vld [vmem:[#allocation10 + $0x518] sm:$0xff]
    %v1010 = vld [vmem:[#allocation10 + $0x520] sm:$0xff]
    %v1011 = vld [vmem:[#allocation10 + $0x528] sm:$0xff]
    %v1012 = vld [vmem:[#allocation10 + $0x530] sm:$0xff]
    %v1013 = vld [vmem:[#allocation10 + $0x538] sm:$0xff]
    %v1014 = vld [vmem:[#allocation10 + $0x540] sm:$0xff]
    %v1015 = vld [vmem:[#allocation10 + $0x548] sm:$0xff]
    %v1016 = vld [vmem:[#allocation10 + $0x550] sm:$0xff]
    %v1017 = vld [vmem:[#allocation10 + $0x558] sm:$0xff]
    %v1018 = vld [vmem:[#allocation10 + $0x560] sm:$0xff]
    %v1019 = vld [vmem:[#allocation10 + $0x568] sm:$0xff]
    %v1020 = vld [vmem:[#allocation10 + $0x570] sm:$0xff]
    %v1021 = vld [vmem:[#allocation10 + $0x578] sm:$0xff]
    %v1022 = vld [vmem:[#allocation10 + $0x580] sm:$0xff]
    %v1023 = vld [vmem:[#allocation10 + $0x588] sm:$0xff]
    %v1024 = vld [vmem:[#allocation10 + $0x590] sm:$0xff]
    %v1025 = vld [vmem:[#allocation10 + $0x598] sm:$0xff]
    %v1026 = vld [vmem:[#allocation10 + $0x5a0] sm:$0xff]
    %v1027 = vld [vmem:[#allocation10 + $0x5a8] sm:$0xff]
    %v1028 = vld [vmem:[#allocation10 + $0x5b0] sm:$0xff]
    %v1029 = vld [vmem:[#allocation10 + $0x5b8] sm:$0xff]
    %v1030 = vld [vmem:[#allocation10 + $0x5c0] sm:$0xff]
    %v1031 = vld [vmem:[#allocation10 + $0x5c8] sm:$0xff]
    %v1032 = vld [vmem:[#allocation10 + $0x5d0] sm:$0xff]
    %v1033 = vld [vmem:[#allocation10 + $0x5d8] sm:$0xff]
    %v1034 = vld [vmem:[#allocation10 + $0x5e0] sm:$0xff]
    %v1035 = vld [vmem:[#allocation10 + $0x5e8] sm:$0xff]
    %v1036 = vld [vmem:[#allocation10 + $0x5f0] sm:$0xff]
    %v1037 = vld [vmem:[#allocation10 + $0x5f8] sm:$0xff]
    %v1038 = vld [vmem:[#allocation10 + $0x600] sm:$0xff]
    %v1039 = vld [vmem:[#allocation10 + $0x608] sm:$0xff]
    %v1040 = vld [vmem:[#allocation10 + $0x610] sm:$0xff]
    %v1041 = vld [vmem:[#allocation10 + $0x618] sm:$0xff]
    %v1042 = vld [vmem:[#allocation10 + $0x620] sm:$0xff]
    %v1043 = vld [vmem:[#allocation10 + $0x628] sm:$0xff]
    %v1044 = vld [vmem:[#allocation10 + $0x630] sm:$0xff]
    %v1045 = vld [vmem:[#allocation10 + $0x638] sm:$0xff]
    %v1046 = vld [vmem:[#allocation10 + $0x640] sm:$0xff]
    %v1047 = vld [vmem:[#allocation10 + $0x648] sm:$0xff]
    %v1048 = vld [vmem:[#allocation10 + $0x650] sm:$0xff]
    %v1049 = vld [vmem:[#allocation10 + $0x658] sm:$0xff]
    %v1050 = vld [vmem:[#allocation10 + $0x660] sm:$0xff]
    %v1051 = vld [vmem:[#allocation10 + $0x668] sm:$0xff]
    %v1052 = vld [vmem:[#allocation10 + $0x670] sm:$0xff]
    %v1053 = vld [vmem:[#allocation10 + $0x678] sm:$0xff]
    %v1054 = vld [vmem:[#allocation10 + $0x680] sm:$0xff]
    %v1055 = vld [vmem:[#allocation10 + $0x688] sm:$0xff]
    %v1056 = vld [vmem:[#allocation10 + $0x690] sm:$0xff]
    %v1057 = vld [vmem:[#allocation10 + $0x698] sm:$0xff]
    %v1058 = vld [vmem:[#allocation10 + $0x6a0] sm:$0xff]
    %v1059 = vld [vmem:[#allocation10 + $0x6a8] sm:$0xff]
    %v1060 = vld [vmem:[#allocation10 + $0x6b0] sm:$0xff]
    %v1061 = vld [vmem:[#allocation10 + $0x6b8] sm:$0xff]
    %v1062 = vld [vmem:[#allocation10 + $0x6c0] sm:$0xff]
    %v1063 = vld [vmem:[#allocation10 + $0x6c8] sm:$0xff]
    %v1064 = vld [vmem:[#allocation10 + $0x6d0] sm:$0xff]
    %v1065 = vld [vmem:[#allocation10 + $0x6d8] sm:$0xff]
    %v1066 = vld [vmem:[#allocation10 + $0x6e0] sm:$0xff]
    %v1067 = vld [vmem:[#allocation10 + $0x6e8] sm:$0xff]
    %v1068 = vld [vmem:[#allocation10 + $0x6f0] sm:$0xff]
    %v1069 = vld [vmem:[#allocation10 + $0x6f8] sm:$0xff]
    %v1070 = vld [vmem:[#allocation10 + $0x700] sm:$0xff]
    %v1071 = vld [vmem:[#allocation10 + $0x708] sm:$0xff]
    %v1072 = vld [vmem:[#allocation10 + $0x710] sm:$0xff]
    %v1073 = vld [vmem:[#allocation10 + $0x718] sm:$0xff]
    %v1074 = vld [vmem:[#allocation10 + $0x720] sm:$0xff]
    %v1075 = vld [vmem:[#allocation10 + $0x728] sm:$0xff]
    %v1076 = vld [vmem:[#allocation10 + $0x730] sm:$0xff]
    %v1077 = vld [vmem:[#allocation10 + $0x738] sm:$0xff]
    %v1078 = vld [vmem:[#allocation10 + $0x740] sm:$0xff]
    %v1079 = vld [vmem:[#allocation10 + $0x748] sm:$0xff]
    %v1080 = vld [vmem:[#allocation10 + $0x750] sm:$0xff]
    %v1081 = vld [vmem:[#allocation10 + $0x758] sm:$0xff]
    %v1082 = vld [vmem:[#allocation10 + $0x760] sm:$0xff]
    %v1083 = vld [vmem:[#allocation10 + $0x768] sm:$0xff]
    %v1084 = vld [vmem:[#allocation10 + $0x770] sm:$0xff]
    %v1085 = vld [vmem:[#allocation10 + $0x778] sm:$0xff]
    %v1086 = vld [vmem:[#allocation10 + $0x780] sm:$0xff]
    %v1087 = vld [vmem:[#allocation10 + $0x788] sm:$0xff]
    %v1088 = vld [vmem:[#allocation10 + $0x790] sm:$0xff]
    %v1089 = vld [vmem:[#allocation10 + $0x798] sm:$0xff]
    %v1090 = vld [vmem:[#allocation10 + $0x7a0] sm:$0xff]
    %v1091 = vld [vmem:[#allocation10 + $0x7a8] sm:$0xff]
    %v1092 = vld [vmem:[#allocation10 + $0x7b0] sm:$0xff]
    %v1093 = vld [vmem:[#allocation10 + $0x7b8] sm:$0xff]
    %v1094 = vld [vmem:[#allocation10 + $0x7c0] sm:$0xff]
    %v1095 = vld [vmem:[#allocation10 + $0x7c8] sm:$0xff]
    %v1096 = vld [vmem:[#allocation10 + $0x7d0] sm:$0xff]
    %v1097 = vld [vmem:[#allocation10 + $0x7d8] sm:$0xff]
    %v1098 = vld [vmem:[#allocation10 + $0x7e0] sm:$0xff]
    %v1099 = vld [vmem:[#allocation10 + $0x7e8] sm:$0xff]
    %v1100 = vld [vmem:[#allocation10 + $0x7f0] sm:$0xff]
    %v1101 = vld [vmem:[#allocation10 + $0x7f8] sm:$0xff]
    %v1358 = vunpack.c.l.b16 %v846
    %v1359 = vunpack.c.h.b16 %v846
    %v1360 = vunpack.c.l.b16 %v847
    %v1361 = vunpack.c.h.b16 %v847
    %v1362 = vunpack.c.l.b16 %v848
    %v1363 = vunpack.c.h.b16 %v848
    %v1364 = vunpack.c.l.b16 %v849
    %v1365 = vunpack.c.h.b16 %v849
    %v1366 = vunpack.c.l.b16 %v850
    %v1367 = vunpack.c.h.b16 %v850
    %v1368 = vunpack.c.l.b16 %v851
    %v1369 = vunpack.c.h.b16 %v851
    %v1370 = vunpack.c.l.b16 %v852
    %v1371 = vunpack.c.h.b16 %v852
    %v1372 = vunpack.c.l.b16 %v853
    %v1373 = vunpack.c.h.b16 %v853
    %v1374 = vunpack.c.l.b16 %v854
    %v1375 = vunpack.c.h.b16 %v854
    %v1376 = vunpack.c.l.b16 %v855
    %v1377 = vunpack.c.h.b16 %v855
    %v1378 = vunpack.c.l.b16 %v856
    %v1379 = vunpack.c.h.b16 %v856
    %v1380 = vunpack.c.l.b16 %v857
    %v1381 = vunpack.c.h.b16 %v857
    %v1382 = vunpack.c.l.b16 %v858
    %v1383 = vunpack.c.h.b16 %v858
    %v1384 = vunpack.c.l.b16 %v859
    %v1385 = vunpack.c.h.b16 %v859
    %v1386 = vunpack.c.l.b16 %v860
    %v1387 = vunpack.c.h.b16 %v860
    %v1388 = vunpack.c.l.b16 %v861
    %v1389 = vunpack.c.h.b16 %v861
    %v1390 = vunpack.c.l.b16 %v862
    %v1391 = vunpack.c.h.b16 %v862
    %v1392 = vunpack.c.l.b16 %v863
    %v1393 = vunpack.c.h.b16 %v863
    %v1394 = vunpack.c.l.b16 %v864
    %v1395 = vunpack.c.h.b16 %v864
    %v1396 = vunpack.c.l.b16 %v865
    %v1397 = vunpack.c.h.b16 %v865
    %v1398 = vunpack.c.l.b16 %v866
    %v1399 = vunpack.c.h.b16 %v866
    %v1400 = vunpack.c.l.b16 %v867
    %v1401 = vunpack.c.h.b16 %v867
    %v1402 = vunpack.c.l.b16 %v868
    %v1403 = vunpack.c.h.b16 %v868
    %v1404 = vunpack.c.l.b16 %v869
    %v1405 = vunpack.c.h.b16 %v869
    %v1406 = vunpack.c.l.b16 %v870
    %v1407 = vunpack.c.h.b16 %v870
    %v1408 = vunpack.c.l.b16 %v871
    %v1409 = vunpack.c.h.b16 %v871
    %v1410 = vunpack.c.l.b16 %v872
    %v1411 = vunpack.c.h.b16 %v872
    %v1412 = vunpack.c.l.b16 %v873
    %v1413 = vunpack.c.h.b16 %v873
    %v1414 = vunpack.c.l.b16 %v874
    %v1415 = vunpack.c.h.b16 %v874
    %v1416 = vunpack.c.l.b16 %v875
    %v1417 = vunpack.c.h.b16 %v875
    %v1418 = vunpack.c.l.b16 %v876
    %v1419 = vunpack.c.h.b16 %v876
    %v1420 = vunpack.c.l.b16 %v877
    %v1421 = vunpack.c.h.b16 %v877
    %v1422 = vunpack.c.l.b16 %v878
    %v1423 = vunpack.c.h.b16 %v878
    %v1424 = vunpack.c.l.b16 %v879
    %v1425 = vunpack.c.h.b16 %v879
    %v1426 = vunpack.c.l.b16 %v880
    %v1427 = vunpack.c.h.b16 %v880
    %v1428 = vunpack.c.l.b16 %v881
    %v1429 = vunpack.c.h.b16 %v881
    %v1430 = vunpack.c.l.b16 %v882
    %v1431 = vunpack.c.h.b16 %v882
    %v1432 = vunpack.c.l.b16 %v883
    %v1433 = vunpack.c.h.b16 %v883
    %v1434 = vunpack.c.l.b16 %v884
    %v1435 = vunpack.c.h.b16 %v884
    %v1436 = vunpack.c.l.b16 %v885
    %v1437 = vunpack.c.h.b16 %v885
    %v1438 = vunpack.c.l.b16 %v886
    %v1439 = vunpack.c.h.b16 %v886
    %v1440 = vunpack.c.l.b16 %v887
    %v1441 = vunpack.c.h.b16 %v887
    %v1442 = vunpack.c.l.b16 %v888
    %v1443 = vunpack.c.h.b16 %v888
    %v1444 = vunpack.c.l.b16 %v889
    %v1445 = vunpack.c.h.b16 %v889
    %v1446 = vunpack.c.l.b16 %v890
    %v1447 = vunpack.c.h.b16 %v890
    %v1448 = vunpack.c.l.b16 %v891
    %v1449 = vunpack.c.h.b16 %v891
    %v1450 = vunpack.c.l.b16 %v892
    %v1451 = vunpack.c.h.b16 %v892
    %v1452 = vunpack.c.l.b16 %v893
    %v1453 = vunpack.c.h.b16 %v893
    %v1454 = vunpack.c.l.b16 %v894
    %v1455 = vunpack.c.h.b16 %v894
    %v1456 = vunpack.c.l.b16 %v895
    %v1457 = vunpack.c.h.b16 %v895
    %v1458 = vunpack.c.l.b16 %v896
    %v1459 = vunpack.c.h.b16 %v896
    %v1460 = vunpack.c.l.b16 %v897
    %v1461 = vunpack.c.h.b16 %v897
    %v1462 = vunpack.c.l.b16 %v898
    %v1463 = vunpack.c.h.b16 %v898
    %v1464 = vunpack.c.l.b16 %v899
    %v1465 = vunpack.c.h.b16 %v899
    %v1466 = vunpack.c.l.b16 %v900
    %v1467 = vunpack.c.h.b16 %v900
    %v1468 = vunpack.c.l.b16 %v901
    %v1469 = vunpack.c.h.b16 %v901
    %v1470 = vunpack.c.l.b16 %v902
    %v1471 = vunpack.c.h.b16 %v902
    %v1472 = vunpack.c.l.b16 %v903
    %v1473 = vunpack.c.h.b16 %v903
    %v1474 = vunpack.c.l.b16 %v904
    %v1475 = vunpack.c.h.b16 %v904
    %v1476 = vunpack.c.l.b16 %v905
    %v1477 = vunpack.c.h.b16 %v905
    %v1478 = vunpack.c.l.b16 %v906
    %v1479 = vunpack.c.h.b16 %v906
    %v1480 = vunpack.c.l.b16 %v907
    %v1481 = vunpack.c.h.b16 %v907
    %v1482 = vunpack.c.l.b16 %v908
    %v1483 = vunpack.c.h.b16 %v908
    %v1484 = vunpack.c.l.b16 %v909
    %v1485 = vunpack.c.h.b16 %v909
    %v1486 = vunpack.c.l.b16 %v910
    %v1487 = vunpack.c.h.b16 %v910
    %v1488 = vunpack.c.l.b16 %v911
    %v1489 = vunpack.c.h.b16 %v911
    %v1490 = vunpack.c.l.b16 %v912
    %v1491 = vunpack.c.h.b16 %v912
    %v1492 = vunpack.c.l.b16 %v913
    %v1493 = vunpack.c.h.b16 %v913
    %v1494 = vunpack.c.l.b16 %v914
    %v1495 = vunpack.c.h.b16 %v914
    %v1496 = vunpack.c.l.b16 %v915
    %v1497 = vunpack.c.h.b16 %v915
    %v1498 = vunpack.c.l.b16 %v916
    %v1499 = vunpack.c.h.b16 %v916
    %v1500 = vunpack.c.l.b16 %v917
    %v1501 = vunpack.c.h.b16 %v917
    %v1502 = vunpack.c.l.b16 %v918
    %v1503 = vunpack.c.h.b16 %v918
    %v1504 = vunpack.c.l.b16 %v919
    %v1505 = vunpack.c.h.b16 %v919
    %v1506 = vunpack.c.l.b16 %v920
    %v1507 = vunpack.c.h.b16 %v920
    %v1508 = vunpack.c.l.b16 %v921
    %v1509 = vunpack.c.h.b16 %v921
    %v1510 = vunpack.c.l.b16 %v922
    %v1511 = vunpack.c.h.b16 %v922
    %v1512 = vunpack.c.l.b16 %v923
    %v1513 = vunpack.c.h.b16 %v923
    %v1514 = vunpack.c.l.b16 %v924
    %v1515 = vunpack.c.h.b16 %v924
    %v1516 = vunpack.c.l.b16 %v925
    %v1517 = vunpack.c.h.b16 %v925
    %v1518 = vunpack.c.l.b16 %v926
    %v1519 = vunpack.c.h.b16 %v926
    %v1520 = vunpack.c.l.b16 %v927
    %v1521 = vunpack.c.h.b16 %v927
    %v1522 = vunpack.c.l.b16 %v928
    %v1523 = vunpack.c.h.b16 %v928
    %v1524 = vunpack.c.l.b16 %v929
    %v1525 = vunpack.c.h.b16 %v929
    %v1526 = vunpack.c.l.b16 %v930
    %v1527 = vunpack.c.h.b16 %v930
    %v1528 = vunpack.c.l.b16 %v931
    %v1529 = vunpack.c.h.b16 %v931
    %v1530 = vunpack.c.l.b16 %v932
    %v1531 = vunpack.c.h.b16 %v932
    %v1532 = vunpack.c.l.b16 %v933
    %v1533 = vunpack.c.h.b16 %v933
    %v1534 = vunpack.c.l.b16 %v934
    %v1535 = vunpack.c.h.b16 %v934
    %v1536 = vunpack.c.l.b16 %v935
    %v1537 = vunpack.c.h.b16 %v935
    %v1538 = vunpack.c.l.b16 %v936
    %v1539 = vunpack.c.h.b16 %v936
    %v1540 = vunpack.c.l.b16 %v937
    %v1541 = vunpack.c.h.b16 %v937
    %v1542 = vunpack.c.l.b16 %v938
    %v1543 = vunpack.c.h.b16 %v938
    %v1544 = vunpack.c.l.b16 %v939
    %v1545 = vunpack.c.h.b16 %v939
    %v1546 = vunpack.c.l.b16 %v940
    %v1547 = vunpack.c.h.b16 %v940
    %v1548 = vunpack.c.l.b16 %v941
    %v1549 = vunpack.c.h.b16 %v941
    %v1550 = vunpack.c.l.b16 %v942
    %v1551 = vunpack.c.h.b16 %v942
    %v1552 = vunpack.c.l.b16 %v943
    %v1553 = vunpack.c.h.b16 %v943
    %v1554 = vunpack.c.l.b16 %v944
    %v1555 = vunpack.c.h.b16 %v944
    %v1556 = vunpack.c.l.b16 %v945
    %v1557 = vunpack.c.h.b16 %v945
    %v1558 = vunpack.c.l.b16 %v946
    %v1559 = vunpack.c.h.b16 %v946
    %v1560 = vunpack.c.l.b16 %v947
    %v1561 = vunpack.c.h.b16 %v947
    %v1562 = vunpack.c.l.b16 %v948
    %v1563 = vunpack.c.h.b16 %v948
    %v1564 = vunpack.c.l.b16 %v949
    %v1565 = vunpack.c.h.b16 %v949
    %v1566 = vunpack.c.l.b16 %v950
    %v1567 = vunpack.c.h.b16 %v950
    %v1568 = vunpack.c.l.b16 %v951
    %v1569 = vunpack.c.h.b16 %v951
    %v1570 = vunpack.c.l.b16 %v952
    %v1571 = vunpack.c.h.b16 %v952
    %v1572 = vunpack.c.l.b16 %v953
    %v1573 = vunpack.c.h.b16 %v953
    %v1574 = vunpack.c.l.b16 %v954
    %v1575 = vunpack.c.h.b16 %v954
    %v1576 = vunpack.c.l.b16 %v955
    %v1577 = vunpack.c.h.b16 %v955
    %v1578 = vunpack.c.l.b16 %v956
    %v1579 = vunpack.c.h.b16 %v956
    %v1580 = vunpack.c.l.b16 %v957
    %v1581 = vunpack.c.h.b16 %v957
    %v1582 = vunpack.c.l.b16 %v958
    %v1583 = vunpack.c.h.b16 %v958
    %v1584 = vunpack.c.l.b16 %v959
    %v1585 = vunpack.c.h.b16 %v959
    %v1586 = vunpack.c.l.b16 %v960
    %v1587 = vunpack.c.h.b16 %v960
    %v1588 = vunpack.c.l.b16 %v961
    %v1589 = vunpack.c.h.b16 %v961
    %v1590 = vunpack.c.l.b16 %v962
    %v1591 = vunpack.c.h.b16 %v962
    %v1592 = vunpack.c.l.b16 %v963
    %v1593 = vunpack.c.h.b16 %v963
    %v1594 = vunpack.c.l.b16 %v964
    %v1595 = vunpack.c.h.b16 %v964
    %v1596 = vunpack.c.l.b16 %v965
    %v1597 = vunpack.c.h.b16 %v965
    %v1598 = vunpack.c.l.b16 %v966
    %v1599 = vunpack.c.h.b16 %v966
    %v1600 = vunpack.c.l.b16 %v967
    %v1601 = vunpack.c.h.b16 %v967
    %v1602 = vunpack.c.l.b16 %v968
    %v1603 = vunpack.c.h.b16 %v968
    %v1604 = vunpack.c.l.b16 %v969
    %v1605 = vunpack.c.h.b16 %v969
    %v1606 = vunpack.c.l.b16 %v970
    %v1607 = vunpack.c.h.b16 %v970
    %v1608 = vunpack.c.l.b16 %v971
    %v1609 = vunpack.c.h.b16 %v971
    %v1610 = vunpack.c.l.b16 %v972
    %v1611 = vunpack.c.h.b16 %v972
    %v1612 = vunpack.c.l.b16 %v973
    %v1613 = vunpack.c.h.b16 %v973
    %v1614 = vunpack.c.l.b16 %v974
    %v1615 = vunpack.c.h.b16 %v974
    %v1616 = vunpack.c.l.b16 %v975
    %v1617 = vunpack.c.h.b16 %v975
    %v1618 = vunpack.c.l.b16 %v976
    %v1619 = vunpack.c.h.b16 %v976
    %v1620 = vunpack.c.l.b16 %v977
    %v1621 = vunpack.c.h.b16 %v977
    %v1622 = vunpack.c.l.b16 %v978
    %v1623 = vunpack.c.h.b16 %v978
    %v1624 = vunpack.c.l.b16 %v979
    %v1625 = vunpack.c.h.b16 %v979
    %v1626 = vunpack.c.l.b16 %v980
    %v1627 = vunpack.c.h.b16 %v980
    %v1628 = vunpack.c.l.b16 %v981
    %v1629 = vunpack.c.h.b16 %v981
    %v1630 = vunpack.c.l.b16 %v982
    %v1631 = vunpack.c.h.b16 %v982
    %v1632 = vunpack.c.l.b16 %v983
    %v1633 = vunpack.c.h.b16 %v983
    %v1634 = vunpack.c.l.b16 %v984
    %v1635 = vunpack.c.h.b16 %v984
    %v1636 = vunpack.c.l.b16 %v985
    %v1637 = vunpack.c.h.b16 %v985
    %v1638 = vunpack.c.l.b16 %v986
    %v1639 = vunpack.c.h.b16 %v986
    %v1640 = vunpack.c.l.b16 %v987
    %v1641 = vunpack.c.h.b16 %v987
    %v1642 = vunpack.c.l.b16 %v988
    %v1643 = vunpack.c.h.b16 %v988
    %v1644 = vunpack.c.l.b16 %v989
    %v1645 = vunpack.c.h.b16 %v989
    %v1646 = vunpack.c.l.b16 %v990
    %v1647 = vunpack.c.h.b16 %v990
    %v1648 = vunpack.c.l.b16 %v991
    %v1649 = vunpack.c.h.b16 %v991
    %v1650 = vunpack.c.l.b16 %v992
    %v1651 = vunpack.c.h.b16 %v992
    %v1652 = vunpack.c.l.b16 %v993
    %v1653 = vunpack.c.h.b16 %v993
    %v1654 = vunpack.c.l.b16 %v994
    %v1655 = vunpack.c.h.b16 %v994
    %v1656 = vunpack.c.l.b16 %v995
    %v1657 = vunpack.c.h.b16 %v995
    %v1658 = vunpack.c.l.b16 %v996
    %v1659 = vunpack.c.h.b16 %v996
    %v1660 = vunpack.c.l.b16 %v997
    %v1661 = vunpack.c.h.b16 %v997
    %v1662 = vunpack.c.l.b16 %v998
    %v1663 = vunpack.c.h.b16 %v998
    %v1664 = vunpack.c.l.b16 %v999
    %v1665 = vunpack.c.h.b16 %v999
    %v1666 = vunpack.c.l.b16 %v1000
    %v1667 = vunpack.c.h.b16 %v1000
    %v1668 = vunpack.c.l.b16 %v1001
    %v1669 = vunpack.c.h.b16 %v1001
    %v1670 = vunpack.c.l.b16 %v1002
    %v1671 = vunpack.c.h.b16 %v1002
    %v1672 = vunpack.c.l.b16 %v1003
    %v1673 = vunpack.c.h.b16 %v1003
    %v1674 = vunpack.c.l.b16 %v1004
    %v1675 = vunpack.c.h.b16 %v1004
    %v1676 = vunpack.c.l.b16 %v1005
    %v1677 = vunpack.c.h.b16 %v1005
    %v1678 = vunpack.c.l.b16 %v1006
    %v1679 = vunpack.c.h.b16 %v1006
    %v1680 = vunpack.c.l.b16 %v1007
    %v1681 = vunpack.c.h.b16 %v1007
    %v1682 = vunpack.c.l.b16 %v1008
    %v1683 = vunpack.c.h.b16 %v1008
    %v1684 = vunpack.c.l.b16 %v1009
    %v1685 = vunpack.c.h.b16 %v1009
    %v1686 = vunpack.c.l.b16 %v1010
    %v1687 = vunpack.c.h.b16 %v1010
    %v1688 = vunpack.c.l.b16 %v1011
    %v1689 = vunpack.c.h.b16 %v1011
    %v1690 = vunpack.c.l.b16 %v1012
    %v1691 = vunpack.c.h.b16 %v1012
    %v1692 = vunpack.c.l.b16 %v1013
    %v1693 = vunpack.c.h.b16 %v1013
    %v1694 = vunpack.c.l.b16 %v1014
    %v1695 = vunpack.c.h.b16 %v1014
    %v1696 = vunpack.c.l.b16 %v1015
    %v1697 = vunpack.c.h.b16 %v1015
    %v1698 = vunpack.c.l.b16 %v1016
    %v1699 = vunpack.c.h.b16 %v1016
    %v1700 = vunpack.c.l.b16 %v1017
    %v1701 = vunpack.c.h.b16 %v1017
    %v1702 = vunpack.c.l.b16 %v1018
    %v1703 = vunpack.c.h.b16 %v1018
    %v1704 = vunpack.c.l.b16 %v1019
    %v1705 = vunpack.c.h.b16 %v1019
    %v1706 = vunpack.c.l.b16 %v1020
    %v1707 = vunpack.c.h.b16 %v1020
    %v1708 = vunpack.c.l.b16 %v1021
    %v1709 = vunpack.c.h.b16 %v1021
    %v1710 = vunpack.c.l.b16 %v1022
    %v1711 = vunpack.c.h.b16 %v1022
    %v1712 = vunpack.c.l.b16 %v1023
    %v1713 = vunpack.c.h.b16 %v1023
    %v1714 = vunpack.c.l.b16 %v1024
    %v1715 = vunpack.c.h.b16 %v1024
    %v1716 = vunpack.c.l.b16 %v1025
    %v1717 = vunpack.c.h.b16 %v1025
    %v1718 = vunpack.c.l.b16 %v1026
    %v1719 = vunpack.c.h.b16 %v1026
    %v1720 = vunpack.c.l.b16 %v1027
    %v1721 = vunpack.c.h.b16 %v1027
    %v1722 = vunpack.c.l.b16 %v1028
    %v1723 = vunpack.c.h.b16 %v1028
    %v1724 = vunpack.c.l.b16 %v1029
    %v1725 = vunpack.c.h.b16 %v1029
    %v1726 = vunpack.c.l.b16 %v1030
    %v1727 = vunpack.c.h.b16 %v1030
    %v1728 = vunpack.c.l.b16 %v1031
    %v1729 = vunpack.c.h.b16 %v1031
    %v1730 = vunpack.c.l.b16 %v1032
    %v1731 = vunpack.c.h.b16 %v1032
    %v1732 = vunpack.c.l.b16 %v1033
    %v1733 = vunpack.c.h.b16 %v1033
    %v1734 = vunpack.c.l.b16 %v1034
    %v1735 = vunpack.c.h.b16 %v1034
    %v1736 = vunpack.c.l.b16 %v1035
    %v1737 = vunpack.c.h.b16 %v1035
    %v1738 = vunpack.c.l.b16 %v1036
    %v1739 = vunpack.c.h.b16 %v1036
    %v1740 = vunpack.c.l.b16 %v1037
    %v1741 = vunpack.c.h.b16 %v1037
    %v1742 = vunpack.c.l.b16 %v1038
    %v1743 = vunpack.c.h.b16 %v1038
    %v1744 = vunpack.c.l.b16 %v1039
    %v1745 = vunpack.c.h.b16 %v1039
    %v1746 = vunpack.c.l.b16 %v1040
    %v1747 = vunpack.c.h.b16 %v1040
    %v1748 = vunpack.c.l.b16 %v1041
    %v1749 = vunpack.c.h.b16 %v1041
    %v1750 = vunpack.c.l.b16 %v1042
    %v1751 = vunpack.c.h.b16 %v1042
    %v1752 = vunpack.c.l.b16 %v1043
    %v1753 = vunpack.c.h.b16 %v1043
    %v1754 = vunpack.c.l.b16 %v1044
    %v1755 = vunpack.c.h.b16 %v1044
    %v1756 = vunpack.c.l.b16 %v1045
    %v1757 = vunpack.c.h.b16 %v1045
    %v1758 = vunpack.c.l.b16 %v1046
    %v1759 = vunpack.c.h.b16 %v1046
    %v1760 = vunpack.c.l.b16 %v1047
    %v1761 = vunpack.c.h.b16 %v1047
    %v1762 = vunpack.c.l.b16 %v1048
    %v1763 = vunpack.c.h.b16 %v1048
    %v1764 = vunpack.c.l.b16 %v1049
    %v1765 = vunpack.c.h.b16 %v1049
    %v1766 = vunpack.c.l.b16 %v1050
    %v1767 = vunpack.c.h.b16 %v1050
    %v1768 = vunpack.c.l.b16 %v1051
    %v1769 = vunpack.c.h.b16 %v1051
    %v1770 = vunpack.c.l.b16 %v1052
    %v1771 = vunpack.c.h.b16 %v1052
    %v1772 = vunpack.c.l.b16 %v1053
    %v1773 = vunpack.c.h.b16 %v1053
    %v1774 = vunpack.c.l.b16 %v1054
    %v1775 = vunpack.c.h.b16 %v1054
    %v1776 = vunpack.c.l.b16 %v1055
    %v1777 = vunpack.c.h.b16 %v1055
    %v1778 = vunpack.c.l.b16 %v1056
    %v1779 = vunpack.c.h.b16 %v1056
    %v1780 = vunpack.c.l.b16 %v1057
    %v1781 = vunpack.c.h.b16 %v1057
    %v1782 = vunpack.c.l.b16 %v1058
    %v1783 = vunpack.c.h.b16 %v1058
    %v1784 = vunpack.c.l.b16 %v1059
    %v1785 = vunpack.c.h.b16 %v1059
    %v1786 = vunpack.c.l.b16 %v1060
    %v1787 = vunpack.c.h.b16 %v1060
    %v1788 = vunpack.c.l.b16 %v1061
    %v1789 = vunpack.c.h.b16 %v1061
    %v1790 = vunpack.c.l.b16 %v1062
    %v1791 = vunpack.c.h.b16 %v1062
    %v1792 = vunpack.c.l.b16 %v1063
    %v1793 = vunpack.c.h.b16 %v1063
    %v1794 = vunpack.c.l.b16 %v1064
    %v1795 = vunpack.c.h.b16 %v1064
    %v1796 = vunpack.c.l.b16 %v1065
    %v1797 = vunpack.c.h.b16 %v1065
    %v1798 = vunpack.c.l.b16 %v1066
    %v1799 = vunpack.c.h.b16 %v1066
    %v1800 = vunpack.c.l.b16 %v1067
    %v1801 = vunpack.c.h.b16 %v1067
    %v1802 = vunpack.c.l.b16 %v1068
    %v1803 = vunpack.c.h.b16 %v1068
    %v1804 = vunpack.c.l.b16 %v1069
    %v1805 = vunpack.c.h.b16 %v1069
    %v1806 = vunpack.c.l.b16 %v1070
    %v1807 = vunpack.c.h.b16 %v1070
    %v1808 = vunpack.c.l.b16 %v1071
    %v1809 = vunpack.c.h.b16 %v1071
    %v1810 = vunpack.c.l.b16 %v1072
    %v1811 = vunpack.c.h.b16 %v1072
    %v1812 = vunpack.c.l.b16 %v1073
    %v1813 = vunpack.c.h.b16 %v1073
    %v1814 = vunpack.c.l.b16 %v1074
    %v1815 = vunpack.c.h.b16 %v1074
    %v1816 = vunpack.c.l.b16 %v1075
    %v1817 = vunpack.c.h.b16 %v1075
    %v1818 = vunpack.c.l.b16 %v1076
    %v1819 = vunpack.c.h.b16 %v1076
    %v1820 = vunpack.c.l.b16 %v1077
    %v1821 = vunpack.c.h.b16 %v1077
    %v1822 = vunpack.c.l.b16 %v1078
    %v1823 = vunpack.c.h.b16 %v1078
    %v1824 = vunpack.c.l.b16 %v1079
    %v1825 = vunpack.c.h.b16 %v1079
    %v1826 = vunpack.c.l.b16 %v1080
    %v1827 = vunpack.c.h.b16 %v1080
    %v1828 = vunpack.c.l.b16 %v1081
    %v1829 = vunpack.c.h.b16 %v1081
    %v1830 = vunpack.c.l.b16 %v1082
    %v1831 = vunpack.c.h.b16 %v1082
    %v1832 = vunpack.c.l.b16 %v1083
    %v1833 = vunpack.c.h.b16 %v1083
    %v1834 = vunpack.c.l.b16 %v1084
    %v1835 = vunpack.c.h.b16 %v1084
    %v1836 = vunpack.c.l.b16 %v1085
    %v1837 = vunpack.c.h.b16 %v1085
    %v1838 = vunpack.c.l.b16 %v1086
    %v1839 = vunpack.c.h.b16 %v1086
    %v1840 = vunpack.c.l.b16 %v1087
    %v1841 = vunpack.c.h.b16 %v1087
    %v1842 = vunpack.c.l.b16 %v1088
    %v1843 = vunpack.c.h.b16 %v1088
    %v1844 = vunpack.c.l.b16 %v1089
    %v1845 = vunpack.c.h.b16 %v1089
    %v1846 = vunpack.c.l.b16 %v1090
    %v1847 = vunpack.c.h.b16 %v1090
    %v1848 = vunpack.c.l.b16 %v1091
    %v1849 = vunpack.c.h.b16 %v1091
    %v1850 = vunpack.c.l.b16 %v1092
    %v1851 = vunpack.c.h.b16 %v1092
    %v1852 = vunpack.c.l.b16 %v1093
    %v1853 = vunpack.c.h.b16 %v1093
    %v1854 = vunpack.c.l.b16 %v1094
    %v1855 = vunpack.c.h.b16 %v1094
    %v1856 = vunpack.c.l.b16 %v1095
    %v1857 = vunpack.c.h.b16 %v1095
    %v1858 = vunpack.c.l.b16 %v1096
    %v1859 = vunpack.c.h.b16 %v1096
    %v1860 = vunpack.c.l.b16 %v1097
    %v1861 = vunpack.c.h.b16 %v1097
    %v1862 = vunpack.c.l.b16 %v1098
    %v1863 = vunpack.c.h.b16 %v1098
    %v1864 = vunpack.c.l.b16 %v1099
    %v1865 = vunpack.c.h.b16 %v1099
    %v1866 = vunpack.c.l.b16 %v1100
    %v1867 = vunpack.c.h.b16 %v1100
    %v1868 = vunpack.c.l.b16 %v1101
    %v1869 = vunpack.c.h.b16 %v1101
    %v1870 = vpack.c.b16 %v1366, %v1358
    %v1871 = vpack.c.b16 %v1367, %v1359
    %v1872 = vpack.c.b16 %v1368, %v1360
    %v1873 = vpack.c.b16 %v1369, %v1361
    %v1874 = vpack.c.b16 %v1370, %v1362
    %v1875 = vpack.c.b16 %v1371, %v1363
    %v1876 = vpack.c.b16 %v1372, %v1364
    %v1877 = vpack.c.b16 %v1373, %v1365
    %v1878 = vpack.c.b16 %v1382, %v1374
    %v1879 = vpack.c.b16 %v1383, %v1375
    %v1880 = vpack.c.b16 %v1384, %v1376
    %v1881 = vpack.c.b16 %v1385, %v1377
    %v1882 = vpack.c.b16 %v1386, %v1378
    %v1883 = vpack.c.b16 %v1387, %v1379
    %v1884 = vpack.c.b16 %v1388, %v1380
    %v1885 = vpack.c.b16 %v1389, %v1381
    %v1886 = vpack.c.b16 %v1398, %v1390
    %v1887 = vpack.c.b16 %v1399, %v1391
    %v1888 = vpack.c.b16 %v1400, %v1392
    %v1889 = vpack.c.b16 %v1401, %v1393
    %v1890 = vpack.c.b16 %v1402, %v1394
    %v1891 = vpack.c.b16 %v1403, %v1395
    %v1892 = vpack.c.b16 %v1404, %v1396
    %v1893 = vpack.c.b16 %v1405, %v1397
    %v1894 = vpack.c.b16 %v1414, %v1406
    %v1895 = vpack.c.b16 %v1415, %v1407
    %v1896 = vpack.c.b16 %v1416, %v1408
    %v1897 = vpack.c.b16 %v1417, %v1409
    %v1898 = vpack.c.b16 %v1418, %v1410
    %v1899 = vpack.c.b16 %v1419, %v1411
    %v1900 = vpack.c.b16 %v1420, %v1412
    %v1901 = vpack.c.b16 %v1421, %v1413
    %v1902 = vpack.c.b16 %v1430, %v1422
    %v1903 = vpack.c.b16 %v1431, %v1423
    %v1904 = vpack.c.b16 %v1432, %v1424
    %v1905 = vpack.c.b16 %v1433, %v1425
    %v1906 = vpack.c.b16 %v1434, %v1426
    %v1907 = vpack.c.b16 %v1435, %v1427
    %v1908 = vpack.c.b16 %v1436, %v1428
    %v1909 = vpack.c.b16 %v1437, %v1429
    %v1910 = vpack.c.b16 %v1446, %v1438
    %v1911 = vpack.c.b16 %v1447, %v1439
    %v1912 = vpack.c.b16 %v1448, %v1440
    %v1913 = vpack.c.b16 %v1449, %v1441
    %v1914 = vpack.c.b16 %v1450, %v1442
    %v1915 = vpack.c.b16 %v1451, %v1443
    %v1916 = vpack.c.b16 %v1452, %v1444
    %v1917 = vpack.c.b16 %v1453, %v1445
    %v1918 = vpack.c.b16 %v1462, %v1454
    %v1919 = vpack.c.b16 %v1463, %v1455
    %v1920 = vpack.c.b16 %v1464, %v1456
    %v1921 = vpack.c.b16 %v1465, %v1457
    %v1922 = vpack.c.b16 %v1466, %v1458
    %v1923 = vpack.c.b16 %v1467, %v1459
    %v1924 = vpack.c.b16 %v1468, %v1460
    %v1925 = vpack.c.b16 %v1469, %v1461
    %v1926 = vpack.c.b16 %v1478, %v1470
    %v1927 = vpack.c.b16 %v1479, %v1471
    %v1928 = vpack.c.b16 %v1480, %v1472
    %v1929 = vpack.c.b16 %v1481, %v1473
    %v1930 = vpack.c.b16 %v1482, %v1474
    %v1931 = vpack.c.b16 %v1483, %v1475
    %v1932 = vpack.c.b16 %v1484, %v1476
    %v1933 = vpack.c.b16 %v1485, %v1477
    %v1934 = vpack.c.b16 %v1494, %v1486
    %v1935 = vpack.c.b16 %v1495, %v1487
    %v1936 = vpack.c.b16 %v1496, %v1488
    %v1937 = vpack.c.b16 %v1497, %v1489
    %v1938 = vpack.c.b16 %v1498, %v1490
    %v1939 = vpack.c.b16 %v1499, %v1491
    %v1940 = vpack.c.b16 %v1500, %v1492
    %v1941 = vpack.c.b16 %v1501, %v1493
    %v1942 = vpack.c.b16 %v1510, %v1502
    %v1943 = vpack.c.b16 %v1511, %v1503
    %v1944 = vpack.c.b16 %v1512, %v1504
    %v1945 = vpack.c.b16 %v1513, %v1505
    %v1946 = vpack.c.b16 %v1514, %v1506
    %v1947 = vpack.c.b16 %v1515, %v1507
    %v1948 = vpack.c.b16 %v1516, %v1508
    %v1949 = vpack.c.b16 %v1517, %v1509
    %v1950 = vpack.c.b16 %v1526, %v1518
    %v1951 = vpack.c.b16 %v1527, %v1519
    %v1952 = vpack.c.b16 %v1528, %v1520
    %v1953 = vpack.c.b16 %v1529, %v1521
    %v1954 = vpack.c.b16 %v1530, %v1522
    %v1955 = vpack.c.b16 %v1531, %v1523
    %v1956 = vpack.c.b16 %v1532, %v1524
    %v1957 = vpack.c.b16 %v1533, %v1525
    %v1958 = vpack.c.b16 %v1542, %v1534
    %v1959 = vpack.c.b16 %v1543, %v1535
    %v1960 = vpack.c.b16 %v1544, %v1536
    %v1961 = vpack.c.b16 %v1545, %v1537
    %v1962 = vpack.c.b16 %v1546, %v1538
    %v1963 = vpack.c.b16 %v1547, %v1539
    %v1964 = vpack.c.b16 %v1548, %v1540
    %v1965 = vpack.c.b16 %v1549, %v1541
    %v1966 = vpack.c.b16 %v1558, %v1550
    %v1967 = vpack.c.b16 %v1559, %v1551
    %v1968 = vpack.c.b16 %v1560, %v1552
    %v1969 = vpack.c.b16 %v1561, %v1553
    %v1970 = vpack.c.b16 %v1562, %v1554
    %v1971 = vpack.c.b16 %v1563, %v1555
    %v1972 = vpack.c.b16 %v1564, %v1556
    %v1973 = vpack.c.b16 %v1565, %v1557
    %v1974 = vpack.c.b16 %v1574, %v1566
    %v1975 = vpack.c.b16 %v1575, %v1567
    %v1976 = vpack.c.b16 %v1576, %v1568
    %v1977 = vpack.c.b16 %v1577, %v1569
    %v1978 = vpack.c.b16 %v1578, %v1570
    %v1979 = vpack.c.b16 %v1579, %v1571
    %v1980 = vpack.c.b16 %v1580, %v1572
    %v1981 = vpack.c.b16 %v1581, %v1573
    %v1982 = vpack.c.b16 %v1590, %v1582
    %v1983 = vpack.c.b16 %v1591, %v1583
    %v1984 = vpack.c.b16 %v1592, %v1584
    %v1985 = vpack.c.b16 %v1593, %v1585
    %v1986 = vpack.c.b16 %v1594, %v1586
    %v1987 = vpack.c.b16 %v1595, %v1587
    %v1988 = vpack.c.b16 %v1596, %v1588
    %v1989 = vpack.c.b16 %v1597, %v1589
    %v1990 = vpack.c.b16 %v1606, %v1598
    %v1991 = vpack.c.b16 %v1607, %v1599
    %v1992 = vpack.c.b16 %v1608, %v1600
    %v1993 = vpack.c.b16 %v1609, %v1601
    %v1994 = vpack.c.b16 %v1610, %v1602
    %v1995 = vpack.c.b16 %v1611, %v1603
    %v1996 = vpack.c.b16 %v1612, %v1604
    %v1997 = vpack.c.b16 %v1613, %v1605
    %v1998 = vpack.c.b16 %v1622, %v1614
    %v1999 = vpack.c.b16 %v1623, %v1615
    %v2000 = vpack.c.b16 %v1624, %v1616
    %v2001 = vpack.c.b16 %v1625, %v1617
    %v2002 = vpack.c.b16 %v1626, %v1618
    %v2003 = vpack.c.b16 %v1627, %v1619
    %v2004 = vpack.c.b16 %v1628, %v1620
    %v2005 = vpack.c.b16 %v1629, %v1621
    %v2006 = vpack.c.b16 %v1638, %v1630
    %v2007 = vpack.c.b16 %v1639, %v1631
    %v2008 = vpack.c.b16 %v1640, %v1632
    %v2009 = vpack.c.b16 %v1641, %v1633
    %v2010 = vpack.c.b16 %v1642, %v1634
    %v2011 = vpack.c.b16 %v1643, %v1635
    %v2012 = vpack.c.b16 %v1644, %v1636
    %v2013 = vpack.c.b16 %v1645, %v1637
    %v2014 = vpack.c.b16 %v1654, %v1646
    %v2015 = vpack.c.b16 %v1655, %v1647
    %v2016 = vpack.c.b16 %v1656, %v1648
    %v2017 = vpack.c.b16 %v1657, %v1649
    %v2018 = vpack.c.b16 %v1658, %v1650
    %v2019 = vpack.c.b16 %v1659, %v1651
    %v2020 = vpack.c.b16 %v1660, %v1652
    %v2021 = vpack.c.b16 %v1661, %v1653
    %v2022 = vpack.c.b16 %v1670, %v1662
    %v2023 = vpack.c.b16 %v1671, %v1663
    %v2024 = vpack.c.b16 %v1672, %v1664
    %v2025 = vpack.c.b16 %v1673, %v1665
    %v2026 = vpack.c.b16 %v1674, %v1666
    %v2027 = vpack.c.b16 %v1675, %v1667
    %v2028 = vpack.c.b16 %v1676, %v1668
    %v2029 = vpack.c.b16 %v1677, %v1669
    %v2030 = vpack.c.b16 %v1686, %v1678
    %v2031 = vpack.c.b16 %v1687, %v1679
    %v2032 = vpack.c.b16 %v1688, %v1680
    %v2033 = vpack.c.b16 %v1689, %v1681
    %v2034 = vpack.c.b16 %v1690, %v1682
    %v2035 = vpack.c.b16 %v1691, %v1683
    %v2036 = vpack.c.b16 %v1692, %v1684
    %v2037 = vpack.c.b16 %v1693, %v1685
    %v2038 = vpack.c.b16 %v1702, %v1694
    %v2039 = vpack.c.b16 %v1703, %v1695
    %v2040 = vpack.c.b16 %v1704, %v1696
    %v2041 = vpack.c.b16 %v1705, %v1697
    %v2042 = vpack.c.b16 %v1706, %v1698
    %v2043 = vpack.c.b16 %v1707, %v1699
    %v2044 = vpack.c.b16 %v1708, %v1700
    %v2045 = vpack.c.b16 %v1709, %v1701
    %v2046 = vpack.c.b16 %v1718, %v1710
    %v2047 = vpack.c.b16 %v1719, %v1711
    %v2048 = vpack.c.b16 %v1720, %v1712
    %v2049 = vpack.c.b16 %v1721, %v1713
    %v2050 = vpack.c.b16 %v1722, %v1714
    %v2051 = vpack.c.b16 %v1723, %v1715
    %v2052 = vpack.c.b16 %v1724, %v1716
    %v2053 = vpack.c.b16 %v1725, %v1717
    %v2054 = vpack.c.b16 %v1734, %v1726
    %v2055 = vpack.c.b16 %v1735, %v1727
    %v2056 = vpack.c.b16 %v1736, %v1728
    %v2057 = vpack.c.b16 %v1737, %v1729
    %v2058 = vpack.c.b16 %v1738, %v1730
    %v2059 = vpack.c.b16 %v1739, %v1731
    %v2060 = vpack.c.b16 %v1740, %v1732
    %v2061 = vpack.c.b16 %v1741, %v1733
    %v2062 = vpack.c.b16 %v1750, %v1742
    %v2063 = vpack.c.b16 %v1751, %v1743
    %v2064 = vpack.c.b16 %v1752, %v1744
    %v2065 = vpack.c.b16 %v1753, %v1745
    %v2066 = vpack.c.b16 %v1754, %v1746
    %v2067 = vpack.c.b16 %v1755, %v1747
    %v2068 = vpack.c.b16 %v1756, %v1748
    %v2069 = vpack.c.b16 %v1757, %v1749
    %v2070 = vpack.c.b16 %v1766, %v1758
    %v2071 = vpack.c.b16 %v1767, %v1759
    %v2072 = vpack.c.b16 %v1768, %v1760
    %v2073 = vpack.c.b16 %v1769, %v1761
    %v2074 = vpack.c.b16 %v1770, %v1762
    %v2075 = vpack.c.b16 %v1771, %v1763
    %v2076 = vpack.c.b16 %v1772, %v1764
    %v2077 = vpack.c.b16 %v1773, %v1765
    %v2078 = vpack.c.b16 %v1782, %v1774
    %v2079 = vpack.c.b16 %v1783, %v1775
    %v2080 = vpack.c.b16 %v1784, %v1776
    %v2081 = vpack.c.b16 %v1785, %v1777
    %v2082 = vpack.c.b16 %v1786, %v1778
    %v2083 = vpack.c.b16 %v1787, %v1779
    %v2084 = vpack.c.b16 %v1788, %v1780
    %v2085 = vpack.c.b16 %v1789, %v1781
    %v2086 = vpack.c.b16 %v1798, %v1790
    %v2087 = vpack.c.b16 %v1799, %v1791
    %v2088 = vpack.c.b16 %v1800, %v1792
    %v2089 = vpack.c.b16 %v1801, %v1793
    %v2090 = vpack.c.b16 %v1802, %v1794
    %v2091 = vpack.c.b16 %v1803, %v1795
    %v2092 = vpack.c.b16 %v1804, %v1796
    %v2093 = vpack.c.b16 %v1805, %v1797
    %v2094 = vpack.c.b16 %v1814, %v1806
    %v2095 = vpack.c.b16 %v1815, %v1807
    %v2096 = vpack.c.b16 %v1816, %v1808
    %v2097 = vpack.c.b16 %v1817, %v1809
    %v2098 = vpack.c.b16 %v1818, %v1810
    %v2099 = vpack.c.b16 %v1819, %v1811
    %v2100 = vpack.c.b16 %v1820, %v1812
    %v2101 = vpack.c.b16 %v1821, %v1813
    %v2102 = vpack.c.b16 %v1830, %v1822
    %v2103 = vpack.c.b16 %v1831, %v1823
    %v2104 = vpack.c.b16 %v1832, %v1824
    %v2105 = vpack.c.b16 %v1833, %v1825
    %v2106 = vpack.c.b16 %v1834, %v1826
    %v2107 = vpack.c.b16 %v1835, %v1827
    %v2108 = vpack.c.b16 %v1836, %v1828
    %v2109 = vpack.c.b16 %v1837, %v1829
    %v2110 = vpack.c.b16 %v1846, %v1838
    %v2111 = vpack.c.b16 %v1847, %v1839
    %v2112 = vpack.c.b16 %v1848, %v1840
    %v2113 = vpack.c.b16 %v1849, %v1841
    %v2114 = vpack.c.b16 %v1850, %v1842
    %v2115 = vpack.c.b16 %v1851, %v1843
    %v2116 = vpack.c.b16 %v1852, %v1844
    %v2117 = vpack.c.b16 %v1853, %v1845
    %v2118 = vpack.c.b16 %v1862, %v1854
    %v2119 = vpack.c.b16 %v1863, %v1855
    %v2120 = vpack.c.b16 %v1864, %v1856
    %v2121 = vpack.c.b16 %v1865, %v1857
    %v2122 = vpack.c.b16 %v1866, %v1858
    %v2123 = vpack.c.b16 %v1867, %v1859
    %v2124 = vpack.c.b16 %v1868, %v1860
    %v2125 = vpack.c.b16 %v1869, %v1861
    %2382 = vmatprep.subr.bf16.mxu0 %v1927
    %2383 = vmatpush1.bf16.msra.mxu0 %v1926
    %2384 = vmatprep.subr.bf16.mxu0 %v1919
    %2385 = vmatpush1.bf16.msra.mxu0 %v1918
    %2386 = vmatprep.subr.bf16.mxu0 %v1911
    %2387 = vmatpush1.bf16.msra.mxu0 %v1910
    %2388 = vmatprep.subr.bf16.mxu0 %v1903
    %2389 = vmatpush1.bf16.msra.mxu0 %v1902
    %2390 = vmatprep.subr.bf16.mxu0 %v1895
    %2391 = vmatpush1.bf16.msra.mxu0 %v1894
    %2392 = vmatprep.subr.bf16.mxu0 %v1887
    %2393 = vmatpush1.bf16.msra.mxu0 %v1886
    %2394 = vmatprep.subr.bf16.mxu0 %v1879
    %2395 = vmatpush1.bf16.msra.mxu0 %v1878
    %2396 = vmatprep.subr.bf16.mxu0 %v1871
    %2397 = vmatpush1.bf16.msra.mxu0 %v1870
    %2398 = vmatprep.subr.bf16.mxu0 %v1991
    %2399 = vmatpush2.bf16.msra.mxu0 %v1990
    %2400 = vmatprep.subr.bf16.mxu0 %v1983
    %2401 = vmatpush2.bf16.msra.mxu0 %v1982
    %2402 = vmatprep.subr.bf16.mxu0 %v1975
    %2403 = vmatpush2.bf16.msra.mxu0 %v1974
    %2404 = vmatprep.subr.bf16.mxu0 %v1967
    %2405 = vmatpush2.bf16.msra.mxu0 %v1966
    %2406 = vmatprep.subr.bf16.mxu0 %v1959
    %2407 = vmatpush2.bf16.msra.mxu0 %v1958
    %2408 = vmatprep.subr.bf16.mxu0 %v1951
    %2409 = vmatpush2.bf16.msra.mxu0 %v1950
    %2410 = vmatprep.subr.bf16.mxu0 %v1943
    %2411 = vmatpush2.bf16.msra.mxu0 %v1942
    %2412 = vmatprep.subr.bf16.mxu0 %v1935
    %2413 = vmatpush2.bf16.msra.mxu0 %v1934
    %2414 = vmatprep.mubr.bf16.mxu0 %v843
    %2415 = vmatmul.mubr.bf16.gmra.mxu0 %v842
    %v2416 = vpop.f32.mrf.mxu0
    %v2417 = vadd.f32 0.0, %v2416
    %v2418 = vpop.f32.mrf.mxu0
    %v2419 = vadd.f32 0.0, %v2418
    %v2420 = vpop.f32.mrf.mxu0
    %v2421 = vpop.f32.mrf.mxu0
    %2422 = vdwg.mxu0
    %2423 = vmatprep.subr.bf16.mxu0 %v2055
    %2424 = vmatpush1.bf16.msra.mxu0 %v2054
    %2425 = vmatprep.subr.bf16.mxu0 %v2047
    %2426 = vmatpush1.bf16.msra.mxu0 %v2046
    %2427 = vmatprep.subr.bf16.mxu0 %v2039
    %2428 = vmatpush1.bf16.msra.mxu0 %v2038
    %2429 = vmatprep.subr.bf16.mxu0 %v2031
    %2430 = vmatpush1.bf16.msra.mxu0 %v2030
    %2431 = vmatprep.subr.bf16.mxu0 %v2023
    %2432 = vmatpush1.bf16.msra.mxu0 %v2022
    %2433 = vmatprep.subr.bf16.mxu0 %v2015
    %2434 = vmatpush1.bf16.msra.mxu0 %v2014
    %2435 = vmatprep.subr.bf16.mxu0 %v2007
    %2436 = vmatpush1.bf16.msra.mxu0 %v2006
    %2437 = vmatprep.subr.bf16.mxu0 %v1999
    %2438 = vmatpush1.bf16.msra.mxu0 %v1998
    %2439 = vmatprep.subr.bf16.mxu0 %v2119
    %2440 = vmatpush2.bf16.msra.mxu0 %v2118
    %2441 = vmatprep.subr.bf16.mxu0 %v2111
    %2442 = vmatpush2.bf16.msra.mxu0 %v2110
    %2443 = vmatprep.subr.bf16.mxu0 %v2103
    %2444 = vmatpush2.bf16.msra.mxu0 %v2102
    %2445 = vmatprep.subr.bf16.mxu0 %v2095
    %2446 = vmatpush2.bf16.msra.mxu0 %v2094
    %2447 = vmatprep.subr.bf16.mxu0 %v2087
    %2448 = vmatpush2.bf16.msra.mxu0 %v2086
    %2449 = vmatprep.subr.bf16.mxu0 %v2079
    %2450 = vmatpush2.bf16.msra.mxu0 %v2078
    %2451 = vmatprep.subr.bf16.mxu0 %v2071
    %2452 = vmatpush2.bf16.msra.mxu0 %v2070
    %2453 = vmatprep.subr.bf16.mxu0 %v2063
    %2454 = vmatpush2.bf16.msra.mxu0 %v2062
    %2455 = vmatprep.mubr.bf16.mxu0 %v845
    %2456 = vmatmul.mubr.bf16.gmra.mxu0 %v844
    %v2457 = vpop.f32.mrf.mxu0
    %v2458 = vadd.f32 %v2417, %v2457
    %v2459 = vpop.f32.mrf.mxu0
    %v2460 = vadd.f32 %v2419, %v2459
    %v2461 = vpop.f32.mrf.mxu0
    %v2462 = vpop.f32.mrf.mxu0
    %2463 = vdwg.mxu0
    %2464 = vmatprep.subr.bf16.mxu0 %v1929
    %2465 = vmatpush1.bf16.msra.mxu0 %v1928
    %2466 = vmatprep.subr.bf16.mxu0 %v1921
    %2467 = vmatpush1.bf16.msra.mxu0 %v1920
    %2468 = vmatprep.subr.bf16.mxu0 %v1913
    %2469 = vmatpush1.bf16.msra.mxu0 %v1912
    %2470 = vmatprep.subr.bf16.mxu0 %v1905
    %2471 = vmatpush1.bf16.msra.mxu0 %v1904
    %2472 = vmatprep.subr.bf16.mxu0 %v1897
    %2473 = vmatpush1.bf16.msra.mxu0 %v1896
    %2474 = vmatprep.subr.bf16.mxu0 %v1889
    %2475 = vmatpush1.bf16.msra.mxu0 %v1888
    %2476 = vmatprep.subr.bf16.mxu0 %v1881
    %2477 = vmatpush1.bf16.msra.mxu0 %v1880
    %2478 = vmatprep.subr.bf16.mxu0 %v1873
    %2479 = vmatpush1.bf16.msra.mxu0 %v1872
    %2480 = vmatprep.subr.bf16.mxu0 %v1993
    %2481 = vmatpush2.bf16.msra.mxu0 %v1992
    %2482 = vmatprep.subr.bf16.mxu0 %v1985
    %2483 = vmatpush2.bf16.msra.mxu0 %v1984
    %2484 = vmatprep.subr.bf16.mxu0 %v1977
    %2485 = vmatpush2.bf16.msra.mxu0 %v1976
    %2486 = vmatprep.subr.bf16.mxu0 %v1969
    %2487 = vmatpush2.bf16.msra.mxu0 %v1968
    %2488 = vmatprep.subr.bf16.mxu0 %v1961
    %2489 = vmatpush2.bf16.msra.mxu0 %v1960
    %2490 = vmatprep.subr.bf16.mxu0 %v1953
    %2491 = vmatpush2.bf16.msra.mxu0 %v1952
    %2492 = vmatprep.subr.bf16.mxu0 %v1945
    %2493 = vmatpush2.bf16.msra.mxu0 %v1944
    %2494 = vmatprep.subr.bf16.mxu0 %v1937
    %2495 = vmatpush2.bf16.msra.mxu0 %v1936
    %2496 = vmatprep.mubr.bf16.mxu0 %v843
    %2497 = vmatmul.mubr.bf16.gmra.mxu0 %v842
    %v2498 = vpop.f32.mrf.mxu0
    %v2499 = vadd.f32 0.0, %v2498
    %v2500 = vpop.f32.mrf.mxu0
    %v2501 = vadd.f32 0.0, %v2500
    %v2502 = vpop.f32.mrf.mxu0
    %v2503 = vpop.f32.mrf.mxu0
    %2504 = vdwg.mxu0
    %2505 = vmatprep.subr.bf16.mxu0 %v2057
    %2506 = vmatpush1.bf16.msra.mxu0 %v2056
    %2507 = vmatprep.subr.bf16.mxu0 %v2049
    %2508 = vmatpush1.bf16.msra.mxu0 %v2048
    %2509 = vmatprep.subr.bf16.mxu0 %v2041
    %2510 = vmatpush1.bf16.msra.mxu0 %v2040
    %2511 = vmatprep.subr.bf16.mxu0 %v2033
    %2512 = vmatpush1.bf16.msra.mxu0 %v2032
    %2513 = vmatprep.subr.bf16.mxu0 %v2025
    %2514 = vmatpush1.bf16.msra.mxu0 %v2024
    %2515 = vmatprep.subr.bf16.mxu0 %v2017
    %2516 = vmatpush1.bf16.msra.mxu0 %v2016
    %2517 = vmatprep.subr.bf16.mxu0 %v2009
    %2518 = vmatpush1.bf16.msra.mxu0 %v2008
    %2519 = vmatprep.subr.bf16.mxu0 %v2001
    %2520 = vmatpush1.bf16.msra.mxu0 %v2000
    %2521 = vmatprep.subr.bf16.mxu0 %v2121
    %2522 = vmatpush2.bf16.msra.mxu0 %v2120
    %2523 = vmatprep.subr.bf16.mxu0 %v2113
    %2524 = vmatpush2.bf16.msra.mxu0 %v2112
    %2525 = vmatprep.subr.bf16.mxu0 %v2105
    %2526 = vmatpush2.bf16.msra.mxu0 %v2104
    %2527 = vmatprep.subr.bf16.mxu0 %v2097
    %2528 = vmatpush2.bf16.msra.mxu0 %v2096
    %2529 = vmatprep.subr.bf16.mxu0 %v2089
    %2530 = vmatpush2.bf16.msra.mxu0 %v2088
    %2531 = vmatprep.subr.bf16.mxu0 %v2081
    %2532 = vmatpush2.bf16.msra.mxu0 %v2080
    %2533 = vmatprep.subr.bf16.mxu0 %v2073
    %2534 = vmatpush2.bf16.msra.mxu0 %v2072
    %2535 = vmatprep.subr.bf16.mxu0 %v2065
    %2536 = vmatpush2.bf16.msra.mxu0 %v2064
    %2537 = vmatprep.mubr.bf16.mxu0 %v845
    %2538 = vmatmul.mubr.bf16.gmra.mxu0 %v844
    %v2539 = vpop.f32.mrf.mxu0
    %v2540 = vadd.f32 %v2499, %v2539
    %v2541 = vpop.f32.mrf.mxu0
    %v2542 = vadd.f32 %v2501, %v2541
    %v2543 = vpop.f32.mrf.mxu0
    %v2544 = vpop.f32.mrf.mxu0
    %2545 = vdwg.mxu0
    %2546 = vmatprep.subr.bf16.mxu0 %v1931
    %2547 = vmatpush1.bf16.msra.mxu0 %v1930
    %2548 = vmatprep.subr.bf16.mxu0 %v1923
    %2549 = vmatpush1.bf16.msra.mxu0 %v1922
    %2550 = vmatprep.subr.bf16.mxu0 %v1915
    %2551 = vmatpush1.bf16.msra.mxu0 %v1914
    %2552 = vmatprep.subr.bf16.mxu0 %v1907
    %2553 = vmatpush1.bf16.msra.mxu0 %v1906
    %2554 = vmatprep.subr.bf16.mxu0 %v1899
    %2555 = vmatpush1.bf16.msra.mxu0 %v1898
    %2556 = vmatprep.subr.bf16.mxu0 %v1891
    %2557 = vmatpush1.bf16.msra.mxu0 %v1890
    %2558 = vmatprep.subr.bf16.mxu0 %v1883
    %2559 = vmatpush1.bf16.msra.mxu0 %v1882
    %2560 = vmatprep.subr.bf16.mxu0 %v1875
    %2561 = vmatpush1.bf16.msra.mxu0 %v1874
    %2562 = vmatprep.subr.bf16.mxu0 %v1995
    %2563 = vmatpush2.bf16.msra.mxu0 %v1994
    %2564 = vmatprep.subr.bf16.mxu0 %v1987
    %2565 = vmatpush2.bf16.msra.mxu0 %v1986
    %2566 = vmatprep.subr.bf16.mxu0 %v1979
    %2567 = vmatpush2.bf16.msra.mxu0 %v1978
    %2568 = vmatprep.subr.bf16.mxu0 %v1971
    %2569 = vmatpush2.bf16.msra.mxu0 %v1970
    %2570 = vmatprep.subr.bf16.mxu0 %v1963
    %2571 = vmatpush2.bf16.msra.mxu0 %v1962
    %2572 = vmatprep.subr.bf16.mxu0 %v1955
    %2573 = vmatpush2.bf16.msra.mxu0 %v1954
    %2574 = vmatprep.subr.bf16.mxu0 %v1947
    %2575 = vmatpush2.bf16.msra.mxu0 %v1946
    %2576 = vmatprep.subr.bf16.mxu0 %v1939
    %2577 = vmatpush2.bf16.msra.mxu0 %v1938
    %2578 = vmatprep.mubr.bf16.mxu0 %v843
    %2579 = vmatmul.mubr.bf16.gmra.mxu0 %v842
    %v2580 = vpop.f32.mrf.mxu0
    %v2581 = vadd.f32 0.0, %v2580
    %v2582 = vpop.f32.mrf.mxu0
    %v2583 = vadd.f32 0.0, %v2582
    %v2584 = vpop.f32.mrf.mxu0
    %v2585 = vpop.f32.mrf.mxu0
    %2586 = vdwg.mxu0
    %2587 = vmatprep.subr.bf16.mxu0 %v2059
    %2588 = vmatpush1.bf16.msra.mxu0 %v2058
    %2589 = vmatprep.subr.bf16.mxu0 %v2051
    %2590 = vmatpush1.bf16.msra.mxu0 %v2050
    %2591 = vmatprep.subr.bf16.mxu0 %v2043
    %2592 = vmatpush1.bf16.msra.mxu0 %v2042
    %2593 = vmatprep.subr.bf16.mxu0 %v2035
    %2594 = vmatpush1.bf16.msra.mxu0 %v2034
    %2595 = vmatprep.subr.bf16.mxu0 %v2027
    %2596 = vmatpush1.bf16.msra.mxu0 %v2026
    %2597 = vmatprep.subr.bf16.mxu0 %v2019
    %2598 = vmatpush1.bf16.msra.mxu0 %v2018
    %2599 = vmatprep.subr.bf16.mxu0 %v2011
    %2600 = vmatpush1.bf16.msra.mxu0 %v2010
    %2601 = vmatprep.subr.bf16.mxu0 %v2003
    %2602 = vmatpush1.bf16.msra.mxu0 %v2002
    %2603 = vmatprep.subr.bf16.mxu0 %v2123
    %2604 = vmatpush2.bf16.msra.mxu0 %v2122
    %2605 = vmatprep.subr.bf16.mxu0 %v2115
    %2606 = vmatpush2.bf16.msra.mxu0 %v2114
    %2607 = vmatprep.subr.bf16.mxu0 %v2107
    %2608 = vmatpush2.bf16.msra.mxu0 %v2106
    %2609 = vmatprep.subr.bf16.mxu0 %v2099
    %2610 = vmatpush2.bf16.msra.mxu0 %v2098
    %2611 = vmatprep.subr.bf16.mxu0 %v2091
    %2612 = vmatpush2.bf16.msra.mxu0 %v2090
    %2613 = vmatprep.subr.bf16.mxu0 %v2083
    %2614 = vmatpush2.bf16.msra.mxu0 %v2082
    %2615 = vmatprep.subr.bf16.mxu0 %v2075
    %2616 = vmatpush2.bf16.msra.mxu0 %v2074
    %2617 = vmatprep.subr.bf16.mxu0 %v2067
    %2618 = vmatpush2.bf16.msra.mxu0 %v2066
    %2619 = vmatprep.mubr.bf16.mxu0 %v845
    %2620 = vmatmul.mubr.bf16.gmra.mxu0 %v844
    %v2621 = vpop.f32.mrf.mxu0
    %v2622 = vadd.f32 %v2581, %v2621
    %v2623 = vpop.f32.mrf.mxu0
    %v2624 = vadd.f32 %v2583, %v2623
    %v2625 = vpop.f32.mrf.mxu0
    %v2626 = vpop.f32.mrf.mxu0
    %2627 = vdwg.mxu0
    %2628 = vmatprep.subr.bf16.mxu0 %v1933
    %2629 = vmatpush1.bf16.msra.mxu0 %v1932
    %2630 = vmatprep.subr.bf16.mxu0 %v1925
    %2631 = vmatpush1.bf16.msra.mxu0 %v1924
    %2632 = vmatprep.subr.bf16.mxu0 %v1917
    %2633 = vmatpush1.bf16.msra.mxu0 %v1916
    %2634 = vmatprep.subr.bf16.mxu0 %v1909
    %2635 = vmatpush1.bf16.msra.mxu0 %v1908
    %2636 = vmatprep.subr.bf16.mxu0 %v1901
    %2637 = vmatpush1.bf16.msra.mxu0 %v1900
    %2638 = vmatprep.subr.bf16.mxu0 %v1893
    %2639 = vmatpush1.bf16.msra.mxu0 %v1892
    %2640 = vmatprep.subr.bf16.mxu0 %v1885
    %2641 = vmatpush1.bf16.msra.mxu0 %v1884
    %2642 = vmatprep.subr.bf16.mxu0 %v1877
    %2643 = vmatpush1.bf16.msra.mxu0 %v1876
    %2644 = vmatprep.subr.bf16.mxu0 %v1997
    %2645 = vmatpush2.bf16.msra.mxu0 %v1996
    %2646 = vmatprep.subr.bf16.mxu0 %v1989
    %2647 = vmatpush2.bf16.msra.mxu0 %v1988
    %2648 = vmatprep.subr.bf16.mxu0 %v1981
    %2649 = vmatpush2.bf16.msra.mxu0 %v1980
    %2650 = vmatprep.subr.bf16.mxu0 %v1973
    %2651 = vmatpush2.bf16.msra.mxu0 %v1972
    %2652 = vmatprep.subr.bf16.mxu0 %v1965
    %2653 = vmatpush2.bf16.msra.mxu0 %v1964
    %2654 = vmatprep.subr.bf16.mxu0 %v1957
    %2655 = vmatpush2.bf16.msra.mxu0 %v1956
    %2656 = vmatprep.subr.bf16.mxu0 %v1949
    %2657 = vmatpush2.bf16.msra.mxu0 %v1948
    %2658 = vmatprep.subr.bf16.mxu0 %v1941
    %2659 = vmatpush2.bf16.msra.mxu0 %v1940
    %2660 = vmatprep.mubr.bf16.mxu0 %v843
    %2661 = vmatmul.mubr.bf16.gmra.mxu0 %v842
    %v2662 = vpop.f32.mrf.mxu0
    %v2663 = vadd.f32 0.0, %v2662
    %v2664 = vpop.f32.mrf.mxu0
    %v2665 = vadd.f32 0.0, %v2664
    %v2666 = vpop.f32.mrf.mxu0
    %v2667 = vpop.f32.mrf.mxu0
    %2668 = vdwg.mxu0
    %2669 = vmatprep.subr.bf16.mxu0 %v2061
    %2670 = vmatpush1.bf16.msra.mxu0 %v2060
    %2671 = vmatprep.subr.bf16.mxu0 %v2053
    %2672 = vmatpush1.bf16.msra.mxu0 %v2052
    %2673 = vmatprep.subr.bf16.mxu0 %v2045
    %2674 = vmatpush1.bf16.msra.mxu0 %v2044
    %2675 = vmatprep.subr.bf16.mxu0 %v2037
    %2676 = vmatpush1.bf16.msra.mxu0 %v2036
    %2677 = vmatprep.subr.bf16.mxu0 %v2029
    %2678 = vmatpush1.bf16.msra.mxu0 %v2028
    %2679 = vmatprep.subr.bf16.mxu0 %v2021
    %2680 = vmatpush1.bf16.msra.mxu0 %v2020
    %2681 = vmatprep.subr.bf16.mxu0 %v2013
    %2682 = vmatpush1.bf16.msra.mxu0 %v2012
    %2683 = vmatprep.subr.bf16.mxu0 %v2005
    %2684 = vmatpush1.bf16.msra.mxu0 %v2004
    %2685 = vmatprep.subr.bf16.mxu0 %v2125
    %2686 = vmatpush2.bf16.msra.mxu0 %v2124
    %2687 = vmatprep.subr.bf16.mxu0 %v2117
    %2688 = vmatpush2.bf16.msra.mxu0 %v2116
    %2689 = vmatprep.subr.bf16.mxu0 %v2109
    %2690 = vmatpush2.bf16.msra.mxu0 %v2108
    %2691 = vmatprep.subr.bf16.mxu0 %v2101
    %2692 = vmatpush2.bf16.msra.mxu0 %v2100
    %2693 = vmatprep.subr.bf16.mxu0 %v2093
    %2694 = vmatpush2.bf16.msra.mxu0 %v2092
    %2695 = vmatprep.subr.bf16.mxu0 %v2085
    %2696 = vmatpush2.bf16.msra.mxu0 %v2084
    %2697 = vmatprep.subr.bf16.mxu0 %v2077
    %2698 = vmatpush2.bf16.msra.mxu0 %v2076
    %2699 = vmatprep.subr.bf16.mxu0 %v2069
    %2700 = vmatpush2.bf16.msra.mxu0 %v2068
    %2701 = vmatprep.mubr.bf16.mxu0 %v845
    %2702 = vmatmul.mubr.bf16.gmra.mxu0 %v844
    %v2703 = vpop.f32.mrf.mxu0
    %v2704 = vadd.f32 %v2663, %v2703
    %v2705 = vpop.f32.mrf.mxu0
    %v2706 = vadd.f32 %v2665, %v2705
    %v2707 = vpop.f32.mrf.mxu0
    %v2708 = vpop.f32.mrf.mxu0
    %2709 = vdwg.mxu0
    %v2710 = vpack.c.bf16 %v2458, %v2458
    %v2711 = vpack.c.bf16 %v2460, %v2460
    %v2712 = vpack.c.bf16 %v2540, %v2540
    %v2713 = vpack.c.bf16 %v2542, %v2542
    %v2714 = vpack.c.bf16 %v2622, %v2622
    %v2715 = vpack.c.bf16 %v2624, %v2624
    %v2716 = vpack.c.bf16 %v2704, %v2704
    %v2717 = vpack.c.bf16 %v2706, %v2706
    %v2718 = vld [vmem:[#allocation11] sm:$0xff]
    %v2720 = vlaneseq
    %v2721 = vshrl.u32 %v2720, 7
    %v2722 = vsub.s32 0, %v2721
    %v2723 = vrot.slane %v2718, %v2722
    %v2724 = vlaneseq
    %v2725 = vshrl.u32 %v2724, 7
    %v2726 = vsub.s32 1, %v2725
    %v2727 = vrot.slane %v2718, %v2726
    %v2728 = vlaneseq
    %v2729 = vshrl.u32 %v2728, 7
    %v2730 = vsub.s32 2, %v2729
    %v2731 = vrot.slane %v2718, %v2730
    %v2732 = vlaneseq
    %v2733 = vshrl.u32 %v2732, 7
    %v2734 = vsub.s32 3, %v2733
    %v2735 = vrot.slane %v2718, %v2734
    %v2736 = vlaneseq
    %v2737 = vshrl.u32 %v2736, 7
    %v2738 = vsub.s32 4, %v2737
    %v2739 = vrot.slane %v2718, %v2738
    %v2740 = vlaneseq
    %v2741 = vshrl.u32 %v2740, 7
    %v2742 = vsub.s32 5, %v2741
    %v2743 = vrot.slane %v2718, %v2742
    %v2744 = vlaneseq
    %v2745 = vshrl.u32 %v2744, 7
    %v2746 = vsub.s32 6, %v2745
    %v2747 = vrot.slane %v2718, %v2746
    %v2748 = vlaneseq
    %v2749 = vshrl.u32 %v2748, 7
    %v2750 = vsub.s32 7, %v2749
    %v2751 = vrot.slane %v2718, %v2750
    %v2760 = vpack.c.bf16 %v2723, %v2723
    %v2761 = vpack.c.bf16 %v2727, %v2727
    %v2762 = vpack.c.bf16 %v2731, %v2731
    %v2763 = vpack.c.bf16 %v2735, %v2735
    %v2764 = vpack.c.bf16 %v2739, %v2739
    %v2765 = vpack.c.bf16 %v2743, %v2743
    %v2766 = vpack.c.bf16 %v2747, %v2747
    %v2767 = vpack.c.bf16 %v2751, %v2751
    %v2769 = vpack.i.b16 %v2760, %v2760
    %v2771 = vlaneseq
    %v2772 = vshrl.u32 %v2771, 7
    %v2773 = vsub.s32 0, %v2772
    %v2774 = vrot.slane %v2769, %v2773
    %v2776 = vpack.i.b16 %v2761, %v2761
    %v2778 = vlaneseq
    %v2779 = vshrl.u32 %v2778, 7
    %v2780 = vsub.s32 0, %v2779
    %v2781 = vrot.slane %v2776, %v2780
    %v2783 = vpack.i.b16 %v2762, %v2762
    %v2785 = vlaneseq
    %v2786 = vshrl.u32 %v2785, 7
    %v2787 = vsub.s32 0, %v2786
    %v2788 = vrot.slane %v2783, %v2787
    %v2790 = vpack.i.b16 %v2763, %v2763
    %v2792 = vlaneseq
    %v2793 = vshrl.u32 %v2792, 7
    %v2794 = vsub.s32 0, %v2793
    %v2795 = vrot.slane %v2790, %v2794
    %v2797 = vpack.i.b16 %v2764, %v2764
    %v2799 = vlaneseq
    %v2800 = vshrl.u32 %v2799, 7
    %v2801 = vsub.s32 0, %v2800
    %v2802 = vrot.slane %v2797, %v2801
    %v2804 = vpack.i.b16 %v2765, %v2765
    %v2806 = vlaneseq
    %v2807 = vshrl.u32 %v2806, 7
    %v2808 = vsub.s32 0, %v2807
    %v2809 = vrot.slane %v2804, %v2808
    %v2811 = vpack.i.b16 %v2766, %v2766
    %v2813 = vlaneseq
    %v2814 = vshrl.u32 %v2813, 7
    %v2815 = vsub.s32 0, %v2814
    %v2816 = vrot.slane %v2811, %v2815
    %v2818 = vpack.i.b16 %v2767, %v2767
    %v2820 = vlaneseq
    %v2821 = vshrl.u32 %v2820, 7
    %v2822 = vsub.s32 0, %v2821
    %v2823 = vrot.slane %v2818, %v2822
    %v2824 = vadd.bf16 %v2710, %v2774
    %v2825 = vadd.bf16 %v2711, %v2781
    %v2826 = vadd.bf16 %v2712, %v2788
    %v2827 = vadd.bf16 %v2713, %v2795
    %v2828 = vadd.bf16 %v2714, %v2802
    %v2829 = vadd.bf16 %v2715, %v2809
    %v2830 = vadd.bf16 %v2716, %v2816
    %v2831 = vadd.bf16 %v2717, %v2823
    %v2832 = vmul.bf16 %v2824, 1045249613
    %v2833 = vmul.bf16 %v2825, 1045249613
    %v2834 = vmul.bf16 %v2826, 1045249613
    %v2835 = vmul.bf16 %v2827, 1045249613
    %v2836 = vmul.bf16 %v2828, 1045249613
    %v2837 = vmul.bf16 %v2829, 1045249613
    %v2838 = vmul.bf16 %v2830, 1045249613
    %v2839 = vmul.bf16 %v2831, 1045249613
    %v2840 = vmax.bf16 %v2824, %v2832
    %v2841 = vmax.bf16 %v2825, %v2833
    %v2842 = vmax.bf16 %v2826, %v2834
    %v2843 = vmax.bf16 %v2827, %v2835
    %v2844 = vmax.bf16 %v2828, %v2836
    %v2845 = vmax.bf16 %v2829, %v2837
    %v2846 = vmax.bf16 %v2830, %v2838
    %v2847 = vmax.bf16 %v2831, %v2839
    %v2848 = vld [vmem:[#allocation13] sm:$0xff]
    %v2849 = vld [vmem:[#allocation13 + $0x8] sm:$0xff]
    %v2850 = vld [vmem:[#allocation13 + $0x10] sm:$0xff]
    %v2851 = vld [vmem:[#allocation13 + $0x18] sm:$0xf]
    %v2852 = vld [vmem:[#allocation13 + $0x1c] sm:$0xff]
    %v2853 = vld [vmem:[#allocation13 + $0x24] sm:$0xff]
    %v2854 = vld [vmem:[#allocation13 + $0x2c] sm:$0xff]
    %v2855 = vld [vmem:[#allocation13 + $0x34] sm:$0xf]
    %v2856 = vld [vmem:[#allocation13 + $0x38] sm:$0xff]
    %v2857 = vld [vmem:[#allocation13 + $0x40] sm:$0xff]
    %v2858 = vld [vmem:[#allocation13 + $0x48] sm:$0xff]
    %v2859 = vld [vmem:[#allocation13 + $0x50] sm:$0xf]
    %v2860 = vld [vmem:[#allocation13 + $0x54] sm:$0xff]
    %v2861 = vld [vmem:[#allocation13 + $0x5c] sm:$0xff]
    %v2862 = vld [vmem:[#allocation13 + $0x64] sm:$0xff]
    %v2863 = vld [vmem:[#allocation13 + $0x6c] sm:$0xf]
    %v2864 = vld [vmem:[#allocation13 + $0x70] sm:$0xff]
    %v2865 = vld [vmem:[#allocation13 + $0x78] sm:$0xff]
    %v2866 = vld [vmem:[#allocation13 + $0x80] sm:$0xff]
    %v2867 = vld [vmem:[#allocation13 + $0x88] sm:$0xf]
    %v2868 = vld [vmem:[#allocation13 + $0x8c] sm:$0xff]
    %v2869 = vld [vmem:[#allocation13 + $0x94] sm:$0xff]
    %v2870 = vld [vmem:[#allocation13 + $0x9c] sm:$0xff]
    %v2871 = vld [vmem:[#allocation13 + $0xa4] sm:$0xf]
    %v2872 = vld [vmem:[#allocation13 + $0xa8] sm:$0xff]
    %v2873 = vld [vmem:[#allocation13 + $0xb0] sm:$0xff]
    %v2874 = vld [vmem:[#allocation13 + $0xb8] sm:$0xff]
    %v2875 = vld [vmem:[#allocation13 + $0xc0] sm:$0xf]
    %v2876 = vld [vmem:[#allocation13 + $0xc4] sm:$0xff]
    %v2877 = vld [vmem:[#allocation13 + $0xcc] sm:$0xff]
    %v2878 = vld [vmem:[#allocation13 + $0xd4] sm:$0xff]
    %v2879 = vld [vmem:[#allocation13 + $0xdc] sm:$0xf]
    %v2880 = vld [vmem:[#allocation13 + $0xe0] sm:$0xff]
    %v2881 = vld [vmem:[#allocation13 + $0xe8] sm:$0xff]
    %v2882 = vld [vmem:[#allocation13 + $0xf0] sm:$0xff]
    %v2883 = vld [vmem:[#allocation13 + $0xf8] sm:$0xf]
    %v2884 = vld [vmem:[#allocation13 + $0xfc] sm:$0xff]
    %v2885 = vld [vmem:[#allocation13 + $0x104] sm:$0xff]
    %v2886 = vld [vmem:[#allocation13 + $0x10c] sm:$0xff]
    %v2887 = vld [vmem:[#allocation13 + $0x114] sm:$0xf]
    %v2888 = vld [vmem:[#allocation13 + $0x118] sm:$0xff]
    %v2889 = vld [vmem:[#allocation13 + $0x120] sm:$0xff]
    %v2890 = vld [vmem:[#allocation13 + $0x128] sm:$0xff]
    %v2891 = vld [vmem:[#allocation13 + $0x130] sm:$0xf]
    %v2892 = vld [vmem:[#allocation13 + $0x134] sm:$0xff]
    %v2893 = vld [vmem:[#allocation13 + $0x13c] sm:$0xff]
    %v2894 = vld [vmem:[#allocation13 + $0x144] sm:$0xff]
    %v2895 = vld [vmem:[#allocation13 + $0x14c] sm:$0xf]
    %v2896 = vld [vmem:[#allocation13 + $0x150] sm:$0xff]
    %v2897 = vld [vmem:[#allocation13 + $0x158] sm:$0xff]
    %v2898 = vld [vmem:[#allocation13 + $0x160] sm:$0xff]
    %v2899 = vld [vmem:[#allocation13 + $0x168] sm:$0xf]
    %v2900 = vld [vmem:[#allocation13 + $0x16c] sm:$0xff]
    %v2901 = vld [vmem:[#allocation13 + $0x174] sm:$0xff]
    %v2902 = vld [vmem:[#allocation13 + $0x17c] sm:$0xff]
    %v2903 = vld [vmem:[#allocation13 + $0x184] sm:$0xf]
    %v2904 = vld [vmem:[#allocation13 + $0x188] sm:$0xff]
    %v2905 = vld [vmem:[#allocation13 + $0x190] sm:$0xff]
    %v2906 = vld [vmem:[#allocation13 + $0x198] sm:$0xff]
    %v2907 = vld [vmem:[#allocation13 + $0x1a0] sm:$0xf]
    %v2908 = vld [vmem:[#allocation13 + $0x1a4] sm:$0xff]
    %v2909 = vld [vmem:[#allocation13 + $0x1ac] sm:$0xff]
    %v2910 = vld [vmem:[#allocation13 + $0x1b4] sm:$0xff]
    %v2911 = vld [vmem:[#allocation13 + $0x1bc] sm:$0xf]
    %v2912 = vld [vmem:[#allocation13 + $0x1c0] sm:$0xff]
    %v2913 = vld [vmem:[#allocation13 + $0x1c8] sm:$0xff]
    %v2914 = vld [vmem:[#allocation13 + $0x1d0] sm:$0xff]
    %v2915 = vld [vmem:[#allocation13 + $0x1d8] sm:$0xf]
    %v2916 = vld [vmem:[#allocation13 + $0x1dc] sm:$0xff]
    %v2917 = vld [vmem:[#allocation13 + $0x1e4] sm:$0xff]
    %v2918 = vld [vmem:[#allocation13 + $0x1ec] sm:$0xff]
    %v2919 = vld [vmem:[#allocation13 + $0x1f4] sm:$0xf]
    %v2920 = vld [vmem:[#allocation13 + $0x1f8] sm:$0xff]
    %v2921 = vld [vmem:[#allocation13 + $0x200] sm:$0xff]
    %v2922 = vld [vmem:[#allocation13 + $0x208] sm:$0xff]
    %v2923 = vld [vmem:[#allocation13 + $0x210] sm:$0xf]
    %v2924 = vld [vmem:[#allocation13 + $0x214] sm:$0xff]
    %v2925 = vld [vmem:[#allocation13 + $0x21c] sm:$0xff]
    %v2926 = vld [vmem:[#allocation13 + $0x224] sm:$0xff]
    %v2927 = vld [vmem:[#allocation13 + $0x22c] sm:$0xf]
    %v2928 = vld [vmem:[#allocation13 + $0x230] sm:$0xff]
    %v2929 = vld [vmem:[#allocation13 + $0x238] sm:$0xff]
    %v2930 = vld [vmem:[#allocation13 + $0x240] sm:$0xff]
    %v2931 = vld [vmem:[#allocation13 + $0x248] sm:$0xf]
    %v2932 = vld [vmem:[#allocation13 + $0x24c] sm:$0xff]
    %v2933 = vld [vmem:[#allocation13 + $0x254] sm:$0xff]
    %v2934 = vld [vmem:[#allocation13 + $0x25c] sm:$0xff]
    %v2935 = vld [vmem:[#allocation13 + $0x264] sm:$0xf]
    %v2936 = vld [vmem:[#allocation13 + $0x268] sm:$0xff]
    %v2937 = vld [vmem:[#allocation13 + $0x270] sm:$0xff]
    %v2938 = vld [vmem:[#allocation13 + $0x278] sm:$0xff]
    %v2939 = vld [vmem:[#allocation13 + $0x280] sm:$0xf]
    %v2940 = vld [vmem:[#allocation13 + $0x284] sm:$0xff]
    %v2941 = vld [vmem:[#allocation13 + $0x28c] sm:$0xff]
    %v2942 = vld [vmem:[#allocation13 + $0x294] sm:$0xff]
    %v2943 = vld [vmem:[#allocation13 + $0x29c] sm:$0xf]
    %v2944 = vld [vmem:[#allocation13 + $0x2a0] sm:$0xff]
    %v2945 = vld [vmem:[#allocation13 + $0x2a8] sm:$0xff]
    %v2946 = vld [vmem:[#allocation13 + $0x2b0] sm:$0xff]
    %v2947 = vld [vmem:[#allocation13 + $0x2b8] sm:$0xf]
    %v2948 = vld [vmem:[#allocation13 + $0x2bc] sm:$0xff]
    %v2949 = vld [vmem:[#allocation13 + $0x2c4] sm:$0xff]
    %v2950 = vld [vmem:[#allocation13 + $0x2cc] sm:$0xff]
    %v2951 = vld [vmem:[#allocation13 + $0x2d4] sm:$0xf]
    %v2952 = vld [vmem:[#allocation13 + $0x2d8] sm:$0xff]
    %v2953 = vld [vmem:[#allocation13 + $0x2e0] sm:$0xff]
    %v2954 = vld [vmem:[#allocation13 + $0x2e8] sm:$0xff]
    %v2955 = vld [vmem:[#allocation13 + $0x2f0] sm:$0xf]
    %v2956 = vld [vmem:[#allocation13 + $0x2f4] sm:$0xff]
    %v2957 = vld [vmem:[#allocation13 + $0x2fc] sm:$0xff]
    %v2958 = vld [vmem:[#allocation13 + $0x304] sm:$0xff]
    %v2959 = vld [vmem:[#allocation13 + $0x30c] sm:$0xf]
    %v2960 = vld [vmem:[#allocation13 + $0x310] sm:$0xff]
    %v2961 = vld [vmem:[#allocation13 + $0x318] sm:$0xff]
    %v2962 = vld [vmem:[#allocation13 + $0x320] sm:$0xff]
    %v2963 = vld [vmem:[#allocation13 + $0x328] sm:$0xf]
    %v2964 = vld [vmem:[#allocation13 + $0x32c] sm:$0xff]
    %v2965 = vld [vmem:[#allocation13 + $0x334] sm:$0xff]
    %v2966 = vld [vmem:[#allocation13 + $0x33c] sm:$0xff]
    %v2967 = vld [vmem:[#allocation13 + $0x344] sm:$0xf]
    %v2968 = vld [vmem:[#allocation13 + $0x348] sm:$0xff]
    %v2969 = vld [vmem:[#allocation13 + $0x350] sm:$0xff]
    %v2970 = vld [vmem:[#allocation13 + $0x358] sm:$0xff]
    %v2971 = vld [vmem:[#allocation13 + $0x360] sm:$0xf]
    %v2972 = vld [vmem:[#allocation13 + $0x364] sm:$0xff]
    %v2973 = vld [vmem:[#allocation13 + $0x36c] sm:$0xff]
    %v2974 = vld [vmem:[#allocation13 + $0x374] sm:$0xff]
    %v2975 = vld [vmem:[#allocation13 + $0x37c] sm:$0xf]
    %v2976 = vld [vmem:[#allocation13 + $0x380] sm:$0xff]
    %v2977 = vld [vmem:[#allocation13 + $0x388] sm:$0xff]
    %v2978 = vld [vmem:[#allocation13 + $0x390] sm:$0xff]
    %v2979 = vld [vmem:[#allocation13 + $0x398] sm:$0xf]
    %v2980 = vld [vmem:[#allocation13 + $0x39c] sm:$0xff]
    %v2981 = vld [vmem:[#allocation13 + $0x3a4] sm:$0xff]
    %v2982 = vld [vmem:[#allocation13 + $0x3ac] sm:$0xff]
    %v2983 = vld [vmem:[#allocation13 + $0x3b4] sm:$0xf]
    %v2984 = vld [vmem:[#allocation13 + $0x3b8] sm:$0xff]
    %v2985 = vld [vmem:[#allocation13 + $0x3c0] sm:$0xff]
    %v2986 = vld [vmem:[#allocation13 + $0x3c8] sm:$0xff]
    %v2987 = vld [vmem:[#allocation13 + $0x3d0] sm:$0xf]
    %v2988 = vld [vmem:[#allocation13 + $0x3d4] sm:$0xff]
    %v2989 = vld [vmem:[#allocation13 + $0x3dc] sm:$0xff]
    %v2990 = vld [vmem:[#allocation13 + $0x3e4] sm:$0xff]
    %v2991 = vld [vmem:[#allocation13 + $0x3ec] sm:$0xf]
    %v2992 = vld [vmem:[#allocation13 + $0x3f0] sm:$0xff]
    %v2993 = vld [vmem:[#allocation13 + $0x3f8] sm:$0xff]
    %v2994 = vld [vmem:[#allocation13 + $0x400] sm:$0xff]
    %v2995 = vld [vmem:[#allocation13 + $0x408] sm:$0xf]
    %v2996 = vld [vmem:[#allocation13 + $0x40c] sm:$0xff]
    %v2997 = vld [vmem:[#allocation13 + $0x414] sm:$0xff]
    %v2998 = vld [vmem:[#allocation13 + $0x41c] sm:$0xff]
    %v2999 = vld [vmem:[#allocation13 + $0x424] sm:$0xf]
    %v3000 = vld [vmem:[#allocation13 + $0x428] sm:$0xff]
    %v3001 = vld [vmem:[#allocation13 + $0x430] sm:$0xff]
    %v3002 = vld [vmem:[#allocation13 + $0x438] sm:$0xff]
    %v3003 = vld [vmem:[#allocation13 + $0x440] sm:$0xf]
    %v3004 = vld [vmem:[#allocation13 + $0x444] sm:$0xff]
    %v3005 = vld [vmem:[#allocation13 + $0x44c] sm:$0xff]
    %v3006 = vld [vmem:[#allocation13 + $0x454] sm:$0xff]
    %v3007 = vld [vmem:[#allocation13 + $0x45c] sm:$0xf]
    %v3008 = vld [vmem:[#allocation13 + $0x460] sm:$0xff]
    %v3009 = vld [vmem:[#allocation13 + $0x468] sm:$0xff]
    %v3010 = vld [vmem:[#allocation13 + $0x470] sm:$0xff]
    %v3011 = vld [vmem:[#allocation13 + $0x478] sm:$0xf]
    %v3012 = vld [vmem:[#allocation13 + $0x47c] sm:$0xff]
    %v3013 = vld [vmem:[#allocation13 + $0x484] sm:$0xff]
    %v3014 = vld [vmem:[#allocation13 + $0x48c] sm:$0xff]
    %v3015 = vld [vmem:[#allocation13 + $0x494] sm:$0xf]
    %v3016 = vld [vmem:[#allocation13 + $0x498] sm:$0xff]
    %v3017 = vld [vmem:[#allocation13 + $0x4a0] sm:$0xff]
    %v3018 = vld [vmem:[#allocation13 + $0x4a8] sm:$0xff]
    %v3019 = vld [vmem:[#allocation13 + $0x4b0] sm:$0xf]
    %v3020 = vld [vmem:[#allocation13 + $0x4b4] sm:$0xff]
    %v3021 = vld [vmem:[#allocation13 + $0x4bc] sm:$0xff]
    %v3022 = vld [vmem:[#allocation13 + $0x4c4] sm:$0xff]
    %v3023 = vld [vmem:[#allocation13 + $0x4cc] sm:$0xf]
    %v3024 = vld [vmem:[#allocation13 + $0x4d0] sm:$0xff]
    %v3025 = vld [vmem:[#allocation13 + $0x4d8] sm:$0xff]
    %v3026 = vld [vmem:[#allocation13 + $0x4e0] sm:$0xff]
    %v3027 = vld [vmem:[#allocation13 + $0x4e8] sm:$0xf]
    %v3028 = vld [vmem:[#allocation13 + $0x4ec] sm:$0xff]
    %v3029 = vld [vmem:[#allocation13 + $0x4f4] sm:$0xff]
    %v3030 = vld [vmem:[#allocation13 + $0x4fc] sm:$0xff]
    %v3031 = vld [vmem:[#allocation13 + $0x504] sm:$0xf]
    %v3032 = vld [vmem:[#allocation13 + $0x508] sm:$0xff]
    %v3033 = vld [vmem:[#allocation13 + $0x510] sm:$0xff]
    %v3034 = vld [vmem:[#allocation13 + $0x518] sm:$0xff]
    %v3035 = vld [vmem:[#allocation13 + $0x520] sm:$0xf]
    %v3036 = vld [vmem:[#allocation13 + $0x524] sm:$0xff]
    %v3037 = vld [vmem:[#allocation13 + $0x52c] sm:$0xff]
    %v3038 = vld [vmem:[#allocation13 + $0x534] sm:$0xff]
    %v3039 = vld [vmem:[#allocation13 + $0x53c] sm:$0xf]
    %v3040 = vld [vmem:[#allocation13 + $0x540] sm:$0xff]
    %v3041 = vld [vmem:[#allocation13 + $0x548] sm:$0xff]
    %v3042 = vld [vmem:[#allocation13 + $0x550] sm:$0xff]
    %v3043 = vld [vmem:[#allocation13 + $0x558] sm:$0xf]
    %v3044 = vld [vmem:[#allocation13 + $0x55c] sm:$0xff]
    %v3045 = vld [vmem:[#allocation13 + $0x564] sm:$0xff]
    %v3046 = vld [vmem:[#allocation13 + $0x56c] sm:$0xff]
    %v3047 = vld [vmem:[#allocation13 + $0x574] sm:$0xf]
    %v3048 = vld [vmem:[#allocation13 + $0x578] sm:$0xff]
    %v3049 = vld [vmem:[#allocation13 + $0x580] sm:$0xff]
    %v3050 = vld [vmem:[#allocation13 + $0x588] sm:$0xff]
    %v3051 = vld [vmem:[#allocation13 + $0x590] sm:$0xf]
    %v3052 = vld [vmem:[#allocation13 + $0x594] sm:$0xff]
    %v3053 = vld [vmem:[#allocation13 + $0x59c] sm:$0xff]
    %v3054 = vld [vmem:[#allocation13 + $0x5a4] sm:$0xff]
    %v3055 = vld [vmem:[#allocation13 + $0x5ac] sm:$0xf]
    %v3056 = vld [vmem:[#allocation13 + $0x5b0] sm:$0xff]
    %v3057 = vld [vmem:[#allocation13 + $0x5b8] sm:$0xff]
    %v3058 = vld [vmem:[#allocation13 + $0x5c0] sm:$0xff]
    %v3059 = vld [vmem:[#allocation13 + $0x5c8] sm:$0xf]
    %v3060 = vld [vmem:[#allocation13 + $0x5cc] sm:$0xff]
    %v3061 = vld [vmem:[#allocation13 + $0x5d4] sm:$0xff]
    %v3062 = vld [vmem:[#allocation13 + $0x5dc] sm:$0xff]
    %v3063 = vld [vmem:[#allocation13 + $0x5e4] sm:$0xf]
    %v3064 = vld [vmem:[#allocation13 + $0x5e8] sm:$0xff]
    %v3065 = vld [vmem:[#allocation13 + $0x5f0] sm:$0xff]
    %v3066 = vld [vmem:[#allocation13 + $0x5f8] sm:$0xff]
    %v3067 = vld [vmem:[#allocation13 + $0x600] sm:$0xf]
    %v3068 = vld [vmem:[#allocation13 + $0x604] sm:$0xff]
    %v3069 = vld [vmem:[#allocation13 + $0x60c] sm:$0xff]
    %v3070 = vld [vmem:[#allocation13 + $0x614] sm:$0xff]
    %v3071 = vld [vmem:[#allocation13 + $0x61c] sm:$0xf]
    %v3072 = vld [vmem:[#allocation13 + $0x620] sm:$0xff]
    %v3073 = vld [vmem:[#allocation13 + $0x628] sm:$0xff]
    %v3074 = vld [vmem:[#allocation13 + $0x630] sm:$0xff]
    %v3075 = vld [vmem:[#allocation13 + $0x638] sm:$0xf]
    %v3076 = vld [vmem:[#allocation13 + $0x63c] sm:$0xff]
    %v3077 = vld [vmem:[#allocation13 + $0x644] sm:$0xff]
    %v3078 = vld [vmem:[#allocation13 + $0x64c] sm:$0xff]
    %v3079 = vld [vmem:[#allocation13 + $0x654] sm:$0xf]
    %v3080 = vld [vmem:[#allocation13 + $0x658] sm:$0xff]
    %v3081 = vld [vmem:[#allocation13 + $0x660] sm:$0xff]
    %v3082 = vld [vmem:[#allocation13 + $0x668] sm:$0xff]
    %v3083 = vld [vmem:[#allocation13 + $0x670] sm:$0xf]
    %v3084 = vld [vmem:[#allocation13 + $0x674] sm:$0xff]
    %v3085 = vld [vmem:[#allocation13 + $0x67c] sm:$0xff]
    %v3086 = vld [vmem:[#allocation13 + $0x684] sm:$0xff]
    %v3087 = vld [vmem:[#allocation13 + $0x68c] sm:$0xf]
    %v3088 = vld [vmem:[#allocation13 + $0x690] sm:$0xff]
    %v3089 = vld [vmem:[#allocation13 + $0x698] sm:$0xff]
    %v3090 = vld [vmem:[#allocation13 + $0x6a0] sm:$0xff]
    %v3091 = vld [vmem:[#allocation13 + $0x6a8] sm:$0xf]
    %v3092 = vld [vmem:[#allocation13 + $0x6ac] sm:$0xff]
    %v3093 = vld [vmem:[#allocation13 + $0x6b4] sm:$0xff]
    %v3094 = vld [vmem:[#allocation13 + $0x6bc] sm:$0xff]
    %v3095 = vld [vmem:[#allocation13 + $0x6c4] sm:$0xf]
    %v3096 = vld [vmem:[#allocation13 + $0x6c8] sm:$0xff]
    %v3097 = vld [vmem:[#allocation13 + $0x6d0] sm:$0xff]
    %v3098 = vld [vmem:[#allocation13 + $0x6d8] sm:$0xff]
    %v3099 = vld [vmem:[#allocation13 + $0x6e0] sm:$0xf]
    %v3100 = vld [vmem:[#allocation13 + $0x6e4] sm:$0xff]
    %v3101 = vld [vmem:[#allocation13 + $0x6ec] sm:$0xff]
    %v3102 = vld [vmem:[#allocation13 + $0x6f4] sm:$0xff]
    %v3103 = vld [vmem:[#allocation13 + $0x6fc] sm:$0xf]
    %v3104 = vld [vmem:[#allocation13 + $0x700] sm:$0xff]
    %v3105 = vld [vmem:[#allocation13 + $0x708] sm:$0xff]
    %v3106 = vld [vmem:[#allocation13 + $0x710] sm:$0xff]
    %v3107 = vld [vmem:[#allocation13 + $0x718] sm:$0xf]
    %v3108 = vld [vmem:[#allocation13 + $0x71c] sm:$0xff]
    %v3109 = vld [vmem:[#allocation13 + $0x724] sm:$0xff]
    %v3110 = vld [vmem:[#allocation13 + $0x72c] sm:$0xff]
    %v3111 = vld [vmem:[#allocation13 + $0x734] sm:$0xf]
    %v3112 = vld [vmem:[#allocation13 + $0x738] sm:$0xff]
    %v3113 = vld [vmem:[#allocation13 + $0x740] sm:$0xff]
    %v3114 = vld [vmem:[#allocation13 + $0x748] sm:$0xff]
    %v3115 = vld [vmem:[#allocation13 + $0x750] sm:$0xf]
    %v3116 = vld [vmem:[#allocation13 + $0x754] sm:$0xff]
    %v3117 = vld [vmem:[#allocation13 + $0x75c] sm:$0xff]
    %v3118 = vld [vmem:[#allocation13 + $0x764] sm:$0xff]
    %v3119 = vld [vmem:[#allocation13 + $0x76c] sm:$0xf]
    %v3120 = vld [vmem:[#allocation13 + $0x770] sm:$0xff]
    %v3121 = vld [vmem:[#allocation13 + $0x778] sm:$0xff]
    %v3122 = vld [vmem:[#allocation13 + $0x780] sm:$0xff]
    %v3123 = vld [vmem:[#allocation13 + $0x788] sm:$0xf]
    %v3124 = vld [vmem:[#allocation13 + $0x78c] sm:$0xff]
    %v3125 = vld [vmem:[#allocation13 + $0x794] sm:$0xff]
    %v3126 = vld [vmem:[#allocation13 + $0x79c] sm:$0xff]
    %v3127 = vld [vmem:[#allocation13 + $0x7a4] sm:$0xf]
    %v3128 = vld [vmem:[#allocation13 + $0x7a8] sm:$0xff]
    %v3129 = vld [vmem:[#allocation13 + $0x7b0] sm:$0xff]
    %v3130 = vld [vmem:[#allocation13 + $0x7b8] sm:$0xff]
    %v3131 = vld [vmem:[#allocation13 + $0x7c0] sm:$0xf]
    %v3132 = vld [vmem:[#allocation13 + $0x7c4] sm:$0xff]
    %v3133 = vld [vmem:[#allocation13 + $0x7cc] sm:$0xff]
    %v3134 = vld [vmem:[#allocation13 + $0x7d4] sm:$0xff]
    %v3135 = vld [vmem:[#allocation13 + $0x7dc] sm:$0xf]
    %v3136 = vld [vmem:[#allocation13 + $0x7e0] sm:$0xff]
    %v3137 = vld [vmem:[#allocation13 + $0x7e8] sm:$0xff]
    %v3138 = vld [vmem:[#allocation13 + $0x7f0] sm:$0xff]
    %v3139 = vld [vmem:[#allocation13 + $0x7f8] sm:$0xf]
    %v3140 = vld [vmem:[#allocation13 + $0x7fc] sm:$0xff]
    %v3141 = vld [vmem:[#allocation13 + $0x804] sm:$0xff]
    %v3142 = vld [vmem:[#allocation13 + $0x80c] sm:$0xff]
    %v3143 = vld [vmem:[#allocation13 + $0x814] sm:$0xf]
    %v3144 = vld [vmem:[#allocation13 + $0x818] sm:$0xff]
    %v3145 = vld [vmem:[#allocation13 + $0x820] sm:$0xff]
    %v3146 = vld [vmem:[#allocation13 + $0x828] sm:$0xff]
    %v3147 = vld [vmem:[#allocation13 + $0x830] sm:$0xf]
    %v3148 = vld [vmem:[#allocation13 + $0x834] sm:$0xff]
    %v3149 = vld [vmem:[#allocation13 + $0x83c] sm:$0xff]
    %v3150 = vld [vmem:[#allocation13 + $0x844] sm:$0xff]
    %v3151 = vld [vmem:[#allocation13 + $0x84c] sm:$0xf]
    %v3152 = vld [vmem:[#allocation13 + $0x850] sm:$0xff]
    %v3153 = vld [vmem:[#allocation13 + $0x858] sm:$0xff]
    %v3154 = vld [vmem:[#allocation13 + $0x860] sm:$0xff]
    %v3155 = vld [vmem:[#allocation13 + $0x868] sm:$0xf]
    %v3156 = vld [vmem:[#allocation13 + $0x86c] sm:$0xff]
    %v3157 = vld [vmem:[#allocation13 + $0x874] sm:$0xff]
    %v3158 = vld [vmem:[#allocation13 + $0x87c] sm:$0xff]
    %v3159 = vld [vmem:[#allocation13 + $0x884] sm:$0xf]
    %v3160 = vld [vmem:[#allocation13 + $0x888] sm:$0xff]
    %v3161 = vld [vmem:[#allocation13 + $0x890] sm:$0xff]
    %v3162 = vld [vmem:[#allocation13 + $0x898] sm:$0xff]
    %v3163 = vld [vmem:[#allocation13 + $0x8a0] sm:$0xf]
    %v3164 = vld [vmem:[#allocation13 + $0x8a4] sm:$0xff]
    %v3165 = vld [vmem:[#allocation13 + $0x8ac] sm:$0xff]
    %v3166 = vld [vmem:[#allocation13 + $0x8b4] sm:$0xff]
    %v3167 = vld [vmem:[#allocation13 + $0x8bc] sm:$0xf]
    %v3168 = vld [vmem:[#allocation13 + $0x8c0] sm:$0xff]
    %v3169 = vld [vmem:[#allocation13 + $0x8c8] sm:$0xff]
    %v3170 = vld [vmem:[#allocation13 + $0x8d0] sm:$0xff]
    %v3171 = vld [vmem:[#allocation13 + $0x8d8] sm:$0xf]
    %v3172 = vld [vmem:[#allocation13 + $0x8dc] sm:$0xff]
    %v3173 = vld [vmem:[#allocation13 + $0x8e4] sm:$0xff]
    %v3174 = vld [vmem:[#allocation13 + $0x8ec] sm:$0xff]
    %v3175 = vld [vmem:[#allocation13 + $0x8f4] sm:$0xf]
    %v3176 = vld [vmem:[#allocation13 + $0x8f8] sm:$0xff]
    %v3177 = vld [vmem:[#allocation13 + $0x900] sm:$0xff]
    %v3178 = vld [vmem:[#allocation13 + $0x908] sm:$0xff]
    %v3179 = vld [vmem:[#allocation13 + $0x910] sm:$0xf]
    %v3180 = vld [vmem:[#allocation13 + $0x914] sm:$0xff]
    %v3181 = vld [vmem:[#allocation13 + $0x91c] sm:$0xff]
    %v3182 = vld [vmem:[#allocation13 + $0x924] sm:$0xff]
    %v3183 = vld [vmem:[#allocation13 + $0x92c] sm:$0xf]
    %v3184 = vld [vmem:[#allocation13 + $0x930] sm:$0xff]
    %v3185 = vld [vmem:[#allocation13 + $0x938] sm:$0xff]
    %v3186 = vld [vmem:[#allocation13 + $0x940] sm:$0xff]
    %v3187 = vld [vmem:[#allocation13 + $0x948] sm:$0xf]
    %v3188 = vld [vmem:[#allocation13 + $0x94c] sm:$0xff]
    %v3189 = vld [vmem:[#allocation13 + $0x954] sm:$0xff]
    %v3190 = vld [vmem:[#allocation13 + $0x95c] sm:$0xff]
    %v3191 = vld [vmem:[#allocation13 + $0x964] sm:$0xf]
    %v3192 = vld [vmem:[#allocation13 + $0x968] sm:$0xff]
    %v3193 = vld [vmem:[#allocation13 + $0x970] sm:$0xff]
    %v3194 = vld [vmem:[#allocation13 + $0x978] sm:$0xff]
    %v3195 = vld [vmem:[#allocation13 + $0x980] sm:$0xf]
    %v3196 = vld [vmem:[#allocation13 + $0x984] sm:$0xff]
    %v3197 = vld [vmem:[#allocation13 + $0x98c] sm:$0xff]
    %v3198 = vld [vmem:[#allocation13 + $0x994] sm:$0xff]
    %v3199 = vld [vmem:[#allocation13 + $0x99c] sm:$0xf]
    %v3200 = vld [vmem:[#allocation13 + $0x9a0] sm:$0xff]
    %v3201 = vld [vmem:[#allocation13 + $0x9a8] sm:$0xff]
    %v3202 = vld [vmem:[#allocation13 + $0x9b0] sm:$0xff]
    %v3203 = vld [vmem:[#allocation13 + $0x9b8] sm:$0xf]
    %v3204 = vld [vmem:[#allocation13 + $0x9bc] sm:$0xff]
    %v3205 = vld [vmem:[#allocation13 + $0x9c4] sm:$0xff]
    %v3206 = vld [vmem:[#allocation13 + $0x9cc] sm:$0xff]
    %v3207 = vld [vmem:[#allocation13 + $0x9d4] sm:$0xf]
    %v3208 = vld [vmem:[#allocation13 + $0x9d8] sm:$0xff]
    %v3209 = vld [vmem:[#allocation13 + $0x9e0] sm:$0xff]
    %v3210 = vld [vmem:[#allocation13 + $0x9e8] sm:$0xff]
    %v3211 = vld [vmem:[#allocation13 + $0x9f0] sm:$0xf]
    %v3212 = vld [vmem:[#allocation13 + $0x9f4] sm:$0xff]
    %v3213 = vld [vmem:[#allocation13 + $0x9fc] sm:$0xff]
    %v3214 = vld [vmem:[#allocation13 + $0xa04] sm:$0xff]
    %v3215 = vld [vmem:[#allocation13 + $0xa0c] sm:$0xf]
    %v3216 = vld [vmem:[#allocation13 + $0xa10] sm:$0xff]
    %v3217 = vld [vmem:[#allocation13 + $0xa18] sm:$0xff]
    %v3218 = vld [vmem:[#allocation13 + $0xa20] sm:$0xff]
    %v3219 = vld [vmem:[#allocation13 + $0xa28] sm:$0xf]
    %v3220 = vld [vmem:[#allocation13 + $0xa2c] sm:$0xff]
    %v3221 = vld [vmem:[#allocation13 + $0xa34] sm:$0xff]
    %v3222 = vld [vmem:[#allocation13 + $0xa3c] sm:$0xff]
    %v3223 = vld [vmem:[#allocation13 + $0xa44] sm:$0xf]
    %v3224 = vld [vmem:[#allocation13 + $0xa48] sm:$0xff]
    %v3225 = vld [vmem:[#allocation13 + $0xa50] sm:$0xff]
    %v3226 = vld [vmem:[#allocation13 + $0xa58] sm:$0xff]
    %v3227 = vld [vmem:[#allocation13 + $0xa60] sm:$0xf]
    %v3228 = vld [vmem:[#allocation13 + $0xa64] sm:$0xff]
    %v3229 = vld [vmem:[#allocation13 + $0xa6c] sm:$0xff]
    %v3230 = vld [vmem:[#allocation13 + $0xa74] sm:$0xff]
    %v3231 = vld [vmem:[#allocation13 + $0xa7c] sm:$0xf]
    %v3232 = vld [vmem:[#allocation13 + $0xa80] sm:$0xff]
    %v3233 = vld [vmem:[#allocation13 + $0xa88] sm:$0xff]
    %v3234 = vld [vmem:[#allocation13 + $0xa90] sm:$0xff]
    %v3235 = vld [vmem:[#allocation13 + $0xa98] sm:$0xf]
    %v3236 = vld [vmem:[#allocation13 + $0xa9c] sm:$0xff]
    %v3237 = vld [vmem:[#allocation13 + $0xaa4] sm:$0xff]
    %v3238 = vld [vmem:[#allocation13 + $0xaac] sm:$0xff]
    %v3239 = vld [vmem:[#allocation13 + $0xab4] sm:$0xf]
    %v3240 = vld [vmem:[#allocation13 + $0xab8] sm:$0xff]
    %v3241 = vld [vmem:[#allocation13 + $0xac0] sm:$0xff]
    %v3242 = vld [vmem:[#allocation13 + $0xac8] sm:$0xff]
    %v3243 = vld [vmem:[#allocation13 + $0xad0] sm:$0xf]
    %v3244 = vld [vmem:[#allocation13 + $0xad4] sm:$0xff]
    %v3245 = vld [vmem:[#allocation13 + $0xadc] sm:$0xff]
    %v3246 = vld [vmem:[#allocation13 + $0xae4] sm:$0xff]
    %v3247 = vld [vmem:[#allocation13 + $0xaec] sm:$0xf]
    %v3248 = vld [vmem:[#allocation13 + $0xaf0] sm:$0xff]
    %v3249 = vld [vmem:[#allocation13 + $0xaf8] sm:$0xff]
    %v3250 = vld [vmem:[#allocation13 + $0xb00] sm:$0xff]
    %v3251 = vld [vmem:[#allocation13 + $0xb08] sm:$0xf]
    %v3252 = vld [vmem:[#allocation13 + $0xb0c] sm:$0xff]
    %v3253 = vld [vmem:[#allocation13 + $0xb14] sm:$0xff]
    %v3254 = vld [vmem:[#allocation13 + $0xb1c] sm:$0xff]
    %v3255 = vld [vmem:[#allocation13 + $0xb24] sm:$0xf]
    %v3256 = vld [vmem:[#allocation13 + $0xb28] sm:$0xff]
    %v3257 = vld [vmem:[#allocation13 + $0xb30] sm:$0xff]
    %v3258 = vld [vmem:[#allocation13 + $0xb38] sm:$0xff]
    %v3259 = vld [vmem:[#allocation13 + $0xb40] sm:$0xf]
    %v3260 = vld [vmem:[#allocation13 + $0xb44] sm:$0xff]
    %v3261 = vld [vmem:[#allocation13 + $0xb4c] sm:$0xff]
    %v3262 = vld [vmem:[#allocation13 + $0xb54] sm:$0xff]
    %v3263 = vld [vmem:[#allocation13 + $0xb5c] sm:$0xf]
    %v3264 = vld [vmem:[#allocation13 + $0xb60] sm:$0xff]
    %v3265 = vld [vmem:[#allocation13 + $0xb68] sm:$0xff]
    %v3266 = vld [vmem:[#allocation13 + $0xb70] sm:$0xff]
    %v3267 = vld [vmem:[#allocation13 + $0xb78] sm:$0xf]
    %v3268 = vld [vmem:[#allocation13 + $0xb7c] sm:$0xff]
    %v3269 = vld [vmem:[#allocation13 + $0xb84] sm:$0xff]
    %v3270 = vld [vmem:[#allocation13 + $0xb8c] sm:$0xff]
    %v3271 = vld [vmem:[#allocation13 + $0xb94] sm:$0xf]
    %v3272 = vld [vmem:[#allocation13 + $0xb98] sm:$0xff]
    %v3273 = vld [vmem:[#allocation13 + $0xba0] sm:$0xff]
    %v3274 = vld [vmem:[#allocation13 + $0xba8] sm:$0xff]
    %v3275 = vld [vmem:[#allocation13 + $0xbb0] sm:$0xf]
    %v3276 = vld [vmem:[#allocation13 + $0xbb4] sm:$0xff]
    %v3277 = vld [vmem:[#allocation13 + $0xbbc] sm:$0xff]
    %v3278 = vld [vmem:[#allocation13 + $0xbc4] sm:$0xff]
    %v3279 = vld [vmem:[#allocation13 + $0xbcc] sm:$0xf]
    %v3280 = vld [vmem:[#allocation13 + $0xbd0] sm:$0xff]
    %v3281 = vld [vmem:[#allocation13 + $0xbd8] sm:$0xff]
    %v3282 = vld [vmem:[#allocation13 + $0xbe0] sm:$0xff]
    %v3283 = vld [vmem:[#allocation13 + $0xbe8] sm:$0xf]
    %v3284 = vld [vmem:[#allocation13 + $0xbec] sm:$0xff]
    %v3285 = vld [vmem:[#allocation13 + $0xbf4] sm:$0xff]
    %v3286 = vld [vmem:[#allocation13 + $0xbfc] sm:$0xff]
    %v3287 = vld [vmem:[#allocation13 + $0xc04] sm:$0xf]
    %v3288 = vld [vmem:[#allocation13 + $0xc08] sm:$0xff]
    %v3289 = vld [vmem:[#allocation13 + $0xc10] sm:$0xff]
    %v3290 = vld [vmem:[#allocation13 + $0xc18] sm:$0xff]
    %v3291 = vld [vmem:[#allocation13 + $0xc20] sm:$0xf]
    %v3292 = vld [vmem:[#allocation13 + $0xc24] sm:$0xff]
    %v3293 = vld [vmem:[#allocation13 + $0xc2c] sm:$0xff]
    %v3294 = vld [vmem:[#allocation13 + $0xc34] sm:$0xff]
    %v3295 = vld [vmem:[#allocation13 + $0xc3c] sm:$0xf]
    %v3296 = vld [vmem:[#allocation13 + $0xc40] sm:$0xff]
    %v3297 = vld [vmem:[#allocation13 + $0xc48] sm:$0xff]
    %v3298 = vld [vmem:[#allocation13 + $0xc50] sm:$0xff]
    %v3299 = vld [vmem:[#allocation13 + $0xc58] sm:$0xf]
    %v3300 = vld [vmem:[#allocation13 + $0xc5c] sm:$0xff]
    %v3301 = vld [vmem:[#allocation13 + $0xc64] sm:$0xff]
    %v3302 = vld [vmem:[#allocation13 + $0xc6c] sm:$0xff]
    %v3303 = vld [vmem:[#allocation13 + $0xc74] sm:$0xf]
    %v3304 = vld [vmem:[#allocation13 + $0xc78] sm:$0xff]
    %v3305 = vld [vmem:[#allocation13 + $0xc80] sm:$0xff]
    %v3306 = vld [vmem:[#allocation13 + $0xc88] sm:$0xff]
    %v3307 = vld [vmem:[#allocation13 + $0xc90] sm:$0xf]
    %v3308 = vld [vmem:[#allocation13 + $0xc94] sm:$0xff]
    %v3309 = vld [vmem:[#allocation13 + $0xc9c] sm:$0xff]
    %v3310 = vld [vmem:[#allocation13 + $0xca4] sm:$0xff]
    %v3311 = vld [vmem:[#allocation13 + $0xcac] sm:$0xf]
    %v3312 = vld [vmem:[#allocation13 + $0xcb0] sm:$0xff]
    %v3313 = vld [vmem:[#allocation13 + $0xcb8] sm:$0xff]
    %v3314 = vld [vmem:[#allocation13 + $0xcc0] sm:$0xff]
    %v3315 = vld [vmem:[#allocation13 + $0xcc8] sm:$0xf]
    %v3316 = vld [vmem:[#allocation13 + $0xccc] sm:$0xff]
    %v3317 = vld [vmem:[#allocation13 + $0xcd4] sm:$0xff]
    %v3318 = vld [vmem:[#allocation13 + $0xcdc] sm:$0xff]
    %v3319 = vld [vmem:[#allocation13 + $0xce4] sm:$0xf]
    %v3320 = vld [vmem:[#allocation13 + $0xce8] sm:$0xff]
    %v3321 = vld [vmem:[#allocation13 + $0xcf0] sm:$0xff]
    %v3322 = vld [vmem:[#allocation13 + $0xcf8] sm:$0xff]
    %v3323 = vld [vmem:[#allocation13 + $0xd00] sm:$0xf]
    %v3324 = vld [vmem:[#allocation13 + $0xd04] sm:$0xff]
    %v3325 = vld [vmem:[#allocation13 + $0xd0c] sm:$0xff]
    %v3326 = vld [vmem:[#allocation13 + $0xd14] sm:$0xff]
    %v3327 = vld [vmem:[#allocation13 + $0xd1c] sm:$0xf]
    %v3328 = vld [vmem:[#allocation13 + $0xd20] sm:$0xff]
    %v3329 = vld [vmem:[#allocation13 + $0xd28] sm:$0xff]
    %v3330 = vld [vmem:[#allocation13 + $0xd30] sm:$0xff]
    %v3331 = vld [vmem:[#allocation13 + $0xd38] sm:$0xf]
    %v3332 = vld [vmem:[#allocation13 + $0xd3c] sm:$0xff]
    %v3333 = vld [vmem:[#allocation13 + $0xd44] sm:$0xff]
    %v3334 = vld [vmem:[#allocation13 + $0xd4c] sm:$0xff]
    %v3335 = vld [vmem:[#allocation13 + $0xd54] sm:$0xf]
    %v3336 = vld [vmem:[#allocation13 + $0xd58] sm:$0xff]
    %v3337 = vld [vmem:[#allocation13 + $0xd60] sm:$0xff]
    %v3338 = vld [vmem:[#allocation13 + $0xd68] sm:$0xff]
    %v3339 = vld [vmem:[#allocation13 + $0xd70] sm:$0xf]
    %v3340 = vld [vmem:[#allocation13 + $0xd74] sm:$0xff]
    %v3341 = vld [vmem:[#allocation13 + $0xd7c] sm:$0xff]
    %v3342 = vld [vmem:[#allocation13 + $0xd84] sm:$0xff]
    %v3343 = vld [vmem:[#allocation13 + $0xd8c] sm:$0xf]
    %v3344 = vld [vmem:[#allocation13 + $0xd90] sm:$0xff]
    %v3345 = vld [vmem:[#allocation13 + $0xd98] sm:$0xff]
    %v3346 = vld [vmem:[#allocation13 + $0xda0] sm:$0xff]
    %v3347 = vld [vmem:[#allocation13 + $0xda8] sm:$0xf]
    %v3348 = vld [vmem:[#allocation13 + $0xdac] sm:$0xff]
    %v3349 = vld [vmem:[#allocation13 + $0xdb4] sm:$0xff]
    %v3350 = vld [vmem:[#allocation13 + $0xdbc] sm:$0xff]
    %v3351 = vld [vmem:[#allocation13 + $0xdc4] sm:$0xf]
    %v3352 = vld [vmem:[#allocation13 + $0xdc8] sm:$0xff]
    %v3353 = vld [vmem:[#allocation13 + $0xdd0] sm:$0xff]
    %v3354 = vld [vmem:[#allocation13 + $0xdd8] sm:$0xff]
    %v3355 = vld [vmem:[#allocation13 + $0xde0] sm:$0xf]
    %v3356 = vld [vmem:[#allocation13 + $0xde4] sm:$0xff]
    %v3357 = vld [vmem:[#allocation13 + $0xdec] sm:$0xff]
    %v3358 = vld [vmem:[#allocation13 + $0xdf4] sm:$0xff]
    %v3359 = vld [vmem:[#allocation13 + $0xdfc] sm:$0xf]
    %v3360 = vld [vmem:[#allocation14] sm:$0xff]
    %v3362 = vlaneseq
    %v3363 = vshrl.u32 %v3362, 7
    %v3364 = vsub.s32 0, %v3363
    %v3365 = vrot.slane %v3360, %v3364
    %v3366 = vlaneseq
    %v3367 = vshrl.u32 %v3366, 7
    %v3368 = vsub.s32 1, %v3367
    %v3369 = vrot.slane %v3360, %v3368
    %v3370 = vlaneseq
    %v3371 = vshrl.u32 %v3370, 7
    %v3372 = vsub.s32 2, %v3371
    %v3373 = vrot.slane %v3360, %v3372
    %v3374 = vlaneseq
    %v3375 = vshrl.u32 %v3374, 7
    %v3376 = vsub.s32 3, %v3375
    %v3377 = vrot.slane %v3360, %v3376
    %v3378 = vlaneseq
    %v3379 = vshrl.u32 %v3378, 7
    %v3380 = vsub.s32 4, %v3379
    %v3381 = vrot.slane %v3360, %v3380
    %v3382 = vlaneseq
    %v3383 = vshrl.u32 %v3382, 7
    %v3384 = vsub.s32 5, %v3383
    %v3385 = vrot.slane %v3360, %v3384
    %v3386 = vlaneseq
    %v3387 = vshrl.u32 %v3386, 7
    %v3388 = vsub.s32 6, %v3387
    %v3389 = vrot.slane %v3360, %v3388
    %v3909 = vunpack.c.l.b16 %v2848
    %v3910 = vunpack.c.h.b16 %v2848
    %v3911 = vunpack.c.l.b16 %v2849
    %v3912 = vunpack.c.h.b16 %v2849
    %v3913 = vunpack.c.l.b16 %v2850
    %v3914 = vunpack.c.h.b16 %v2850
    %v3915 = vunpack.c.l.b16 %v2851
    %v3916 = vunpack.c.l.b16 %v2852
    %v3917 = vunpack.c.h.b16 %v2852
    %v3918 = vunpack.c.l.b16 %v2853
    %v3919 = vunpack.c.h.b16 %v2853
    %v3920 = vunpack.c.l.b16 %v2854
    %v3921 = vunpack.c.h.b16 %v2854
    %v3922 = vunpack.c.l.b16 %v2855
    %v3923 = vunpack.c.l.b16 %v2856
    %v3924 = vunpack.c.h.b16 %v2856
    %v3925 = vunpack.c.l.b16 %v2857
    %v3926 = vunpack.c.h.b16 %v2857
    %v3927 = vunpack.c.l.b16 %v2858
    %v3928 = vunpack.c.h.b16 %v2858
    %v3929 = vunpack.c.l.b16 %v2859
    %v3930 = vunpack.c.l.b16 %v2860
    %v3931 = vunpack.c.h.b16 %v2860
    %v3932 = vunpack.c.l.b16 %v2861
    %v3933 = vunpack.c.h.b16 %v2861
    %v3934 = vunpack.c.l.b16 %v2862
    %v3935 = vunpack.c.h.b16 %v2862
    %v3936 = vunpack.c.l.b16 %v2863
    %v3937 = vunpack.c.l.b16 %v2864
    %v3938 = vunpack.c.h.b16 %v2864
    %v3939 = vunpack.c.l.b16 %v2865
    %v3940 = vunpack.c.h.b16 %v2865
    %v3941 = vunpack.c.l.b16 %v2866
    %v3942 = vunpack.c.h.b16 %v2866
    %v3943 = vunpack.c.l.b16 %v2867
    %v3944 = vunpack.c.l.b16 %v2868
    %v3945 = vunpack.c.h.b16 %v2868
    %v3946 = vunpack.c.l.b16 %v2869
    %v3947 = vunpack.c.h.b16 %v2869
    %v3948 = vunpack.c.l.b16 %v2870
    %v3949 = vunpack.c.h.b16 %v2870
    %v3950 = vunpack.c.l.b16 %v2871
    %v3951 = vunpack.c.l.b16 %v2872
    %v3952 = vunpack.c.h.b16 %v2872
    %v3953 = vunpack.c.l.b16 %v2873
    %v3954 = vunpack.c.h.b16 %v2873
    %v3955 = vunpack.c.l.b16 %v2874
    %v3956 = vunpack.c.h.b16 %v2874
    %v3957 = vunpack.c.l.b16 %v2875
    %v3958 = vunpack.c.l.b16 %v2876
    %v3959 = vunpack.c.h.b16 %v2876
    %v3960 = vunpack.c.l.b16 %v2877
    %v3961 = vunpack.c.h.b16 %v2877
    %v3962 = vunpack.c.l.b16 %v2878
    %v3963 = vunpack.c.h.b16 %v2878
    %v3964 = vunpack.c.l.b16 %v2879
    %v3965 = vunpack.c.l.b16 %v2880
    %v3966 = vunpack.c.h.b16 %v2880
    %v3967 = vunpack.c.l.b16 %v2881
    %v3968 = vunpack.c.h.b16 %v2881
    %v3969 = vunpack.c.l.b16 %v2882
    %v3970 = vunpack.c.h.b16 %v2882
    %v3971 = vunpack.c.l.b16 %v2883
    %v3972 = vunpack.c.l.b16 %v2884
    %v3973 = vunpack.c.h.b16 %v2884
    %v3974 = vunpack.c.l.b16 %v2885
    %v3975 = vunpack.c.h.b16 %v2885
    %v3976 = vunpack.c.l.b16 %v2886
    %v3977 = vunpack.c.h.b16 %v2886
    %v3978 = vunpack.c.l.b16 %v2887
    %v3979 = vunpack.c.l.b16 %v2888
    %v3980 = vunpack.c.h.b16 %v2888
    %v3981 = vunpack.c.l.b16 %v2889
    %v3982 = vunpack.c.h.b16 %v2889
    %v3983 = vunpack.c.l.b16 %v2890
    %v3984 = vunpack.c.h.b16 %v2890
    %v3985 = vunpack.c.l.b16 %v2891
    %v3986 = vunpack.c.l.b16 %v2892
    %v3987 = vunpack.c.h.b16 %v2892
    %v3988 = vunpack.c.l.b16 %v2893
    %v3989 = vunpack.c.h.b16 %v2893
    %v3990 = vunpack.c.l.b16 %v2894
    %v3991 = vunpack.c.h.b16 %v2894
    %v3992 = vunpack.c.l.b16 %v2895
    %v3993 = vunpack.c.l.b16 %v2896
    %v3994 = vunpack.c.h.b16 %v2896
    %v3995 = vunpack.c.l.b16 %v2897
    %v3996 = vunpack.c.h.b16 %v2897
    %v3997 = vunpack.c.l.b16 %v2898
    %v3998 = vunpack.c.h.b16 %v2898
    %v3999 = vunpack.c.l.b16 %v2899
    %v4000 = vunpack.c.l.b16 %v2900
    %v4001 = vunpack.c.h.b16 %v2900
    %v4002 = vunpack.c.l.b16 %v2901
    %v4003 = vunpack.c.h.b16 %v2901
    %v4004 = vunpack.c.l.b16 %v2902
    %v4005 = vunpack.c.h.b16 %v2902
    %v4006 = vunpack.c.l.b16 %v2903
    %v4007 = vunpack.c.l.b16 %v2904
    %v4008 = vunpack.c.h.b16 %v2904
    %v4009 = vunpack.c.l.b16 %v2905
    %v4010 = vunpack.c.h.b16 %v2905
    %v4011 = vunpack.c.l.b16 %v2906
    %v4012 = vunpack.c.h.b16 %v2906
    %v4013 = vunpack.c.l.b16 %v2907
    %v4014 = vunpack.c.l.b16 %v2908
    %v4015 = vunpack.c.h.b16 %v2908
    %v4016 = vunpack.c.l.b16 %v2909
    %v4017 = vunpack.c.h.b16 %v2909
    %v4018 = vunpack.c.l.b16 %v2910
    %v4019 = vunpack.c.h.b16 %v2910
    %v4020 = vunpack.c.l.b16 %v2911
    %v4021 = vunpack.c.l.b16 %v2912
    %v4022 = vunpack.c.h.b16 %v2912
    %v4023 = vunpack.c.l.b16 %v2913
    %v4024 = vunpack.c.h.b16 %v2913
    %v4025 = vunpack.c.l.b16 %v2914
    %v4026 = vunpack.c.h.b16 %v2914
    %v4027 = vunpack.c.l.b16 %v2915
    %v4028 = vunpack.c.l.b16 %v2916
    %v4029 = vunpack.c.h.b16 %v2916
    %v4030 = vunpack.c.l.b16 %v2917
    %v4031 = vunpack.c.h.b16 %v2917
    %v4032 = vunpack.c.l.b16 %v2918
    %v4033 = vunpack.c.h.b16 %v2918
    %v4034 = vunpack.c.l.b16 %v2919
    %v4035 = vunpack.c.l.b16 %v2920
    %v4036 = vunpack.c.h.b16 %v2920
    %v4037 = vunpack.c.l.b16 %v2921
    %v4038 = vunpack.c.h.b16 %v2921
    %v4039 = vunpack.c.l.b16 %v2922
    %v4040 = vunpack.c.h.b16 %v2922
    %v4041 = vunpack.c.l.b16 %v2923
    %v4042 = vunpack.c.l.b16 %v2924
    %v4043 = vunpack.c.h.b16 %v2924
    %v4044 = vunpack.c.l.b16 %v2925
    %v4045 = vunpack.c.h.b16 %v2925
    %v4046 = vunpack.c.l.b16 %v2926
    %v4047 = vunpack.c.h.b16 %v2926
    %v4048 = vunpack.c.l.b16 %v2927
    %v4049 = vunpack.c.l.b16 %v2928
    %v4050 = vunpack.c.h.b16 %v2928
    %v4051 = vunpack.c.l.b16 %v2929
    %v4052 = vunpack.c.h.b16 %v2929
    %v4053 = vunpack.c.l.b16 %v2930
    %v4054 = vunpack.c.h.b16 %v2930
    %v4055 = vunpack.c.l.b16 %v2931
    %v4056 = vunpack.c.l.b16 %v2932
    %v4057 = vunpack.c.h.b16 %v2932
    %v4058 = vunpack.c.l.b16 %v2933
    %v4059 = vunpack.c.h.b16 %v2933
    %v4060 = vunpack.c.l.b16 %v2934
    %v4061 = vunpack.c.h.b16 %v2934
    %v4062 = vunpack.c.l.b16 %v2935
    %v4063 = vunpack.c.l.b16 %v2936
    %v4064 = vunpack.c.h.b16 %v2936
    %v4065 = vunpack.c.l.b16 %v2937
    %v4066 = vunpack.c.h.b16 %v2937
    %v4067 = vunpack.c.l.b16 %v2938
    %v4068 = vunpack.c.h.b16 %v2938
    %v4069 = vunpack.c.l.b16 %v2939
    %v4070 = vunpack.c.l.b16 %v2940
    %v4071 = vunpack.c.h.b16 %v2940
    %v4072 = vunpack.c.l.b16 %v2941
    %v4073 = vunpack.c.h.b16 %v2941
    %v4074 = vunpack.c.l.b16 %v2942
    %v4075 = vunpack.c.h.b16 %v2942
    %v4076 = vunpack.c.l.b16 %v2943
    %v4077 = vunpack.c.l.b16 %v2944
    %v4078 = vunpack.c.h.b16 %v2944
    %v4079 = vunpack.c.l.b16 %v2945
    %v4080 = vunpack.c.h.b16 %v2945
    %v4081 = vunpack.c.l.b16 %v2946
    %v4082 = vunpack.c.h.b16 %v2946
    %v4083 = vunpack.c.l.b16 %v2947
    %v4084 = vunpack.c.l.b16 %v2948
    %v4085 = vunpack.c.h.b16 %v2948
    %v4086 = vunpack.c.l.b16 %v2949
    %v4087 = vunpack.c.h.b16 %v2949
    %v4088 = vunpack.c.l.b16 %v2950
    %v4089 = vunpack.c.h.b16 %v2950
    %v4090 = vunpack.c.l.b16 %v2951
    %v4091 = vunpack.c.l.b16 %v2952
    %v4092 = vunpack.c.h.b16 %v2952
    %v4093 = vunpack.c.l.b16 %v2953
    %v4094 = vunpack.c.h.b16 %v2953
    %v4095 = vunpack.c.l.b16 %v2954
    %v4096 = vunpack.c.h.b16 %v2954
    %v4097 = vunpack.c.l.b16 %v2955
    %v4098 = vunpack.c.l.b16 %v2956
    %v4099 = vunpack.c.h.b16 %v2956
    %v4100 = vunpack.c.l.b16 %v2957
    %v4101 = vunpack.c.h.b16 %v2957
    %v4102 = vunpack.c.l.b16 %v2958
    %v4103 = vunpack.c.h.b16 %v2958
    %v4104 = vunpack.c.l.b16 %v2959
    %v4105 = vunpack.c.l.b16 %v2960
    %v4106 = vunpack.c.h.b16 %v2960
    %v4107 = vunpack.c.l.b16 %v2961
    %v4108 = vunpack.c.h.b16 %v2961
    %v4109 = vunpack.c.l.b16 %v2962
    %v4110 = vunpack.c.h.b16 %v2962
    %v4111 = vunpack.c.l.b16 %v2963
    %v4112 = vunpack.c.l.b16 %v2964
    %v4113 = vunpack.c.h.b16 %v2964
    %v4114 = vunpack.c.l.b16 %v2965
    %v4115 = vunpack.c.h.b16 %v2965
    %v4116 = vunpack.c.l.b16 %v2966
    %v4117 = vunpack.c.h.b16 %v2966
    %v4118 = vunpack.c.l.b16 %v2967
    %v4119 = vunpack.c.l.b16 %v2968
    %v4120 = vunpack.c.h.b16 %v2968
    %v4121 = vunpack.c.l.b16 %v2969
    %v4122 = vunpack.c.h.b16 %v2969
    %v4123 = vunpack.c.l.b16 %v2970
    %v4124 = vunpack.c.h.b16 %v2970
    %v4125 = vunpack.c.l.b16 %v2971
    %v4126 = vunpack.c.l.b16 %v2972
    %v4127 = vunpack.c.h.b16 %v2972
    %v4128 = vunpack.c.l.b16 %v2973
    %v4129 = vunpack.c.h.b16 %v2973
    %v4130 = vunpack.c.l.b16 %v2974
    %v4131 = vunpack.c.h.b16 %v2974
    %v4132 = vunpack.c.l.b16 %v2975
    %v4133 = vunpack.c.l.b16 %v2976
    %v4134 = vunpack.c.h.b16 %v2976
    %v4135 = vunpack.c.l.b16 %v2977
    %v4136 = vunpack.c.h.b16 %v2977
    %v4137 = vunpack.c.l.b16 %v2978
    %v4138 = vunpack.c.h.b16 %v2978
    %v4139 = vunpack.c.l.b16 %v2979
    %v4140 = vunpack.c.l.b16 %v2980
    %v4141 = vunpack.c.h.b16 %v2980
    %v4142 = vunpack.c.l.b16 %v2981
    %v4143 = vunpack.c.h.b16 %v2981
    %v4144 = vunpack.c.l.b16 %v2982
    %v4145 = vunpack.c.h.b16 %v2982
    %v4146 = vunpack.c.l.b16 %v2983
    %v4147 = vunpack.c.l.b16 %v2984
    %v4148 = vunpack.c.h.b16 %v2984
    %v4149 = vunpack.c.l.b16 %v2985
    %v4150 = vunpack.c.h.b16 %v2985
    %v4151 = vunpack.c.l.b16 %v2986
    %v4152 = vunpack.c.h.b16 %v2986
    %v4153 = vunpack.c.l.b16 %v2987
    %v4154 = vunpack.c.l.b16 %v2988
    %v4155 = vunpack.c.h.b16 %v2988
    %v4156 = vunpack.c.l.b16 %v2989
    %v4157 = vunpack.c.h.b16 %v2989
    %v4158 = vunpack.c.l.b16 %v2990
    %v4159 = vunpack.c.h.b16 %v2990
    %v4160 = vunpack.c.l.b16 %v2991
    %v4161 = vunpack.c.l.b16 %v2992
    %v4162 = vunpack.c.h.b16 %v2992
    %v4163 = vunpack.c.l.b16 %v2993
    %v4164 = vunpack.c.h.b16 %v2993
    %v4165 = vunpack.c.l.b16 %v2994
    %v4166 = vunpack.c.h.b16 %v2994
    %v4167 = vunpack.c.l.b16 %v2995
    %v4168 = vunpack.c.l.b16 %v2996
    %v4169 = vunpack.c.h.b16 %v2996
    %v4170 = vunpack.c.l.b16 %v2997
    %v4171 = vunpack.c.h.b16 %v2997
    %v4172 = vunpack.c.l.b16 %v2998
    %v4173 = vunpack.c.h.b16 %v2998
    %v4174 = vunpack.c.l.b16 %v2999
    %v4175 = vunpack.c.l.b16 %v3000
    %v4176 = vunpack.c.h.b16 %v3000
    %v4177 = vunpack.c.l.b16 %v3001
    %v4178 = vunpack.c.h.b16 %v3001
    %v4179 = vunpack.c.l.b16 %v3002
    %v4180 = vunpack.c.h.b16 %v3002
    %v4181 = vunpack.c.l.b16 %v3003
    %v4182 = vunpack.c.l.b16 %v3004
    %v4183 = vunpack.c.h.b16 %v3004
    %v4184 = vunpack.c.l.b16 %v3005
    %v4185 = vunpack.c.h.b16 %v3005
    %v4186 = vunpack.c.l.b16 %v3006
    %v4187 = vunpack.c.h.b16 %v3006
    %v4188 = vunpack.c.l.b16 %v3007
    %v4189 = vunpack.c.l.b16 %v3008
    %v4190 = vunpack.c.h.b16 %v3008
    %v4191 = vunpack.c.l.b16 %v3009
    %v4192 = vunpack.c.h.b16 %v3009
    %v4193 = vunpack.c.l.b16 %v3010
    %v4194 = vunpack.c.h.b16 %v3010
    %v4195 = vunpack.c.l.b16 %v3011
    %v4196 = vunpack.c.l.b16 %v3012
    %v4197 = vunpack.c.h.b16 %v3012
    %v4198 = vunpack.c.l.b16 %v3013
    %v4199 = vunpack.c.h.b16 %v3013
    %v4200 = vunpack.c.l.b16 %v3014
    %v4201 = vunpack.c.h.b16 %v3014
    %v4202 = vunpack.c.l.b16 %v3015
    %v4203 = vunpack.c.l.b16 %v3016
    %v4204 = vunpack.c.h.b16 %v3016
    %v4205 = vunpack.c.l.b16 %v3017
    %v4206 = vunpack.c.h.b16 %v3017
    %v4207 = vunpack.c.l.b16 %v3018
    %v4208 = vunpack.c.h.b16 %v3018
    %v4209 = vunpack.c.l.b16 %v3019
    %v4210 = vunpack.c.l.b16 %v3020
    %v4211 = vunpack.c.h.b16 %v3020
    %v4212 = vunpack.c.l.b16 %v3021
    %v4213 = vunpack.c.h.b16 %v3021
    %v4214 = vunpack.c.l.b16 %v3022
    %v4215 = vunpack.c.h.b16 %v3022
    %v4216 = vunpack.c.l.b16 %v3023
    %v4217 = vunpack.c.l.b16 %v3024
    %v4218 = vunpack.c.h.b16 %v3024
    %v4219 = vunpack.c.l.b16 %v3025
    %v4220 = vunpack.c.h.b16 %v3025
    %v4221 = vunpack.c.l.b16 %v3026
    %v4222 = vunpack.c.h.b16 %v3026
    %v4223 = vunpack.c.l.b16 %v3027
    %v4224 = vunpack.c.l.b16 %v3028
    %v4225 = vunpack.c.h.b16 %v3028
    %v4226 = vunpack.c.l.b16 %v3029
    %v4227 = vunpack.c.h.b16 %v3029
    %v4228 = vunpack.c.l.b16 %v3030
    %v4229 = vunpack.c.h.b16 %v3030
    %v4230 = vunpack.c.l.b16 %v3031
    %v4231 = vunpack.c.l.b16 %v3032
    %v4232 = vunpack.c.h.b16 %v3032
    %v4233 = vunpack.c.l.b16 %v3033
    %v4234 = vunpack.c.h.b16 %v3033
    %v4235 = vunpack.c.l.b16 %v3034
    %v4236 = vunpack.c.h.b16 %v3034
    %v4237 = vunpack.c.l.b16 %v3035
    %v4238 = vunpack.c.l.b16 %v3036
    %v4239 = vunpack.c.h.b16 %v3036
    %v4240 = vunpack.c.l.b16 %v3037
    %v4241 = vunpack.c.h.b16 %v3037
    %v4242 = vunpack.c.l.b16 %v3038
    %v4243 = vunpack.c.h.b16 %v3038
    %v4244 = vunpack.c.l.b16 %v3039
    %v4245 = vunpack.c.l.b16 %v3040
    %v4246 = vunpack.c.h.b16 %v3040
    %v4247 = vunpack.c.l.b16 %v3041
    %v4248 = vunpack.c.h.b16 %v3041
    %v4249 = vunpack.c.l.b16 %v3042
    %v4250 = vunpack.c.h.b16 %v3042
    %v4251 = vunpack.c.l.b16 %v3043
    %v4252 = vunpack.c.l.b16 %v3044
    %v4253 = vunpack.c.h.b16 %v3044
    %v4254 = vunpack.c.l.b16 %v3045
    %v4255 = vunpack.c.h.b16 %v3045
    %v4256 = vunpack.c.l.b16 %v3046
    %v4257 = vunpack.c.h.b16 %v3046
    %v4258 = vunpack.c.l.b16 %v3047
    %v4259 = vunpack.c.l.b16 %v3048
    %v4260 = vunpack.c.h.b16 %v3048
    %v4261 = vunpack.c.l.b16 %v3049
    %v4262 = vunpack.c.h.b16 %v3049
    %v4263 = vunpack.c.l.b16 %v3050
    %v4264 = vunpack.c.h.b16 %v3050
    %v4265 = vunpack.c.l.b16 %v3051
    %v4266 = vunpack.c.l.b16 %v3052
    %v4267 = vunpack.c.h.b16 %v3052
    %v4268 = vunpack.c.l.b16 %v3053
    %v4269 = vunpack.c.h.b16 %v3053
    %v4270 = vunpack.c.l.b16 %v3054
    %v4271 = vunpack.c.h.b16 %v3054
    %v4272 = vunpack.c.l.b16 %v3055
    %v4273 = vunpack.c.l.b16 %v3056
    %v4274 = vunpack.c.h.b16 %v3056
    %v4275 = vunpack.c.l.b16 %v3057
    %v4276 = vunpack.c.h.b16 %v3057
    %v4277 = vunpack.c.l.b16 %v3058
    %v4278 = vunpack.c.h.b16 %v3058
    %v4279 = vunpack.c.l.b16 %v3059
    %v4280 = vunpack.c.l.b16 %v3060
    %v4281 = vunpack.c.h.b16 %v3060
    %v4282 = vunpack.c.l.b16 %v3061
    %v4283 = vunpack.c.h.b16 %v3061
    %v4284 = vunpack.c.l.b16 %v3062
    %v4285 = vunpack.c.h.b16 %v3062
    %v4286 = vunpack.c.l.b16 %v3063
    %v4287 = vunpack.c.l.b16 %v3064
    %v4288 = vunpack.c.h.b16 %v3064
    %v4289 = vunpack.c.l.b16 %v3065
    %v4290 = vunpack.c.h.b16 %v3065
    %v4291 = vunpack.c.l.b16 %v3066
    %v4292 = vunpack.c.h.b16 %v3066
    %v4293 = vunpack.c.l.b16 %v3067
    %v4294 = vunpack.c.l.b16 %v3068
    %v4295 = vunpack.c.h.b16 %v3068
    %v4296 = vunpack.c.l.b16 %v3069
    %v4297 = vunpack.c.h.b16 %v3069
    %v4298 = vunpack.c.l.b16 %v3070
    %v4299 = vunpack.c.h.b16 %v3070
    %v4300 = vunpack.c.l.b16 %v3071
    %v4301 = vunpack.c.l.b16 %v3072
    %v4302 = vunpack.c.h.b16 %v3072
    %v4303 = vunpack.c.l.b16 %v3073
    %v4304 = vunpack.c.h.b16 %v3073
    %v4305 = vunpack.c.l.b16 %v3074
    %v4306 = vunpack.c.h.b16 %v3074
    %v4307 = vunpack.c.l.b16 %v3075
    %v4308 = vunpack.c.l.b16 %v3076
    %v4309 = vunpack.c.h.b16 %v3076
    %v4310 = vunpack.c.l.b16 %v3077
    %v4311 = vunpack.c.h.b16 %v3077
    %v4312 = vunpack.c.l.b16 %v3078
    %v4313 = vunpack.c.h.b16 %v3078
    %v4314 = vunpack.c.l.b16 %v3079
    %v4315 = vunpack.c.l.b16 %v3080
    %v4316 = vunpack.c.h.b16 %v3080
    %v4317 = vunpack.c.l.b16 %v3081
    %v4318 = vunpack.c.h.b16 %v3081
    %v4319 = vunpack.c.l.b16 %v3082
    %v4320 = vunpack.c.h.b16 %v3082
    %v4321 = vunpack.c.l.b16 %v3083
    %v4322 = vunpack.c.l.b16 %v3084
    %v4323 = vunpack.c.h.b16 %v3084
    %v4324 = vunpack.c.l.b16 %v3085
    %v4325 = vunpack.c.h.b16 %v3085
    %v4326 = vunpack.c.l.b16 %v3086
    %v4327 = vunpack.c.h.b16 %v3086
    %v4328 = vunpack.c.l.b16 %v3087
    %v4329 = vunpack.c.l.b16 %v3088
    %v4330 = vunpack.c.h.b16 %v3088
    %v4331 = vunpack.c.l.b16 %v3089
    %v4332 = vunpack.c.h.b16 %v3089
    %v4333 = vunpack.c.l.b16 %v3090
    %v4334 = vunpack.c.h.b16 %v3090
    %v4335 = vunpack.c.l.b16 %v3091
    %v4336 = vunpack.c.l.b16 %v3092
    %v4337 = vunpack.c.h.b16 %v3092
    %v4338 = vunpack.c.l.b16 %v3093
    %v4339 = vunpack.c.h.b16 %v3093
    %v4340 = vunpack.c.l.b16 %v3094
    %v4341 = vunpack.c.h.b16 %v3094
    %v4342 = vunpack.c.l.b16 %v3095
    %v4343 = vunpack.c.l.b16 %v3096
    %v4344 = vunpack.c.h.b16 %v3096
    %v4345 = vunpack.c.l.b16 %v3097
    %v4346 = vunpack.c.h.b16 %v3097
    %v4347 = vunpack.c.l.b16 %v3098
    %v4348 = vunpack.c.h.b16 %v3098
    %v4349 = vunpack.c.l.b16 %v3099
    %v4350 = vunpack.c.l.b16 %v3100
    %v4351 = vunpack.c.h.b16 %v3100
    %v4352 = vunpack.c.l.b16 %v3101
    %v4353 = vunpack.c.h.b16 %v3101
    %v4354 = vunpack.c.l.b16 %v3102
    %v4355 = vunpack.c.h.b16 %v3102
    %v4356 = vunpack.c.l.b16 %v3103
    %v4357 = vunpack.c.l.b16 %v3104
    %v4358 = vunpack.c.h.b16 %v3104
    %v4359 = vunpack.c.l.b16 %v3105
    %v4360 = vunpack.c.h.b16 %v3105
    %v4361 = vunpack.c.l.b16 %v3106
    %v4362 = vunpack.c.h.b16 %v3106
    %v4363 = vunpack.c.l.b16 %v3107
    %v4364 = vunpack.c.l.b16 %v3108
    %v4365 = vunpack.c.h.b16 %v3108
    %v4366 = vunpack.c.l.b16 %v3109
    %v4367 = vunpack.c.h.b16 %v3109
    %v4368 = vunpack.c.l.b16 %v3110
    %v4369 = vunpack.c.h.b16 %v3110
    %v4370 = vunpack.c.l.b16 %v3111
    %v4371 = vunpack.c.l.b16 %v3112
    %v4372 = vunpack.c.h.b16 %v3112
    %v4373 = vunpack.c.l.b16 %v3113
    %v4374 = vunpack.c.h.b16 %v3113
    %v4375 = vunpack.c.l.b16 %v3114
    %v4376 = vunpack.c.h.b16 %v3114
    %v4377 = vunpack.c.l.b16 %v3115
    %v4378 = vunpack.c.l.b16 %v3116
    %v4379 = vunpack.c.h.b16 %v3116
    %v4380 = vunpack.c.l.b16 %v3117
    %v4381 = vunpack.c.h.b16 %v3117
    %v4382 = vunpack.c.l.b16 %v3118
    %v4383 = vunpack.c.h.b16 %v3118
    %v4384 = vunpack.c.l.b16 %v3119
    %v4385 = vunpack.c.l.b16 %v3120
    %v4386 = vunpack.c.h.b16 %v3120
    %v4387 = vunpack.c.l.b16 %v3121
    %v4388 = vunpack.c.h.b16 %v3121
    %v4389 = vunpack.c.l.b16 %v3122
    %v4390 = vunpack.c.h.b16 %v3122
    %v4391 = vunpack.c.l.b16 %v3123
    %v4392 = vunpack.c.l.b16 %v3124
    %v4393 = vunpack.c.h.b16 %v3124
    %v4394 = vunpack.c.l.b16 %v3125
    %v4395 = vunpack.c.h.b16 %v3125
    %v4396 = vunpack.c.l.b16 %v3126
    %v4397 = vunpack.c.h.b16 %v3126
    %v4398 = vunpack.c.l.b16 %v3127
    %v4399 = vunpack.c.l.b16 %v3128
    %v4400 = vunpack.c.h.b16 %v3128
    %v4401 = vunpack.c.l.b16 %v3129
    %v4402 = vunpack.c.h.b16 %v3129
    %v4403 = vunpack.c.l.b16 %v3130
    %v4404 = vunpack.c.h.b16 %v3130
    %v4405 = vunpack.c.l.b16 %v3131
    %v4406 = vunpack.c.l.b16 %v3132
    %v4407 = vunpack.c.h.b16 %v3132
    %v4408 = vunpack.c.l.b16 %v3133
    %v4409 = vunpack.c.h.b16 %v3133
    %v4410 = vunpack.c.l.b16 %v3134
    %v4411 = vunpack.c.h.b16 %v3134
    %v4412 = vunpack.c.l.b16 %v3135
    %v4413 = vunpack.c.l.b16 %v3136
    %v4414 = vunpack.c.h.b16 %v3136
    %v4415 = vunpack.c.l.b16 %v3137
    %v4416 = vunpack.c.h.b16 %v3137
    %v4417 = vunpack.c.l.b16 %v3138
    %v4418 = vunpack.c.h.b16 %v3138
    %v4419 = vunpack.c.l.b16 %v3139
    %v4420 = vunpack.c.l.b16 %v3140
    %v4421 = vunpack.c.h.b16 %v3140
    %v4422 = vunpack.c.l.b16 %v3141
    %v4423 = vunpack.c.h.b16 %v3141
    %v4424 = vunpack.c.l.b16 %v3142
    %v4425 = vunpack.c.h.b16 %v3142
    %v4426 = vunpack.c.l.b16 %v3143
    %v4427 = vunpack.c.l.b16 %v3144
    %v4428 = vunpack.c.h.b16 %v3144
    %v4429 = vunpack.c.l.b16 %v3145
    %v4430 = vunpack.c.h.b16 %v3145
    %v4431 = vunpack.c.l.b16 %v3146
    %v4432 = vunpack.c.h.b16 %v3146
    %v4433 = vunpack.c.l.b16 %v3147
    %v4434 = vunpack.c.l.b16 %v3148
    %v4435 = vunpack.c.h.b16 %v3148
    %v4436 = vunpack.c.l.b16 %v3149
    %v4437 = vunpack.c.h.b16 %v3149
    %v4438 = vunpack.c.l.b16 %v3150
    %v4439 = vunpack.c.h.b16 %v3150
    %v4440 = vunpack.c.l.b16 %v3151
    %v4441 = vunpack.c.l.b16 %v3152
    %v4442 = vunpack.c.h.b16 %v3152
    %v4443 = vunpack.c.l.b16 %v3153
    %v4444 = vunpack.c.h.b16 %v3153
    %v4445 = vunpack.c.l.b16 %v3154
    %v4446 = vunpack.c.h.b16 %v3154
    %v4447 = vunpack.c.l.b16 %v3155
    %v4448 = vunpack.c.l.b16 %v3156
    %v4449 = vunpack.c.h.b16 %v3156
    %v4450 = vunpack.c.l.b16 %v3157
    %v4451 = vunpack.c.h.b16 %v3157
    %v4452 = vunpack.c.l.b16 %v3158
    %v4453 = vunpack.c.h.b16 %v3158
    %v4454 = vunpack.c.l.b16 %v3159
    %v4455 = vunpack.c.l.b16 %v3160
    %v4456 = vunpack.c.h.b16 %v3160
    %v4457 = vunpack.c.l.b16 %v3161
    %v4458 = vunpack.c.h.b16 %v3161
    %v4459 = vunpack.c.l.b16 %v3162
    %v4460 = vunpack.c.h.b16 %v3162
    %v4461 = vunpack.c.l.b16 %v3163
    %v4462 = vunpack.c.l.b16 %v3164
    %v4463 = vunpack.c.h.b16 %v3164
    %v4464 = vunpack.c.l.b16 %v3165
    %v4465 = vunpack.c.h.b16 %v3165
    %v4466 = vunpack.c.l.b16 %v3166
    %v4467 = vunpack.c.h.b16 %v3166
    %v4468 = vunpack.c.l.b16 %v3167
    %v4469 = vunpack.c.l.b16 %v3168
    %v4470 = vunpack.c.h.b16 %v3168
    %v4471 = vunpack.c.l.b16 %v3169
    %v4472 = vunpack.c.h.b16 %v3169
    %v4473 = vunpack.c.l.b16 %v3170
    %v4474 = vunpack.c.h.b16 %v3170
    %v4475 = vunpack.c.l.b16 %v3171
    %v4476 = vunpack.c.l.b16 %v3172
    %v4477 = vunpack.c.h.b16 %v3172
    %v4478 = vunpack.c.l.b16 %v3173
    %v4479 = vunpack.c.h.b16 %v3173
    %v4480 = vunpack.c.l.b16 %v3174
    %v4481 = vunpack.c.h.b16 %v3174
    %v4482 = vunpack.c.l.b16 %v3175
    %v4483 = vunpack.c.l.b16 %v3176
    %v4484 = vunpack.c.h.b16 %v3176
    %v4485 = vunpack.c.l.b16 %v3177
    %v4486 = vunpack.c.h.b16 %v3177
    %v4487 = vunpack.c.l.b16 %v3178
    %v4488 = vunpack.c.h.b16 %v3178
    %v4489 = vunpack.c.l.b16 %v3179
    %v4490 = vunpack.c.l.b16 %v3180
    %v4491 = vunpack.c.h.b16 %v3180
    %v4492 = vunpack.c.l.b16 %v3181
    %v4493 = vunpack.c.h.b16 %v3181
    %v4494 = vunpack.c.l.b16 %v3182
    %v4495 = vunpack.c.h.b16 %v3182
    %v4496 = vunpack.c.l.b16 %v3183
    %v4497 = vunpack.c.l.b16 %v3184
    %v4498 = vunpack.c.h.b16 %v3184
    %v4499 = vunpack.c.l.b16 %v3185
    %v4500 = vunpack.c.h.b16 %v3185
    %v4501 = vunpack.c.l.b16 %v3186
    %v4502 = vunpack.c.h.b16 %v3186
    %v4503 = vunpack.c.l.b16 %v3187
    %v4504 = vunpack.c.l.b16 %v3188
    %v4505 = vunpack.c.h.b16 %v3188
    %v4506 = vunpack.c.l.b16 %v3189
    %v4507 = vunpack.c.h.b16 %v3189
    %v4508 = vunpack.c.l.b16 %v3190
    %v4509 = vunpack.c.h.b16 %v3190
    %v4510 = vunpack.c.l.b16 %v3191
    %v4511 = vunpack.c.l.b16 %v3192
    %v4512 = vunpack.c.h.b16 %v3192
    %v4513 = vunpack.c.l.b16 %v3193
    %v4514 = vunpack.c.h.b16 %v3193
    %v4515 = vunpack.c.l.b16 %v3194
    %v4516 = vunpack.c.h.b16 %v3194
    %v4517 = vunpack.c.l.b16 %v3195
    %v4518 = vunpack.c.l.b16 %v3196
    %v4519 = vunpack.c.h.b16 %v3196
    %v4520 = vunpack.c.l.b16 %v3197
    %v4521 = vunpack.c.h.b16 %v3197
    %v4522 = vunpack.c.l.b16 %v3198
    %v4523 = vunpack.c.h.b16 %v3198
    %v4524 = vunpack.c.l.b16 %v3199
    %v4525 = vunpack.c.l.b16 %v3200
    %v4526 = vunpack.c.h.b16 %v3200
    %v4527 = vunpack.c.l.b16 %v3201
    %v4528 = vunpack.c.h.b16 %v3201
    %v4529 = vunpack.c.l.b16 %v3202
    %v4530 = vunpack.c.h.b16 %v3202
    %v4531 = vunpack.c.l.b16 %v3203
    %v4532 = vunpack.c.l.b16 %v3204
    %v4533 = vunpack.c.h.b16 %v3204
    %v4534 = vunpack.c.l.b16 %v3205
    %v4535 = vunpack.c.h.b16 %v3205
    %v4536 = vunpack.c.l.b16 %v3206
    %v4537 = vunpack.c.h.b16 %v3206
    %v4538 = vunpack.c.l.b16 %v3207
    %v4539 = vunpack.c.l.b16 %v3208
    %v4540 = vunpack.c.h.b16 %v3208
    %v4541 = vunpack.c.l.b16 %v3209
    %v4542 = vunpack.c.h.b16 %v3209
    %v4543 = vunpack.c.l.b16 %v3210
    %v4544 = vunpack.c.h.b16 %v3210
    %v4545 = vunpack.c.l.b16 %v3211
    %v4546 = vunpack.c.l.b16 %v3212
    %v4547 = vunpack.c.h.b16 %v3212
    %v4548 = vunpack.c.l.b16 %v3213
    %v4549 = vunpack.c.h.b16 %v3213
    %v4550 = vunpack.c.l.b16 %v3214
    %v4551 = vunpack.c.h.b16 %v3214
    %v4552 = vunpack.c.l.b16 %v3215
    %v4553 = vunpack.c.l.b16 %v3216
    %v4554 = vunpack.c.h.b16 %v3216
    %v4555 = vunpack.c.l.b16 %v3217
    %v4556 = vunpack.c.h.b16 %v3217
    %v4557 = vunpack.c.l.b16 %v3218
    %v4558 = vunpack.c.h.b16 %v3218
    %v4559 = vunpack.c.l.b16 %v3219
    %v4560 = vunpack.c.l.b16 %v3220
    %v4561 = vunpack.c.h.b16 %v3220
    %v4562 = vunpack.c.l.b16 %v3221
    %v4563 = vunpack.c.h.b16 %v3221
    %v4564 = vunpack.c.l.b16 %v3222
    %v4565 = vunpack.c.h.b16 %v3222
    %v4566 = vunpack.c.l.b16 %v3223
    %v4567 = vunpack.c.l.b16 %v3224
    %v4568 = vunpack.c.h.b16 %v3224
    %v4569 = vunpack.c.l.b16 %v3225
    %v4570 = vunpack.c.h.b16 %v3225
    %v4571 = vunpack.c.l.b16 %v3226
    %v4572 = vunpack.c.h.b16 %v3226
    %v4573 = vunpack.c.l.b16 %v3227
    %v4574 = vunpack.c.l.b16 %v3228
    %v4575 = vunpack.c.h.b16 %v3228
    %v4576 = vunpack.c.l.b16 %v3229
    %v4577 = vunpack.c.h.b16 %v3229
    %v4578 = vunpack.c.l.b16 %v3230
    %v4579 = vunpack.c.h.b16 %v3230
    %v4580 = vunpack.c.l.b16 %v3231
    %v4581 = vunpack.c.l.b16 %v3232
    %v4582 = vunpack.c.h.b16 %v3232
    %v4583 = vunpack.c.l.b16 %v3233
    %v4584 = vunpack.c.h.b16 %v3233
    %v4585 = vunpack.c.l.b16 %v3234
    %v4586 = vunpack.c.h.b16 %v3234
    %v4587 = vunpack.c.l.b16 %v3235
    %v4588 = vunpack.c.l.b16 %v3236
    %v4589 = vunpack.c.h.b16 %v3236
    %v4590 = vunpack.c.l.b16 %v3237
    %v4591 = vunpack.c.h.b16 %v3237
    %v4592 = vunpack.c.l.b16 %v3238
    %v4593 = vunpack.c.h.b16 %v3238
    %v4594 = vunpack.c.l.b16 %v3239
    %v4595 = vunpack.c.l.b16 %v3240
    %v4596 = vunpack.c.h.b16 %v3240
    %v4597 = vunpack.c.l.b16 %v3241
    %v4598 = vunpack.c.h.b16 %v3241
    %v4599 = vunpack.c.l.b16 %v3242
    %v4600 = vunpack.c.h.b16 %v3242
    %v4601 = vunpack.c.l.b16 %v3243
    %v4602 = vunpack.c.l.b16 %v3244
    %v4603 = vunpack.c.h.b16 %v3244
    %v4604 = vunpack.c.l.b16 %v3245
    %v4605 = vunpack.c.h.b16 %v3245
    %v4606 = vunpack.c.l.b16 %v3246
    %v4607 = vunpack.c.h.b16 %v3246
    %v4608 = vunpack.c.l.b16 %v3247
    %v4609 = vunpack.c.l.b16 %v3248
    %v4610 = vunpack.c.h.b16 %v3248
    %v4611 = vunpack.c.l.b16 %v3249
    %v4612 = vunpack.c.h.b16 %v3249
    %v4613 = vunpack.c.l.b16 %v3250
    %v4614 = vunpack.c.h.b16 %v3250
    %v4615 = vunpack.c.l.b16 %v3251
    %v4616 = vunpack.c.l.b16 %v3252
    %v4617 = vunpack.c.h.b16 %v3252
    %v4618 = vunpack.c.l.b16 %v3253
    %v4619 = vunpack.c.h.b16 %v3253
    %v4620 = vunpack.c.l.b16 %v3254
    %v4621 = vunpack.c.h.b16 %v3254
    %v4622 = vunpack.c.l.b16 %v3255
    %v4623 = vunpack.c.l.b16 %v3256
    %v4624 = vunpack.c.h.b16 %v3256
    %v4625 = vunpack.c.l.b16 %v3257
    %v4626 = vunpack.c.h.b16 %v3257
    %v4627 = vunpack.c.l.b16 %v3258
    %v4628 = vunpack.c.h.b16 %v3258
    %v4629 = vunpack.c.l.b16 %v3259
    %v4630 = vunpack.c.l.b16 %v3260
    %v4631 = vunpack.c.h.b16 %v3260
    %v4632 = vunpack.c.l.b16 %v3261
    %v4633 = vunpack.c.h.b16 %v3261
    %v4634 = vunpack.c.l.b16 %v3262
    %v4635 = vunpack.c.h.b16 %v3262
    %v4636 = vunpack.c.l.b16 %v3263
    %v4637 = vunpack.c.l.b16 %v3264
    %v4638 = vunpack.c.h.b16 %v3264
    %v4639 = vunpack.c.l.b16 %v3265
    %v4640 = vunpack.c.h.b16 %v3265
    %v4641 = vunpack.c.l.b16 %v3266
    %v4642 = vunpack.c.h.b16 %v3266
    %v4643 = vunpack.c.l.b16 %v3267
    %v4644 = vunpack.c.l.b16 %v3268
    %v4645 = vunpack.c.h.b16 %v3268
    %v4646 = vunpack.c.l.b16 %v3269
    %v4647 = vunpack.c.h.b16 %v3269
    %v4648 = vunpack.c.l.b16 %v3270
    %v4649 = vunpack.c.h.b16 %v3270
    %v4650 = vunpack.c.l.b16 %v3271
    %v4651 = vunpack.c.l.b16 %v3272
    %v4652 = vunpack.c.h.b16 %v3272
    %v4653 = vunpack.c.l.b16 %v3273
    %v4654 = vunpack.c.h.b16 %v3273
    %v4655 = vunpack.c.l.b16 %v3274
    %v4656 = vunpack.c.h.b16 %v3274
    %v4657 = vunpack.c.l.b16 %v3275
    %v4658 = vunpack.c.l.b16 %v3276
    %v4659 = vunpack.c.h.b16 %v3276
    %v4660 = vunpack.c.l.b16 %v3277
    %v4661 = vunpack.c.h.b16 %v3277
    %v4662 = vunpack.c.l.b16 %v3278
    %v4663 = vunpack.c.h.b16 %v3278
    %v4664 = vunpack.c.l.b16 %v3279
    %v4665 = vunpack.c.l.b16 %v3280
    %v4666 = vunpack.c.h.b16 %v3280
    %v4667 = vunpack.c.l.b16 %v3281
    %v4668 = vunpack.c.h.b16 %v3281
    %v4669 = vunpack.c.l.b16 %v3282
    %v4670 = vunpack.c.h.b16 %v3282
    %v4671 = vunpack.c.l.b16 %v3283
    %v4672 = vunpack.c.l.b16 %v3284
    %v4673 = vunpack.c.h.b16 %v3284
    %v4674 = vunpack.c.l.b16 %v3285
    %v4675 = vunpack.c.h.b16 %v3285
    %v4676 = vunpack.c.l.b16 %v3286
    %v4677 = vunpack.c.h.b16 %v3286
    %v4678 = vunpack.c.l.b16 %v3287
    %v4679 = vunpack.c.l.b16 %v3288
    %v4680 = vunpack.c.h.b16 %v3288
    %v4681 = vunpack.c.l.b16 %v3289
    %v4682 = vunpack.c.h.b16 %v3289
    %v4683 = vunpack.c.l.b16 %v3290
    %v4684 = vunpack.c.h.b16 %v3290
    %v4685 = vunpack.c.l.b16 %v3291
    %v4686 = vunpack.c.l.b16 %v3292
    %v4687 = vunpack.c.h.b16 %v3292
    %v4688 = vunpack.c.l.b16 %v3293
    %v4689 = vunpack.c.h.b16 %v3293
    %v4690 = vunpack.c.l.b16 %v3294
    %v4691 = vunpack.c.h.b16 %v3294
    %v4692 = vunpack.c.l.b16 %v3295
    %v4693 = vunpack.c.l.b16 %v3296
    %v4694 = vunpack.c.h.b16 %v3296
    %v4695 = vunpack.c.l.b16 %v3297
    %v4696 = vunpack.c.h.b16 %v3297
    %v4697 = vunpack.c.l.b16 %v3298
    %v4698 = vunpack.c.h.b16 %v3298
    %v4699 = vunpack.c.l.b16 %v3299
    %v4700 = vunpack.c.l.b16 %v3300
    %v4701 = vunpack.c.h.b16 %v3300
    %v4702 = vunpack.c.l.b16 %v3301
    %v4703 = vunpack.c.h.b16 %v3301
    %v4704 = vunpack.c.l.b16 %v3302
    %v4705 = vunpack.c.h.b16 %v3302
    %v4706 = vunpack.c.l.b16 %v3303
    %v4707 = vunpack.c.l.b16 %v3304
    %v4708 = vunpack.c.h.b16 %v3304
    %v4709 = vunpack.c.l.b16 %v3305
    %v4710 = vunpack.c.h.b16 %v3305
    %v4711 = vunpack.c.l.b16 %v3306
    %v4712 = vunpack.c.h.b16 %v3306
    %v4713 = vunpack.c.l.b16 %v3307
    %v4714 = vunpack.c.l.b16 %v3308
    %v4715 = vunpack.c.h.b16 %v3308
    %v4716 = vunpack.c.l.b16 %v3309
    %v4717 = vunpack.c.h.b16 %v3309
    %v4718 = vunpack.c.l.b16 %v3310
    %v4719 = vunpack.c.h.b16 %v3310
    %v4720 = vunpack.c.l.b16 %v3311
    %v4721 = vunpack.c.l.b16 %v3312
    %v4722 = vunpack.c.h.b16 %v3312
    %v4723 = vunpack.c.l.b16 %v3313
    %v4724 = vunpack.c.h.b16 %v3313
    %v4725 = vunpack.c.l.b16 %v3314
    %v4726 = vunpack.c.h.b16 %v3314
    %v4727 = vunpack.c.l.b16 %v3315
    %v4728 = vunpack.c.l.b16 %v3316
    %v4729 = vunpack.c.h.b16 %v3316
    %v4730 = vunpack.c.l.b16 %v3317
    %v4731 = vunpack.c.h.b16 %v3317
    %v4732 = vunpack.c.l.b16 %v3318
    %v4733 = vunpack.c.h.b16 %v3318
    %v4734 = vunpack.c.l.b16 %v3319
    %v4735 = vunpack.c.l.b16 %v3320
    %v4736 = vunpack.c.h.b16 %v3320
    %v4737 = vunpack.c.l.b16 %v3321
    %v4738 = vunpack.c.h.b16 %v3321
    %v4739 = vunpack.c.l.b16 %v3322
    %v4740 = vunpack.c.h.b16 %v3322
    %v4741 = vunpack.c.l.b16 %v3323
    %v4742 = vunpack.c.l.b16 %v3324
    %v4743 = vunpack.c.h.b16 %v3324
    %v4744 = vunpack.c.l.b16 %v3325
    %v4745 = vunpack.c.h.b16 %v3325
    %v4746 = vunpack.c.l.b16 %v3326
    %v4747 = vunpack.c.h.b16 %v3326
    %v4748 = vunpack.c.l.b16 %v3327
    %v4749 = vunpack.c.l.b16 %v3328
    %v4750 = vunpack.c.h.b16 %v3328
    %v4751 = vunpack.c.l.b16 %v3329
    %v4752 = vunpack.c.h.b16 %v3329
    %v4753 = vunpack.c.l.b16 %v3330
    %v4754 = vunpack.c.h.b16 %v3330
    %v4755 = vunpack.c.l.b16 %v3331
    %v4756 = vunpack.c.l.b16 %v3332
    %v4757 = vunpack.c.h.b16 %v3332
    %v4758 = vunpack.c.l.b16 %v3333
    %v4759 = vunpack.c.h.b16 %v3333
    %v4760 = vunpack.c.l.b16 %v3334
    %v4761 = vunpack.c.h.b16 %v3334
    %v4762 = vunpack.c.l.b16 %v3335
    %v4763 = vunpack.c.l.b16 %v3336
    %v4764 = vunpack.c.h.b16 %v3336
    %v4765 = vunpack.c.l.b16 %v3337
    %v4766 = vunpack.c.h.b16 %v3337
    %v4767 = vunpack.c.l.b16 %v3338
    %v4768 = vunpack.c.h.b16 %v3338
    %v4769 = vunpack.c.l.b16 %v3339
    %v4770 = vunpack.c.l.b16 %v3340
    %v4771 = vunpack.c.h.b16 %v3340
    %v4772 = vunpack.c.l.b16 %v3341
    %v4773 = vunpack.c.h.b16 %v3341
    %v4774 = vunpack.c.l.b16 %v3342
    %v4775 = vunpack.c.h.b16 %v3342
    %v4776 = vunpack.c.l.b16 %v3343
    %v4777 = vunpack.c.l.b16 %v3344
    %v4778 = vunpack.c.h.b16 %v3344
    %v4779 = vunpack.c.l.b16 %v3345
    %v4780 = vunpack.c.h.b16 %v3345
    %v4781 = vunpack.c.l.b16 %v3346
    %v4782 = vunpack.c.h.b16 %v3346
    %v4783 = vunpack.c.l.b16 %v3347
    %v4784 = vunpack.c.l.b16 %v3348
    %v4785 = vunpack.c.h.b16 %v3348
    %v4786 = vunpack.c.l.b16 %v3349
    %v4787 = vunpack.c.h.b16 %v3349
    %v4788 = vunpack.c.l.b16 %v3350
    %v4789 = vunpack.c.h.b16 %v3350
    %v4790 = vunpack.c.l.b16 %v3351
    %v4791 = vunpack.c.l.b16 %v3352
    %v4792 = vunpack.c.h.b16 %v3352
    %v4793 = vunpack.c.l.b16 %v3353
    %v4794 = vunpack.c.h.b16 %v3353
    %v4795 = vunpack.c.l.b16 %v3354
    %v4796 = vunpack.c.h.b16 %v3354
    %v4797 = vunpack.c.l.b16 %v3355
    %v4798 = vunpack.c.l.b16 %v3356
    %v4799 = vunpack.c.h.b16 %v3356
    %v4800 = vunpack.c.l.b16 %v3357
    %v4801 = vunpack.c.h.b16 %v3357
    %v4802 = vunpack.c.l.b16 %v3358
    %v4803 = vunpack.c.h.b16 %v3358
    %v4804 = vunpack.c.l.b16 %v3359
    %v4805 = vpack.c.b16 %v3916, %v3909
    %v4806 = vpack.c.b16 %v3917, %v3910
    %v4807 = vpack.c.b16 %v3918, %v3911
    %v4808 = vpack.c.b16 %v3919, %v3912
    %v4809 = vpack.c.b16 %v3920, %v3913
    %v4810 = vpack.c.b16 %v3921, %v3914
    %v4811 = vpack.c.b16 %v3922, %v3915
    %v4812 = vpack.c.b16 %v3930, %v3923
    %v4813 = vpack.c.b16 %v3931, %v3924
    %v4814 = vpack.c.b16 %v3932, %v3925
    %v4815 = vpack.c.b16 %v3933, %v3926
    %v4816 = vpack.c.b16 %v3934, %v3927
    %v4817 = vpack.c.b16 %v3935, %v3928
    %v4818 = vpack.c.b16 %v3936, %v3929
    %v4819 = vpack.c.b16 %v3944, %v3937
    %v4820 = vpack.c.b16 %v3945, %v3938
    %v4821 = vpack.c.b16 %v3946, %v3939
    %v4822 = vpack.c.b16 %v3947, %v3940
    %v4823 = vpack.c.b16 %v3948, %v3941
    %v4824 = vpack.c.b16 %v3949, %v3942
    %v4825 = vpack.c.b16 %v3950, %v3943
    %v4826 = vpack.c.b16 %v3958, %v3951
    %v4827 = vpack.c.b16 %v3959, %v3952
    %v4828 = vpack.c.b16 %v3960, %v3953
    %v4829 = vpack.c.b16 %v3961, %v3954
    %v4830 = vpack.c.b16 %v3962, %v3955
    %v4831 = vpack.c.b16 %v3963, %v3956
    %v4832 = vpack.c.b16 %v3964, %v3957
    %v4833 = vpack.c.b16 %v3972, %v3965
    %v4834 = vpack.c.b16 %v3973, %v3966
    %v4835 = vpack.c.b16 %v3974, %v3967
    %v4836 = vpack.c.b16 %v3975, %v3968
    %v4837 = vpack.c.b16 %v3976, %v3969
    %v4838 = vpack.c.b16 %v3977, %v3970
    %v4839 = vpack.c.b16 %v3978, %v3971
    %v4840 = vpack.c.b16 %v3986, %v3979
    %v4841 = vpack.c.b16 %v3987, %v3980
    %v4842 = vpack.c.b16 %v3988, %v3981
    %v4843 = vpack.c.b16 %v3989, %v3982
    %v4844 = vpack.c.b16 %v3990, %v3983
    %v4845 = vpack.c.b16 %v3991, %v3984
    %v4846 = vpack.c.b16 %v3992, %v3985
    %v4847 = vpack.c.b16 %v4000, %v3993
    %v4848 = vpack.c.b16 %v4001, %v3994
    %v4849 = vpack.c.b16 %v4002, %v3995
    %v4850 = vpack.c.b16 %v4003, %v3996
    %v4851 = vpack.c.b16 %v4004, %v3997
    %v4852 = vpack.c.b16 %v4005, %v3998
    %v4853 = vpack.c.b16 %v4006, %v3999
    %v4854 = vpack.c.b16 %v4014, %v4007
    %v4855 = vpack.c.b16 %v4015, %v4008
    %v4856 = vpack.c.b16 %v4016, %v4009
    %v4857 = vpack.c.b16 %v4017, %v4010
    %v4858 = vpack.c.b16 %v4018, %v4011
    %v4859 = vpack.c.b16 %v4019, %v4012
    %v4860 = vpack.c.b16 %v4020, %v4013
    %v4861 = vpack.c.b16 %v4028, %v4021
    %v4862 = vpack.c.b16 %v4029, %v4022
    %v4863 = vpack.c.b16 %v4030, %v4023
    %v4864 = vpack.c.b16 %v4031, %v4024
    %v4865 = vpack.c.b16 %v4032, %v4025
    %v4866 = vpack.c.b16 %v4033, %v4026
    %v4867 = vpack.c.b16 %v4034, %v4027
    %v4868 = vpack.c.b16 %v4042, %v4035
    %v4869 = vpack.c.b16 %v4043, %v4036
    %v4870 = vpack.c.b16 %v4044, %v4037
    %v4871 = vpack.c.b16 %v4045, %v4038
    %v4872 = vpack.c.b16 %v4046, %v4039
    %v4873 = vpack.c.b16 %v4047, %v4040
    %v4874 = vpack.c.b16 %v4048, %v4041
    %v4875 = vpack.c.b16 %v4056, %v4049
    %v4876 = vpack.c.b16 %v4057, %v4050
    %v4877 = vpack.c.b16 %v4058, %v4051
    %v4878 = vpack.c.b16 %v4059, %v4052
    %v4879 = vpack.c.b16 %v4060, %v4053
    %v4880 = vpack.c.b16 %v4061, %v4054
    %v4881 = vpack.c.b16 %v4062, %v4055
    %v4882 = vpack.c.b16 %v4070, %v4063
    %v4883 = vpack.c.b16 %v4071, %v4064
    %v4884 = vpack.c.b16 %v4072, %v4065
    %v4885 = vpack.c.b16 %v4073, %v4066
    %v4886 = vpack.c.b16 %v4074, %v4067
    %v4887 = vpack.c.b16 %v4075, %v4068
    %v4888 = vpack.c.b16 %v4076, %v4069
    %v4889 = vpack.c.b16 %v4084, %v4077
    %v4890 = vpack.c.b16 %v4085, %v4078
    %v4891 = vpack.c.b16 %v4086, %v4079
    %v4892 = vpack.c.b16 %v4087, %v4080
    %v4893 = vpack.c.b16 %v4088, %v4081
    %v4894 = vpack.c.b16 %v4089, %v4082
    %v4895 = vpack.c.b16 %v4090, %v4083
    %v4896 = vpack.c.b16 %v4098, %v4091
    %v4897 = vpack.c.b16 %v4099, %v4092
    %v4898 = vpack.c.b16 %v4100, %v4093
    %v4899 = vpack.c.b16 %v4101, %v4094
    %v4900 = vpack.c.b16 %v4102, %v4095
    %v4901 = vpack.c.b16 %v4103, %v4096
    %v4902 = vpack.c.b16 %v4104, %v4097
    %v4903 = vpack.c.b16 %v4112, %v4105
    %v4904 = vpack.c.b16 %v4113, %v4106
    %v4905 = vpack.c.b16 %v4114, %v4107
    %v4906 = vpack.c.b16 %v4115, %v4108
    %v4907 = vpack.c.b16 %v4116, %v4109
    %v4908 = vpack.c.b16 %v4117, %v4110
    %v4909 = vpack.c.b16 %v4118, %v4111
    %v4910 = vpack.c.b16 %v4126, %v4119
    %v4911 = vpack.c.b16 %v4127, %v4120
    %v4912 = vpack.c.b16 %v4128, %v4121
    %v4913 = vpack.c.b16 %v4129, %v4122
    %v4914 = vpack.c.b16 %v4130, %v4123
    %v4915 = vpack.c.b16 %v4131, %v4124
    %v4916 = vpack.c.b16 %v4132, %v4125
    %v4917 = vpack.c.b16 %v4140, %v4133
    %v4918 = vpack.c.b16 %v4141, %v4134
    %v4919 = vpack.c.b16 %v4142, %v4135
    %v4920 = vpack.c.b16 %v4143, %v4136
    %v4921 = vpack.c.b16 %v4144, %v4137
    %v4922 = vpack.c.b16 %v4145, %v4138
    %v4923 = vpack.c.b16 %v4146, %v4139
    %v4924 = vpack.c.b16 %v4154, %v4147
    %v4925 = vpack.c.b16 %v4155, %v4148
    %v4926 = vpack.c.b16 %v4156, %v4149
    %v4927 = vpack.c.b16 %v4157, %v4150
    %v4928 = vpack.c.b16 %v4158, %v4151
    %v4929 = vpack.c.b16 %v4159, %v4152
    %v4930 = vpack.c.b16 %v4160, %v4153
    %v4931 = vpack.c.b16 %v4168, %v4161
    %v4932 = vpack.c.b16 %v4169, %v4162
    %v4933 = vpack.c.b16 %v4170, %v4163
    %v4934 = vpack.c.b16 %v4171, %v4164
    %v4935 = vpack.c.b16 %v4172, %v4165
    %v4936 = vpack.c.b16 %v4173, %v4166
    %v4937 = vpack.c.b16 %v4174, %v4167
    %v4938 = vpack.c.b16 %v4182, %v4175
    %v4939 = vpack.c.b16 %v4183, %v4176
    %v4940 = vpack.c.b16 %v4184, %v4177
    %v4941 = vpack.c.b16 %v4185, %v4178
    %v4942 = vpack.c.b16 %v4186, %v4179
    %v4943 = vpack.c.b16 %v4187, %v4180
    %v4944 = vpack.c.b16 %v4188, %v4181
    %v4945 = vpack.c.b16 %v4196, %v4189
    %v4946 = vpack.c.b16 %v4197, %v4190
    %v4947 = vpack.c.b16 %v4198, %v4191
    %v4948 = vpack.c.b16 %v4199, %v4192
    %v4949 = vpack.c.b16 %v4200, %v4193
    %v4950 = vpack.c.b16 %v4201, %v4194
    %v4951 = vpack.c.b16 %v4202, %v4195
    %v4952 = vpack.c.b16 %v4210, %v4203
    %v4953 = vpack.c.b16 %v4211, %v4204
    %v4954 = vpack.c.b16 %v4212, %v4205
    %v4955 = vpack.c.b16 %v4213, %v4206
    %v4956 = vpack.c.b16 %v4214, %v4207
    %v4957 = vpack.c.b16 %v4215, %v4208
    %v4958 = vpack.c.b16 %v4216, %v4209
    %v4959 = vpack.c.b16 %v4224, %v4217
    %v4960 = vpack.c.b16 %v4225, %v4218
    %v4961 = vpack.c.b16 %v4226, %v4219
    %v4962 = vpack.c.b16 %v4227, %v4220
    %v4963 = vpack.c.b16 %v4228, %v4221
    %v4964 = vpack.c.b16 %v4229, %v4222
    %v4965 = vpack.c.b16 %v4230, %v4223
    %v4966 = vpack.c.b16 %v4238, %v4231
    %v4967 = vpack.c.b16 %v4239, %v4232
    %v4968 = vpack.c.b16 %v4240, %v4233
    %v4969 = vpack.c.b16 %v4241, %v4234
    %v4970 = vpack.c.b16 %v4242, %v4235
    %v4971 = vpack.c.b16 %v4243, %v4236
    %v4972 = vpack.c.b16 %v4244, %v4237
    %v4973 = vpack.c.b16 %v4252, %v4245
    %v4974 = vpack.c.b16 %v4253, %v4246
    %v4975 = vpack.c.b16 %v4254, %v4247
    %v4976 = vpack.c.b16 %v4255, %v4248
    %v4977 = vpack.c.b16 %v4256, %v4249
    %v4978 = vpack.c.b16 %v4257, %v4250
    %v4979 = vpack.c.b16 %v4258, %v4251
    %v4980 = vpack.c.b16 %v4266, %v4259
    %v4981 = vpack.c.b16 %v4267, %v4260
    %v4982 = vpack.c.b16 %v4268, %v4261
    %v4983 = vpack.c.b16 %v4269, %v4262
    %v4984 = vpack.c.b16 %v4270, %v4263
    %v4985 = vpack.c.b16 %v4271, %v4264
    %v4986 = vpack.c.b16 %v4272, %v4265
    %v4987 = vpack.c.b16 %v4280, %v4273
    %v4988 = vpack.c.b16 %v4281, %v4274
    %v4989 = vpack.c.b16 %v4282, %v4275
    %v4990 = vpack.c.b16 %v4283, %v4276
    %v4991 = vpack.c.b16 %v4284, %v4277
    %v4992 = vpack.c.b16 %v4285, %v4278
    %v4993 = vpack.c.b16 %v4286, %v4279
    %v4994 = vpack.c.b16 %v4294, %v4287
    %v4995 = vpack.c.b16 %v4295, %v4288
    %v4996 = vpack.c.b16 %v4296, %v4289
    %v4997 = vpack.c.b16 %v4297, %v4290
    %v4998 = vpack.c.b16 %v4298, %v4291
    %v4999 = vpack.c.b16 %v4299, %v4292
    %v5000 = vpack.c.b16 %v4300, %v4293
    %v5001 = vpack.c.b16 %v4308, %v4301
    %v5002 = vpack.c.b16 %v4309, %v4302
    %v5003 = vpack.c.b16 %v4310, %v4303
    %v5004 = vpack.c.b16 %v4311, %v4304
    %v5005 = vpack.c.b16 %v4312, %v4305
    %v5006 = vpack.c.b16 %v4313, %v4306
    %v5007 = vpack.c.b16 %v4314, %v4307
    %v5008 = vpack.c.b16 %v4322, %v4315
    %v5009 = vpack.c.b16 %v4323, %v4316
    %v5010 = vpack.c.b16 %v4324, %v4317
    %v5011 = vpack.c.b16 %v4325, %v4318
    %v5012 = vpack.c.b16 %v4326, %v4319
    %v5013 = vpack.c.b16 %v4327, %v4320
    %v5014 = vpack.c.b16 %v4328, %v4321
    %v5015 = vpack.c.b16 %v4336, %v4329
    %v5016 = vpack.c.b16 %v4337, %v4330
    %v5017 = vpack.c.b16 %v4338, %v4331
    %v5018 = vpack.c.b16 %v4339, %v4332
    %v5019 = vpack.c.b16 %v4340, %v4333
    %v5020 = vpack.c.b16 %v4341, %v4334
    %v5021 = vpack.c.b16 %v4342, %v4335
    %v5022 = vpack.c.b16 %v4350, %v4343
    %v5023 = vpack.c.b16 %v4351, %v4344
    %v5024 = vpack.c.b16 %v4352, %v4345
    %v5025 = vpack.c.b16 %v4353, %v4346
    %v5026 = vpack.c.b16 %v4354, %v4347
    %v5027 = vpack.c.b16 %v4355, %v4348
    %v5028 = vpack.c.b16 %v4356, %v4349
    %v5029 = vpack.c.b16 %v4364, %v4357
    %v5030 = vpack.c.b16 %v4365, %v4358
    %v5031 = vpack.c.b16 %v4366, %v4359
    %v5032 = vpack.c.b16 %v4367, %v4360
    %v5033 = vpack.c.b16 %v4368, %v4361
    %v5034 = vpack.c.b16 %v4369, %v4362
    %v5035 = vpack.c.b16 %v4370, %v4363
    %v5036 = vpack.c.b16 %v4378, %v4371
    %v5037 = vpack.c.b16 %v4379, %v4372
    %v5038 = vpack.c.b16 %v4380, %v4373
    %v5039 = vpack.c.b16 %v4381, %v4374
    %v5040 = vpack.c.b16 %v4382, %v4375
    %v5041 = vpack.c.b16 %v4383, %v4376
    %v5042 = vpack.c.b16 %v4384, %v4377
    %v5043 = vpack.c.b16 %v4392, %v4385
    %v5044 = vpack.c.b16 %v4393, %v4386
    %v5045 = vpack.c.b16 %v4394, %v4387
    %v5046 = vpack.c.b16 %v4395, %v4388
    %v5047 = vpack.c.b16 %v4396, %v4389
    %v5048 = vpack.c.b16 %v4397, %v4390
    %v5049 = vpack.c.b16 %v4398, %v4391
    %v5050 = vpack.c.b16 %v4406, %v4399
    %v5051 = vpack.c.b16 %v4407, %v4400
    %v5052 = vpack.c.b16 %v4408, %v4401
    %v5053 = vpack.c.b16 %v4409, %v4402
    %v5054 = vpack.c.b16 %v4410, %v4403
    %v5055 = vpack.c.b16 %v4411, %v4404
    %v5056 = vpack.c.b16 %v4412, %v4405
    %v5057 = vpack.c.b16 %v4420, %v4413
    %v5058 = vpack.c.b16 %v4421, %v4414
    %v5059 = vpack.c.b16 %v4422, %v4415
    %v5060 = vpack.c.b16 %v4423, %v4416
    %v5061 = vpack.c.b16 %v4424, %v4417
    %v5062 = vpack.c.b16 %v4425, %v4418
    %v5063 = vpack.c.b16 %v4426, %v4419
    %v5064 = vpack.c.b16 %v4434, %v4427
    %v5065 = vpack.c.b16 %v4435, %v4428
    %v5066 = vpack.c.b16 %v4436, %v4429
    %v5067 = vpack.c.b16 %v4437, %v4430
    %v5068 = vpack.c.b16 %v4438, %v4431
    %v5069 = vpack.c.b16 %v4439, %v4432
    %v5070 = vpack.c.b16 %v4440, %v4433
    %v5071 = vpack.c.b16 %v4448, %v4441
    %v5072 = vpack.c.b16 %v4449, %v4442
    %v5073 = vpack.c.b16 %v4450, %v4443
    %v5074 = vpack.c.b16 %v4451, %v4444
    %v5075 = vpack.c.b16 %v4452, %v4445
    %v5076 = vpack.c.b16 %v4453, %v4446
    %v5077 = vpack.c.b16 %v4454, %v4447
    %v5078 = vpack.c.b16 %v4462, %v4455
    %v5079 = vpack.c.b16 %v4463, %v4456
    %v5080 = vpack.c.b16 %v4464, %v4457
    %v5081 = vpack.c.b16 %v4465, %v4458
    %v5082 = vpack.c.b16 %v4466, %v4459
    %v5083 = vpack.c.b16 %v4467, %v4460
    %v5084 = vpack.c.b16 %v4468, %v4461
    %v5085 = vpack.c.b16 %v4476, %v4469
    %v5086 = vpack.c.b16 %v4477, %v4470
    %v5087 = vpack.c.b16 %v4478, %v4471
    %v5088 = vpack.c.b16 %v4479, %v4472
    %v5089 = vpack.c.b16 %v4480, %v4473
    %v5090 = vpack.c.b16 %v4481, %v4474
    %v5091 = vpack.c.b16 %v4482, %v4475
    %v5092 = vpack.c.b16 %v4490, %v4483
    %v5093 = vpack.c.b16 %v4491, %v4484
    %v5094 = vpack.c.b16 %v4492, %v4485
    %v5095 = vpack.c.b16 %v4493, %v4486
    %v5096 = vpack.c.b16 %v4494, %v4487
    %v5097 = vpack.c.b16 %v4495, %v4488
    %v5098 = vpack.c.b16 %v4496, %v4489
    %v5099 = vpack.c.b16 %v4504, %v4497
    %v5100 = vpack.c.b16 %v4505, %v4498
    %v5101 = vpack.c.b16 %v4506, %v4499
    %v5102 = vpack.c.b16 %v4507, %v4500
    %v5103 = vpack.c.b16 %v4508, %v4501
    %v5104 = vpack.c.b16 %v4509, %v4502
    %v5105 = vpack.c.b16 %v4510, %v4503
    %v5106 = vpack.c.b16 %v4518, %v4511
    %v5107 = vpack.c.b16 %v4519, %v4512
    %v5108 = vpack.c.b16 %v4520, %v4513
    %v5109 = vpack.c.b16 %v4521, %v4514
    %v5110 = vpack.c.b16 %v4522, %v4515
    %v5111 = vpack.c.b16 %v4523, %v4516
    %v5112 = vpack.c.b16 %v4524, %v4517
    %v5113 = vpack.c.b16 %v4532, %v4525
    %v5114 = vpack.c.b16 %v4533, %v4526
    %v5115 = vpack.c.b16 %v4534, %v4527
    %v5116 = vpack.c.b16 %v4535, %v4528
    %v5117 = vpack.c.b16 %v4536, %v4529
    %v5118 = vpack.c.b16 %v4537, %v4530
    %v5119 = vpack.c.b16 %v4538, %v4531
    %v5120 = vpack.c.b16 %v4546, %v4539
    %v5121 = vpack.c.b16 %v4547, %v4540
    %v5122 = vpack.c.b16 %v4548, %v4541
    %v5123 = vpack.c.b16 %v4549, %v4542
    %v5124 = vpack.c.b16 %v4550, %v4543
    %v5125 = vpack.c.b16 %v4551, %v4544
    %v5126 = vpack.c.b16 %v4552, %v4545
    %v5127 = vpack.c.b16 %v4560, %v4553
    %v5128 = vpack.c.b16 %v4561, %v4554
    %v5129 = vpack.c.b16 %v4562, %v4555
    %v5130 = vpack.c.b16 %v4563, %v4556
    %v5131 = vpack.c.b16 %v4564, %v4557
    %v5132 = vpack.c.b16 %v4565, %v4558
    %v5133 = vpack.c.b16 %v4566, %v4559
    %v5134 = vpack.c.b16 %v4574, %v4567
    %v5135 = vpack.c.b16 %v4575, %v4568
    %v5136 = vpack.c.b16 %v4576, %v4569
    %v5137 = vpack.c.b16 %v4577, %v4570
    %v5138 = vpack.c.b16 %v4578, %v4571
    %v5139 = vpack.c.b16 %v4579, %v4572
    %v5140 = vpack.c.b16 %v4580, %v4573
    %v5141 = vpack.c.b16 %v4588, %v4581
    %v5142 = vpack.c.b16 %v4589, %v4582
    %v5143 = vpack.c.b16 %v4590, %v4583
    %v5144 = vpack.c.b16 %v4591, %v4584
    %v5145 = vpack.c.b16 %v4592, %v4585
    %v5146 = vpack.c.b16 %v4593, %v4586
    %v5147 = vpack.c.b16 %v4594, %v4587
    %v5148 = vpack.c.b16 %v4602, %v4595
    %v5149 = vpack.c.b16 %v4603, %v4596
    %v5150 = vpack.c.b16 %v4604, %v4597
    %v5151 = vpack.c.b16 %v4605, %v4598
    %v5152 = vpack.c.b16 %v4606, %v4599
    %v5153 = vpack.c.b16 %v4607, %v4600
    %v5154 = vpack.c.b16 %v4608, %v4601
    %v5155 = vpack.c.b16 %v4616, %v4609
    %v5156 = vpack.c.b16 %v4617, %v4610
    %v5157 = vpack.c.b16 %v4618, %v4611
    %v5158 = vpack.c.b16 %v4619, %v4612
    %v5159 = vpack.c.b16 %v4620, %v4613
    %v5160 = vpack.c.b16 %v4621, %v4614
    %v5161 = vpack.c.b16 %v4622, %v4615
    %v5162 = vpack.c.b16 %v4630, %v4623
    %v5163 = vpack.c.b16 %v4631, %v4624
    %v5164 = vpack.c.b16 %v4632, %v4625
    %v5165 = vpack.c.b16 %v4633, %v4626
    %v5166 = vpack.c.b16 %v4634, %v4627
    %v5167 = vpack.c.b16 %v4635, %v4628
    %v5168 = vpack.c.b16 %v4636, %v4629
    %v5169 = vpack.c.b16 %v4644, %v4637
    %v5170 = vpack.c.b16 %v4645, %v4638
    %v5171 = vpack.c.b16 %v4646, %v4639
    %v5172 = vpack.c.b16 %v4647, %v4640
    %v5173 = vpack.c.b16 %v4648, %v4641
    %v5174 = vpack.c.b16 %v4649, %v4642
    %v5175 = vpack.c.b16 %v4650, %v4643
    %v5176 = vpack.c.b16 %v4658, %v4651
    %v5177 = vpack.c.b16 %v4659, %v4652
    %v5178 = vpack.c.b16 %v4660, %v4653
    %v5179 = vpack.c.b16 %v4661, %v4654
    %v5180 = vpack.c.b16 %v4662, %v4655
    %v5181 = vpack.c.b16 %v4663, %v4656
    %v5182 = vpack.c.b16 %v4664, %v4657
    %v5183 = vpack.c.b16 %v4672, %v4665
    %v5184 = vpack.c.b16 %v4673, %v4666
    %v5185 = vpack.c.b16 %v4674, %v4667
    %v5186 = vpack.c.b16 %v4675, %v4668
    %v5187 = vpack.c.b16 %v4676, %v4669
    %v5188 = vpack.c.b16 %v4677, %v4670
    %v5189 = vpack.c.b16 %v4678, %v4671
    %v5190 = vpack.c.b16 %v4686, %v4679
    %v5191 = vpack.c.b16 %v4687, %v4680
    %v5192 = vpack.c.b16 %v4688, %v4681
    %v5193 = vpack.c.b16 %v4689, %v4682
    %v5194 = vpack.c.b16 %v4690, %v4683
    %v5195 = vpack.c.b16 %v4691, %v4684
    %v5196 = vpack.c.b16 %v4692, %v4685
    %v5197 = vpack.c.b16 %v4700, %v4693
    %v5198 = vpack.c.b16 %v4701, %v4694
    %v5199 = vpack.c.b16 %v4702, %v4695
    %v5200 = vpack.c.b16 %v4703, %v4696
    %v5201 = vpack.c.b16 %v4704, %v4697
    %v5202 = vpack.c.b16 %v4705, %v4698
    %v5203 = vpack.c.b16 %v4706, %v4699
    %v5204 = vpack.c.b16 %v4714, %v4707
    %v5205 = vpack.c.b16 %v4715, %v4708
    %v5206 = vpack.c.b16 %v4716, %v4709
    %v5207 = vpack.c.b16 %v4717, %v4710
    %v5208 = vpack.c.b16 %v4718, %v4711
    %v5209 = vpack.c.b16 %v4719, %v4712
    %v5210 = vpack.c.b16 %v4720, %v4713
    %v5211 = vpack.c.b16 %v4728, %v4721
    %v5212 = vpack.c.b16 %v4729, %v4722
    %v5213 = vpack.c.b16 %v4730, %v4723
    %v5214 = vpack.c.b16 %v4731, %v4724
    %v5215 = vpack.c.b16 %v4732, %v4725
    %v5216 = vpack.c.b16 %v4733, %v4726
    %v5217 = vpack.c.b16 %v4734, %v4727
    %v5218 = vpack.c.b16 %v4742, %v4735
    %v5219 = vpack.c.b16 %v4743, %v4736
    %v5220 = vpack.c.b16 %v4744, %v4737
    %v5221 = vpack.c.b16 %v4745, %v4738
    %v5222 = vpack.c.b16 %v4746, %v4739
    %v5223 = vpack.c.b16 %v4747, %v4740
    %v5224 = vpack.c.b16 %v4748, %v4741
    %v5225 = vpack.c.b16 %v4756, %v4749
    %v5226 = vpack.c.b16 %v4757, %v4750
    %v5227 = vpack.c.b16 %v4758, %v4751
    %v5228 = vpack.c.b16 %v4759, %v4752
    %v5229 = vpack.c.b16 %v4760, %v4753
    %v5230 = vpack.c.b16 %v4761, %v4754
    %v5231 = vpack.c.b16 %v4762, %v4755
    %v5232 = vpack.c.b16 %v4770, %v4763
    %v5233 = vpack.c.b16 %v4771, %v4764
    %v5234 = vpack.c.b16 %v4772, %v4765
    %v5235 = vpack.c.b16 %v4773, %v4766
    %v5236 = vpack.c.b16 %v4774, %v4767
    %v5237 = vpack.c.b16 %v4775, %v4768
    %v5238 = vpack.c.b16 %v4776, %v4769
    %v5239 = vpack.c.b16 %v4784, %v4777
    %v5240 = vpack.c.b16 %v4785, %v4778
    %v5241 = vpack.c.b16 %v4786, %v4779
    %v5242 = vpack.c.b16 %v4787, %v4780
    %v5243 = vpack.c.b16 %v4788, %v4781
    %v5244 = vpack.c.b16 %v4789, %v4782
    %v5245 = vpack.c.b16 %v4790, %v4783
    %v5246 = vpack.c.b16 %v4798, %v4791
    %v5247 = vpack.c.b16 %v4799, %v4792
    %v5248 = vpack.c.b16 %v4800, %v4793
    %v5249 = vpack.c.b16 %v4801, %v4794
    %v5250 = vpack.c.b16 %v4802, %v4795
    %v5251 = vpack.c.b16 %v4803, %v4796
    %v5252 = vpack.c.b16 %v4804, %v4797
    %5701 = vmatprep.subr.bf16.mxu0 %v4855
    %5702 = vmatpush1.bf16.msra.mxu0 %v4854
    %5703 = vmatprep.subr.bf16.mxu0 %v4848
    %5704 = vmatpush1.bf16.msra.mxu0 %v4847
    %5705 = vmatprep.subr.bf16.mxu0 %v4841
    %5706 = vmatpush1.bf16.msra.mxu0 %v4840
    %5707 = vmatprep.subr.bf16.mxu0 %v4834
    %5708 = vmatpush1.bf16.msra.mxu0 %v4833
    %5709 = vmatprep.subr.bf16.mxu0 %v4827
    %5710 = vmatpush1.bf16.msra.mxu0 %v4826
    %5711 = vmatprep.subr.bf16.mxu0 %v4820
    %5712 = vmatpush1.bf16.msra.mxu0 %v4819
    %5713 = vmatprep.subr.bf16.mxu0 %v4813
    %5714 = vmatpush1.bf16.msra.mxu0 %v4812
    %5715 = vmatprep.subr.bf16.mxu0 %v4806
    %5716 = vmatpush1.bf16.msra.mxu0 %v4805
    %5717 = vmatprep.subr.bf16.mxu0 %v4911
    %5718 = vmatpush2.bf16.msra.mxu0 %v4910
    %5719 = vmatprep.subr.bf16.mxu0 %v4904
    %5720 = vmatpush2.bf16.msra.mxu0 %v4903
    %5721 = vmatprep.subr.bf16.mxu0 %v4897
    %5722 = vmatpush2.bf16.msra.mxu0 %v4896
    %5723 = vmatprep.subr.bf16.mxu0 %v4890
    %5724 = vmatpush2.bf16.msra.mxu0 %v4889
    %5725 = vmatprep.subr.bf16.mxu0 %v4883
    %5726 = vmatpush2.bf16.msra.mxu0 %v4882
    %5727 = vmatprep.subr.bf16.mxu0 %v4876
    %5728 = vmatpush2.bf16.msra.mxu0 %v4875
    %5729 = vmatprep.subr.bf16.mxu0 %v4869
    %5730 = vmatpush2.bf16.msra.mxu0 %v4868
    %5731 = vmatprep.subr.bf16.mxu0 %v4862
    %5732 = vmatpush2.bf16.msra.mxu0 %v4861
    %5733 = vmatprep.mubr.bf16.mxu0 %v2841
    %5734 = vmatmul.mubr.bf16.gmra.mxu0 %v2840
    %v5735 = vpop.f32.mrf.mxu0
    %v5736 = vadd.f32 %v3365, %v5735
    %v5737 = vpop.f32.mrf.mxu0
    %v5738 = vadd.f32 %v3369, %v5737
    %v5739 = vpop.f32.mrf.mxu0
    %v5740 = vpop.f32.mrf.mxu0
    %5741 = vdwg.mxu0
    %5742 = vmatprep.subr.bf16.mxu0 %v4967
    %5743 = vmatpush1.bf16.msra.mxu0 %v4966
    %5744 = vmatprep.subr.bf16.mxu0 %v4960
    %5745 = vmatpush1.bf16.msra.mxu0 %v4959
    %5746 = vmatprep.subr.bf16.mxu0 %v4953
    %5747 = vmatpush1.bf16.msra.mxu0 %v4952
    %5748 = vmatprep.subr.bf16.mxu0 %v4946
    %5749 = vmatpush1.bf16.msra.mxu0 %v4945
    %5750 = vmatprep.subr.bf16.mxu0 %v4939
    %5751 = vmatpush1.bf16.msra.mxu0 %v4938
    %5752 = vmatprep.subr.bf16.mxu0 %v4932
    %5753 = vmatpush1.bf16.msra.mxu0 %v4931
    %5754 = vmatprep.subr.bf16.mxu0 %v4925
    %5755 = vmatpush1.bf16.msra.mxu0 %v4924
    %5756 = vmatprep.subr.bf16.mxu0 %v4918
    %5757 = vmatpush1.bf16.msra.mxu0 %v4917
    %5758 = vmatprep.subr.bf16.mxu0 %v5023
    %5759 = vmatpush2.bf16.msra.mxu0 %v5022
    %5760 = vmatprep.subr.bf16.mxu0 %v5016
    %5761 = vmatpush2.bf16.msra.mxu0 %v5015
    %5762 = vmatprep.subr.bf16.mxu0 %v5009
    %5763 = vmatpush2.bf16.msra.mxu0 %v5008
    %5764 = vmatprep.subr.bf16.mxu0 %v5002
    %5765 = vmatpush2.bf16.msra.mxu0 %v5001
    %5766 = vmatprep.subr.bf16.mxu0 %v4995
    %5767 = vmatpush2.bf16.msra.mxu0 %v4994
    %5768 = vmatprep.subr.bf16.mxu0 %v4988
    %5769 = vmatpush2.bf16.msra.mxu0 %v4987
    %5770 = vmatprep.subr.bf16.mxu0 %v4981
    %5771 = vmatpush2.bf16.msra.mxu0 %v4980
    %5772 = vmatprep.subr.bf16.mxu0 %v4974
    %5773 = vmatpush2.bf16.msra.mxu0 %v4973
    %5774 = vmatprep.mubr.bf16.mxu0 %v2843
    %5775 = vmatmul.mubr.bf16.gmra.mxu0 %v2842
    %v5776 = vpop.f32.mrf.mxu0
    %v5777 = vadd.f32 %v5736, %v5776
    %v5778 = vpop.f32.mrf.mxu0
    %v5779 = vadd.f32 %v5738, %v5778
    %v5780 = vpop.f32.mrf.mxu0
    %v5781 = vpop.f32.mrf.mxu0
    %5782 = vdwg.mxu0
    %5783 = vmatprep.subr.bf16.mxu0 %v5079
    %5784 = vmatpush1.bf16.msra.mxu0 %v5078
    %5785 = vmatprep.subr.bf16.mxu0 %v5072
    %5786 = vmatpush1.bf16.msra.mxu0 %v5071
    %5787 = vmatprep.subr.bf16.mxu0 %v5065
    %5788 = vmatpush1.bf16.msra.mxu0 %v5064
    %5789 = vmatprep.subr.bf16.mxu0 %v5058
    %5790 = vmatpush1.bf16.msra.mxu0 %v5057
    %5791 = vmatprep.subr.bf16.mxu0 %v5051
    %5792 = vmatpush1.bf16.msra.mxu0 %v5050
    %5793 = vmatprep.subr.bf16.mxu0 %v5044
    %5794 = vmatpush1.bf16.msra.mxu0 %v5043
    %5795 = vmatprep.subr.bf16.mxu0 %v5037
    %5796 = vmatpush1.bf16.msra.mxu0 %v5036
    %5797 = vmatprep.subr.bf16.mxu0 %v5030
    %5798 = vmatpush1.bf16.msra.mxu0 %v5029
    %5799 = vmatprep.subr.bf16.mxu0 %v5135
    %5800 = vmatpush2.bf16.msra.mxu0 %v5134
    %5801 = vmatprep.subr.bf16.mxu0 %v5128
    %5802 = vmatpush2.bf16.msra.mxu0 %v5127
    %5803 = vmatprep.subr.bf16.mxu0 %v5121
    %5804 = vmatpush2.bf16.msra.mxu0 %v5120
    %5805 = vmatprep.subr.bf16.mxu0 %v5114
    %5806 = vmatpush2.bf16.msra.mxu0 %v5113
    %5807 = vmatprep.subr.bf16.mxu0 %v5107
    %5808 = vmatpush2.bf16.msra.mxu0 %v5106
    %5809 = vmatprep.subr.bf16.mxu0 %v5100
    %5810 = vmatpush2.bf16.msra.mxu0 %v5099
    %5811 = vmatprep.subr.bf16.mxu0 %v5093
    %5812 = vmatpush2.bf16.msra.mxu0 %v5092
    %5813 = vmatprep.subr.bf16.mxu0 %v5086
    %5814 = vmatpush2.bf16.msra.mxu0 %v5085
    %5815 = vmatprep.mubr.bf16.mxu0 %v2845
    %5816 = vmatmul.mubr.bf16.gmra.mxu0 %v2844
    %v5817 = vpop.f32.mrf.mxu0
    %v5818 = vadd.f32 %v5777, %v5817
    %v5819 = vpop.f32.mrf.mxu0
    %v5820 = vadd.f32 %v5779, %v5819
    %v5821 = vpop.f32.mrf.mxu0
    %v5822 = vpop.f32.mrf.mxu0
    %5823 = vdwg.mxu0
    %5824 = vmatprep.subr.bf16.mxu0 %v5191
    %5825 = vmatpush1.bf16.msra.mxu0 %v5190
    %5826 = vmatprep.subr.bf16.mxu0 %v5184
    %5827 = vmatpush1.bf16.msra.mxu0 %v5183
    %5828 = vmatprep.subr.bf16.mxu0 %v5177
    %5829 = vmatpush1.bf16.msra.mxu0 %v5176
    %5830 = vmatprep.subr.bf16.mxu0 %v5170
    %5831 = vmatpush1.bf16.msra.mxu0 %v5169
    %5832 = vmatprep.subr.bf16.mxu0 %v5163
    %5833 = vmatpush1.bf16.msra.mxu0 %v5162
    %5834 = vmatprep.subr.bf16.mxu0 %v5156
    %5835 = vmatpush1.bf16.msra.mxu0 %v5155
    %5836 = vmatprep.subr.bf16.mxu0 %v5149
    %5837 = vmatpush1.bf16.msra.mxu0 %v5148
    %5838 = vmatprep.subr.bf16.mxu0 %v5142
    %5839 = vmatpush1.bf16.msra.mxu0 %v5141
    %5840 = vmatprep.subr.bf16.mxu0 %v5247
    %5841 = vmatpush2.bf16.msra.mxu0 %v5246
    %5842 = vmatprep.subr.bf16.mxu0 %v5240
    %5843 = vmatpush2.bf16.msra.mxu0 %v5239
    %5844 = vmatprep.subr.bf16.mxu0 %v5233
    %5845 = vmatpush2.bf16.msra.mxu0 %v5232
    %5846 = vmatprep.subr.bf16.mxu0 %v5226
    %5847 = vmatpush2.bf16.msra.mxu0 %v5225
    %5848 = vmatprep.subr.bf16.mxu0 %v5219
    %5849 = vmatpush2.bf16.msra.mxu0 %v5218
    %5850 = vmatprep.subr.bf16.mxu0 %v5212
    %5851 = vmatpush2.bf16.msra.mxu0 %v5211
    %5852 = vmatprep.subr.bf16.mxu0 %v5205
    %5853 = vmatpush2.bf16.msra.mxu0 %v5204
    %5854 = vmatprep.subr.bf16.mxu0 %v5198
    %5855 = vmatpush2.bf16.msra.mxu0 %v5197
    %5856 = vmatprep.mubr.bf16.mxu0 %v2847
    %5857 = vmatmul.mubr.bf16.gmra.mxu0 %v2846
    %v5858 = vpop.f32.mrf.mxu0
    %v5859 = vadd.f32 %v5818, %v5858
    %v5860 = vpop.f32.mrf.mxu0
    %v5861 = vadd.f32 %v5820, %v5860
    %v5862 = vpop.f32.mrf.mxu0
    %v5863 = vpop.f32.mrf.mxu0
    %5864 = vdwg.mxu0
    %5865 = vmatprep.subr.bf16.mxu0 %v4857
    %5866 = vmatpush1.bf16.msra.mxu0 %v4856
    %5867 = vmatprep.subr.bf16.mxu0 %v4850
    %5868 = vmatpush1.bf16.msra.mxu0 %v4849
    %5869 = vmatprep.subr.bf16.mxu0 %v4843
    %5870 = vmatpush1.bf16.msra.mxu0 %v4842
    %5871 = vmatprep.subr.bf16.mxu0 %v4836
    %5872 = vmatpush1.bf16.msra.mxu0 %v4835
    %5873 = vmatprep.subr.bf16.mxu0 %v4829
    %5874 = vmatpush1.bf16.msra.mxu0 %v4828
    %5875 = vmatprep.subr.bf16.mxu0 %v4822
    %5876 = vmatpush1.bf16.msra.mxu0 %v4821
    %5877 = vmatprep.subr.bf16.mxu0 %v4815
    %5878 = vmatpush1.bf16.msra.mxu0 %v4814
    %5879 = vmatprep.subr.bf16.mxu0 %v4808
    %5880 = vmatpush1.bf16.msra.mxu0 %v4807
    %5881 = vmatprep.subr.bf16.mxu0 %v4913
    %5882 = vmatpush2.bf16.msra.mxu0 %v4912
    %5883 = vmatprep.subr.bf16.mxu0 %v4906
    %5884 = vmatpush2.bf16.msra.mxu0 %v4905
    %5885 = vmatprep.subr.bf16.mxu0 %v4899
    %5886 = vmatpush2.bf16.msra.mxu0 %v4898
    %5887 = vmatprep.subr.bf16.mxu0 %v4892
    %5888 = vmatpush2.bf16.msra.mxu0 %v4891
    %5889 = vmatprep.subr.bf16.mxu0 %v4885
    %5890 = vmatpush2.bf16.msra.mxu0 %v4884
    %5891 = vmatprep.subr.bf16.mxu0 %v4878
    %5892 = vmatpush2.bf16.msra.mxu0 %v4877
    %5893 = vmatprep.subr.bf16.mxu0 %v4871
    %5894 = vmatpush2.bf16.msra.mxu0 %v4870
    %5895 = vmatprep.subr.bf16.mxu0 %v4864
    %5896 = vmatpush2.bf16.msra.mxu0 %v4863
    %5897 = vmatprep.mubr.bf16.mxu0 %v2841
    %5898 = vmatmul.mubr.bf16.gmra.mxu0 %v2840
    %v5899 = vpop.f32.mrf.mxu0
    %v5900 = vadd.f32 %v3373, %v5899
    %v5901 = vpop.f32.mrf.mxu0
    %v5902 = vadd.f32 %v3377, %v5901
    %v5903 = vpop.f32.mrf.mxu0
    %v5904 = vpop.f32.mrf.mxu0
    %5905 = vdwg.mxu0
    %5906 = vmatprep.subr.bf16.mxu0 %v4969
    %5907 = vmatpush1.bf16.msra.mxu0 %v4968
    %5908 = vmatprep.subr.bf16.mxu0 %v4962
    %5909 = vmatpush1.bf16.msra.mxu0 %v4961
    %5910 = vmatprep.subr.bf16.mxu0 %v4955
    %5911 = vmatpush1.bf16.msra.mxu0 %v4954
    %5912 = vmatprep.subr.bf16.mxu0 %v4948
    %5913 = vmatpush1.bf16.msra.mxu0 %v4947
    %5914 = vmatprep.subr.bf16.mxu0 %v4941
    %5915 = vmatpush1.bf16.msra.mxu0 %v4940
    %5916 = vmatprep.subr.bf16.mxu0 %v4934
    %5917 = vmatpush1.bf16.msra.mxu0 %v4933
    %5918 = vmatprep.subr.bf16.mxu0 %v4927
    %5919 = vmatpush1.bf16.msra.mxu0 %v4926
    %5920 = vmatprep.subr.bf16.mxu0 %v4920
    %5921 = vmatpush1.bf16.msra.mxu0 %v4919
    %5922 = vmatprep.subr.bf16.mxu0 %v5025
    %5923 = vmatpush2.bf16.msra.mxu0 %v5024
    %5924 = vmatprep.subr.bf16.mxu0 %v5018
    %5925 = vmatpush2.bf16.msra.mxu0 %v5017
    %5926 = vmatprep.subr.bf16.mxu0 %v5011
    %5927 = vmatpush2.bf16.msra.mxu0 %v5010
    %5928 = vmatprep.subr.bf16.mxu0 %v5004
    %5929 = vmatpush2.bf16.msra.mxu0 %v5003
    %5930 = vmatprep.subr.bf16.mxu0 %v4997
    %5931 = vmatpush2.bf16.msra.mxu0 %v4996
    %5932 = vmatprep.subr.bf16.mxu0 %v4990
    %5933 = vmatpush2.bf16.msra.mxu0 %v4989
    %5934 = vmatprep.subr.bf16.mxu0 %v4983
    %5935 = vmatpush2.bf16.msra.mxu0 %v4982
    %5936 = vmatprep.subr.bf16.mxu0 %v4976
    %5937 = vmatpush2.bf16.msra.mxu0 %v4975
    %5938 = vmatprep.mubr.bf16.mxu0 %v2843
    %5939 = vmatmul.mubr.bf16.gmra.mxu0 %v2842
    %v5940 = vpop.f32.mrf.mxu0
    %v5941 = vadd.f32 %v5900, %v5940
    %v5942 = vpop.f32.mrf.mxu0
    %v5943 = vadd.f32 %v5902, %v5942
    %v5944 = vpop.f32.mrf.mxu0
    %v5945 = vpop.f32.mrf.mxu0
    %5946 = vdwg.mxu0
    %5947 = vmatprep.subr.bf16.mxu0 %v5081
    %5948 = vmatpush1.bf16.msra.mxu0 %v5080
    %5949 = vmatprep.subr.bf16.mxu0 %v5074
    %5950 = vmatpush1.bf16.msra.mxu0 %v5073
    %5951 = vmatprep.subr.bf16.mxu0 %v5067
    %5952 = vmatpush1.bf16.msra.mxu0 %v5066
    %5953 = vmatprep.subr.bf16.mxu0 %v5060
    %5954 = vmatpush1.bf16.msra.mxu0 %v5059
    %5955 = vmatprep.subr.bf16.mxu0 %v5053
    %5956 = vmatpush1.bf16.msra.mxu0 %v5052
    %5957 = vmatprep.subr.bf16.mxu0 %v5046
    %5958 = vmatpush1.bf16.msra.mxu0 %v5045
    %5959 = vmatprep.subr.bf16.mxu0 %v5039
    %5960 = vmatpush1.bf16.msra.mxu0 %v5038
    %5961 = vmatprep.subr.bf16.mxu0 %v5032
    %5962 = vmatpush1.bf16.msra.mxu0 %v5031
    %5963 = vmatprep.subr.bf16.mxu0 %v5137
    %5964 = vmatpush2.bf16.msra.mxu0 %v5136
    %5965 = vmatprep.subr.bf16.mxu0 %v5130
    %5966 = vmatpush2.bf16.msra.mxu0 %v5129
    %5967 = vmatprep.subr.bf16.mxu0 %v5123
    %5968 = vmatpush2.bf16.msra.mxu0 %v5122
    %5969 = vmatprep.subr.bf16.mxu0 %v5116
    %5970 = vmatpush2.bf16.msra.mxu0 %v5115
    %5971 = vmatprep.subr.bf16.mxu0 %v5109
    %5972 = vmatpush2.bf16.msra.mxu0 %v5108
    %5973 = vmatprep.subr.bf16.mxu0 %v5102
    %5974 = vmatpush2.bf16.msra.mxu0 %v5101
    %5975 = vmatprep.subr.bf16.mxu0 %v5095
    %5976 = vmatpush2.bf16.msra.mxu0 %v5094
    %5977 = vmatprep.subr.bf16.mxu0 %v5088
    %5978 = vmatpush2.bf16.msra.mxu0 %v5087
    %5979 = vmatprep.mubr.bf16.mxu0 %v2845
    %5980 = vmatmul.mubr.bf16.gmra.mxu0 %v2844
    %v5981 = vpop.f32.mrf.mxu0
    %v5982 = vadd.f32 %v5941, %v5981
    %v5983 = vpop.f32.mrf.mxu0
    %v5984 = vadd.f32 %v5943, %v5983
    %v5985 = vpop.f32.mrf.mxu0
    %v5986 = vpop.f32.mrf.mxu0
    %5987 = vdwg.mxu0
    %5988 = vmatprep.subr.bf16.mxu0 %v5193
    %5989 = vmatpush1.bf16.msra.mxu0 %v5192
    %5990 = vmatprep.subr.bf16.mxu0 %v5186
    %5991 = vmatpush1.bf16.msra.mxu0 %v5185
    %5992 = vmatprep.subr.bf16.mxu0 %v5179
    %5993 = vmatpush1.bf16.msra.mxu0 %v5178
    %5994 = vmatprep.subr.bf16.mxu0 %v5172
    %5995 = vmatpush1.bf16.msra.mxu0 %v5171
    %5996 = vmatprep.subr.bf16.mxu0 %v5165
    %5997 = vmatpush1.bf16.msra.mxu0 %v5164
    %5998 = vmatprep.subr.bf16.mxu0 %v5158
    %5999 = vmatpush1.bf16.msra.mxu0 %v5157
    %6000 = vmatprep.subr.bf16.mxu0 %v5151
    %6001 = vmatpush1.bf16.msra.mxu0 %v5150
    %6002 = vmatprep.subr.bf16.mxu0 %v5144
    %6003 = vmatpush1.bf16.msra.mxu0 %v5143
    %6004 = vmatprep.subr.bf16.mxu0 %v5249
    %6005 = vmatpush2.bf16.msra.mxu0 %v5248
    %6006 = vmatprep.subr.bf16.mxu0 %v5242
    %6007 = vmatpush2.bf16.msra.mxu0 %v5241
    %6008 = vmatprep.subr.bf16.mxu0 %v5235
    %6009 = vmatpush2.bf16.msra.mxu0 %v5234
    %6010 = vmatprep.subr.bf16.mxu0 %v5228
    %6011 = vmatpush2.bf16.msra.mxu0 %v5227
    %6012 = vmatprep.subr.bf16.mxu0 %v5221
    %6013 = vmatpush2.bf16.msra.mxu0 %v5220
    %6014 = vmatprep.subr.bf16.mxu0 %v5214
    %6015 = vmatpush2.bf16.msra.mxu0 %v5213
    %6016 = vmatprep.subr.bf16.mxu0 %v5207
    %6017 = vmatpush2.bf16.msra.mxu0 %v5206
    %6018 = vmatprep.subr.bf16.mxu0 %v5200
    %6019 = vmatpush2.bf16.msra.mxu0 %v5199
    %6020 = vmatprep.mubr.bf16.mxu0 %v2847
    %6021 = vmatmul.mubr.bf16.gmra.mxu0 %v2846
    %v6022 = vpop.f32.mrf.mxu0
    %v6023 = vadd.f32 %v5982, %v6022
    %v6024 = vpop.f32.mrf.mxu0
    %v6025 = vadd.f32 %v5984, %v6024
    %v6026 = vpop.f32.mrf.mxu0
    %v6027 = vpop.f32.mrf.mxu0
    %6028 = vdwg.mxu0
    %6029 = vmatprep.subr.bf16.mxu0 %v4859
    %6030 = vmatpush1.bf16.msra.mxu0 %v4858
    %6031 = vmatprep.subr.bf16.mxu0 %v4852
    %6032 = vmatpush1.bf16.msra.mxu0 %v4851
    %6033 = vmatprep.subr.bf16.mxu0 %v4845
    %6034 = vmatpush1.bf16.msra.mxu0 %v4844
    %6035 = vmatprep.subr.bf16.mxu0 %v4838
    %6036 = vmatpush1.bf16.msra.mxu0 %v4837
    %6037 = vmatprep.subr.bf16.mxu0 %v4831
    %6038 = vmatpush1.bf16.msra.mxu0 %v4830
    %6039 = vmatprep.subr.bf16.mxu0 %v4824
    %6040 = vmatpush1.bf16.msra.mxu0 %v4823
    %6041 = vmatprep.subr.bf16.mxu0 %v4817
    %6042 = vmatpush1.bf16.msra.mxu0 %v4816
    %6043 = vmatprep.subr.bf16.mxu0 %v4810
    %6044 = vmatpush1.bf16.msra.mxu0 %v4809
    %6045 = vmatprep.subr.bf16.mxu0 %v4915
    %6046 = vmatpush2.bf16.msra.mxu0 %v4914
    %6047 = vmatprep.subr.bf16.mxu0 %v4908
    %6048 = vmatpush2.bf16.msra.mxu0 %v4907
    %6049 = vmatprep.subr.bf16.mxu0 %v4901
    %6050 = vmatpush2.bf16.msra.mxu0 %v4900
    %6051 = vmatprep.subr.bf16.mxu0 %v4894
    %6052 = vmatpush2.bf16.msra.mxu0 %v4893
    %6053 = vmatprep.subr.bf16.mxu0 %v4887
    %6054 = vmatpush2.bf16.msra.mxu0 %v4886
    %6055 = vmatprep.subr.bf16.mxu0 %v4880
    %6056 = vmatpush2.bf16.msra.mxu0 %v4879
    %6057 = vmatprep.subr.bf16.mxu0 %v4873
    %6058 = vmatpush2.bf16.msra.mxu0 %v4872
    %6059 = vmatprep.subr.bf16.mxu0 %v4866
    %6060 = vmatpush2.bf16.msra.mxu0 %v4865
    %6061 = vmatprep.mubr.bf16.mxu0 %v2841
    %6062 = vmatmul.mubr.bf16.gmra.mxu0 %v2840
    %v6063 = vpop.f32.mrf.mxu0
    %v6064 = vadd.f32 %v3381, %v6063
    %v6065 = vpop.f32.mrf.mxu0
    %v6066 = vadd.f32 %v3385, %v6065
    %v6067 = vpop.f32.mrf.mxu0
    %v6068 = vpop.f32.mrf.mxu0
    %6069 = vdwg.mxu0
    %6070 = vmatprep.subr.bf16.mxu0 %v4971
    %6071 = vmatpush1.bf16.msra.mxu0 %v4970
    %6072 = vmatprep.subr.bf16.mxu0 %v4964
    %6073 = vmatpush1.bf16.msra.mxu0 %v4963
    %6074 = vmatprep.subr.bf16.mxu0 %v4957
    %6075 = vmatpush1.bf16.msra.mxu0 %v4956
    %6076 = vmatprep.subr.bf16.mxu0 %v4950
    %6077 = vmatpush1.bf16.msra.mxu0 %v4949
    %6078 = vmatprep.subr.bf16.mxu0 %v4943
    %6079 = vmatpush1.bf16.msra.mxu0 %v4942
    %6080 = vmatprep.subr.bf16.mxu0 %v4936
    %6081 = vmatpush1.bf16.msra.mxu0 %v4935
    %6082 = vmatprep.subr.bf16.mxu0 %v4929
    %6083 = vmatpush1.bf16.msra.mxu0 %v4928
    %6084 = vmatprep.subr.bf16.mxu0 %v4922
    %6085 = vmatpush1.bf16.msra.mxu0 %v4921
    %6086 = vmatprep.subr.bf16.mxu0 %v5027
    %6087 = vmatpush2.bf16.msra.mxu0 %v5026
    %6088 = vmatprep.subr.bf16.mxu0 %v5020
    %6089 = vmatpush2.bf16.msra.mxu0 %v5019
    %6090 = vmatprep.subr.bf16.mxu0 %v5013
    %6091 = vmatpush2.bf16.msra.mxu0 %v5012
    %6092 = vmatprep.subr.bf16.mxu0 %v5006
    %6093 = vmatpush2.bf16.msra.mxu0 %v5005
    %6094 = vmatprep.subr.bf16.mxu0 %v4999
    %6095 = vmatpush2.bf16.msra.mxu0 %v4998
    %6096 = vmatprep.subr.bf16.mxu0 %v4992
    %6097 = vmatpush2.bf16.msra.mxu0 %v4991
    %6098 = vmatprep.subr.bf16.mxu0 %v4985
    %6099 = vmatpush2.bf16.msra.mxu0 %v4984
    %6100 = vmatprep.subr.bf16.mxu0 %v4978
    %6101 = vmatpush2.bf16.msra.mxu0 %v4977
    %6102 = vmatprep.mubr.bf16.mxu0 %v2843
    %6103 = vmatmul.mubr.bf16.gmra.mxu0 %v2842
    %v6104 = vpop.f32.mrf.mxu0
    %v6105 = vadd.f32 %v6064, %v6104
    %v6106 = vpop.f32.mrf.mxu0
    %v6107 = vadd.f32 %v6066, %v6106
    %v6108 = vpop.f32.mrf.mxu0
    %v6109 = vpop.f32.mrf.mxu0
    %6110 = vdwg.mxu0
    %6111 = vmatprep.subr.bf16.mxu0 %v5083
    %6112 = vmatpush1.bf16.msra.mxu0 %v5082
    %6113 = vmatprep.subr.bf16.mxu0 %v5076
    %6114 = vmatpush1.bf16.msra.mxu0 %v5075
    %6115 = vmatprep.subr.bf16.mxu0 %v5069
    %6116 = vmatpush1.bf16.msra.mxu0 %v5068
    %6117 = vmatprep.subr.bf16.mxu0 %v5062
    %6118 = vmatpush1.bf16.msra.mxu0 %v5061
    %6119 = vmatprep.subr.bf16.mxu0 %v5055
    %6120 = vmatpush1.bf16.msra.mxu0 %v5054
    %6121 = vmatprep.subr.bf16.mxu0 %v5048
    %6122 = vmatpush1.bf16.msra.mxu0 %v5047
    %6123 = vmatprep.subr.bf16.mxu0 %v5041
    %6124 = vmatpush1.bf16.msra.mxu0 %v5040
    %6125 = vmatprep.subr.bf16.mxu0 %v5034
    %6126 = vmatpush1.bf16.msra.mxu0 %v5033
    %6127 = vmatprep.subr.bf16.mxu0 %v5139
    %6128 = vmatpush2.bf16.msra.mxu0 %v5138
    %6129 = vmatprep.subr.bf16.mxu0 %v5132
    %6130 = vmatpush2.bf16.msra.mxu0 %v5131
    %6131 = vmatprep.subr.bf16.mxu0 %v5125
    %6132 = vmatpush2.bf16.msra.mxu0 %v5124
    %6133 = vmatprep.subr.bf16.mxu0 %v5118
    %6134 = vmatpush2.bf16.msra.mxu0 %v5117
    %6135 = vmatprep.subr.bf16.mxu0 %v5111
    %6136 = vmatpush2.bf16.msra.mxu0 %v5110
    %6137 = vmatprep.subr.bf16.mxu0 %v5104
    %6138 = vmatpush2.bf16.msra.mxu0 %v5103
    %6139 = vmatprep.subr.bf16.mxu0 %v5097
    %6140 = vmatpush2.bf16.msra.mxu0 %v5096
    %6141 = vmatprep.subr.bf16.mxu0 %v5090
    %6142 = vmatpush2.bf16.msra.mxu0 %v5089
    %6143 = vmatprep.mubr.bf16.mxu0 %v2845
    %6144 = vmatmul.mubr.bf16.gmra.mxu0 %v2844
    %v6145 = vpop.f32.mrf.mxu0
    %v6146 = vadd.f32 %v6105, %v6145
    %v6147 = vpop.f32.mrf.mxu0
    %v6148 = vadd.f32 %v6107, %v6147
    %v6149 = vpop.f32.mrf.mxu0
    %v6150 = vpop.f32.mrf.mxu0
    %6151 = vdwg.mxu0
    %6152 = vmatprep.subr.bf16.mxu0 %v5195
    %6153 = vmatpush1.bf16.msra.mxu0 %v5194
    %6154 = vmatprep.subr.bf16.mxu0 %v5188
    %6155 = vmatpush1.bf16.msra.mxu0 %v5187
    %6156 = vmatprep.subr.bf16.mxu0 %v5181
    %6157 = vmatpush1.bf16.msra.mxu0 %v5180
    %6158 = vmatprep.subr.bf16.mxu0 %v5174
    %6159 = vmatpush1.bf16.msra.mxu0 %v5173
    %6160 = vmatprep.subr.bf16.mxu0 %v5167
    %6161 = vmatpush1.bf16.msra.mxu0 %v5166
    %6162 = vmatprep.subr.bf16.mxu0 %v5160
    %6163 = vmatpush1.bf16.msra.mxu0 %v5159
    %6164 = vmatprep.subr.bf16.mxu0 %v5153
    %6165 = vmatpush1.bf16.msra.mxu0 %v5152
    %6166 = vmatprep.subr.bf16.mxu0 %v5146
    %6167 = vmatpush1.bf16.msra.mxu0 %v5145
    %6168 = vmatprep.subr.bf16.mxu0 %v5251
    %6169 = vmatpush2.bf16.msra.mxu0 %v5250
    %6170 = vmatprep.subr.bf16.mxu0 %v5244
    %6171 = vmatpush2.bf16.msra.mxu0 %v5243
    %6172 = vmatprep.subr.bf16.mxu0 %v5237
    %6173 = vmatpush2.bf16.msra.mxu0 %v5236
    %6174 = vmatprep.subr.bf16.mxu0 %v5230
    %6175 = vmatpush2.bf16.msra.mxu0 %v5229
    %6176 = vmatprep.subr.bf16.mxu0 %v5223
    %6177 = vmatpush2.bf16.msra.mxu0 %v5222
    %6178 = vmatprep.subr.bf16.mxu0 %v5216
    %6179 = vmatpush2.bf16.msra.mxu0 %v5215
    %6180 = vmatprep.subr.bf16.mxu0 %v5209
    %6181 = vmatpush2.bf16.msra.mxu0 %v5208
    %6182 = vmatprep.subr.bf16.mxu0 %v5202
    %6183 = vmatpush2.bf16.msra.mxu0 %v5201
    %6184 = vmatprep.mubr.bf16.mxu0 %v2847
    %6185 = vmatmul.mubr.bf16.gmra.mxu0 %v2846
    %v6186 = vpop.f32.mrf.mxu0
    %v6187 = vadd.f32 %v6146, %v6186
    %v6188 = vpop.f32.mrf.mxu0
    %v6189 = vadd.f32 %v6148, %v6188
    %v6190 = vpop.f32.mrf.mxu0
    %v6191 = vpop.f32.mrf.mxu0
    %6192 = vdwg.mxu0
    %6193 = vmatprep.subr.bf16.mxu0 0
    %6194 = vmatpush1.bf16.msra.mxu0 %v4860
    %6195 = vmatprep.subr.bf16.mxu0 0
    %6196 = vmatpush1.bf16.msra.mxu0 %v4853
    %6197 = vmatprep.subr.bf16.mxu0 0
    %6198 = vmatpush1.bf16.msra.mxu0 %v4846
    %6199 = vmatprep.subr.bf16.mxu0 0
    %6200 = vmatpush1.bf16.msra.mxu0 %v4839
    %6201 = vmatprep.subr.bf16.mxu0 0
    %6202 = vmatpush1.bf16.msra.mxu0 %v4832
    %6203 = vmatprep.subr.bf16.mxu0 0
    %6204 = vmatpush1.bf16.msra.mxu0 %v4825
    %6205 = vmatprep.subr.bf16.mxu0 0
    %6206 = vmatpush1.bf16.msra.mxu0 %v4818
    %6207 = vmatprep.subr.bf16.mxu0 0
    %6208 = vmatpush1.bf16.msra.mxu0 %v4811
    %6209 = vmatprep.subr.bf16.mxu0 0
    %6210 = vmatpush2.bf16.msra.mxu0 %v4916
    %6211 = vmatprep.subr.bf16.mxu0 0
    %6212 = vmatpush2.bf16.msra.mxu0 %v4909
    %6213 = vmatprep.subr.bf16.mxu0 0
    %6214 = vmatpush2.bf16.msra.mxu0 %v4902
    %6215 = vmatprep.subr.bf16.mxu0 0
    %6216 = vmatpush2.bf16.msra.mxu0 %v4895
    %6217 = vmatprep.subr.bf16.mxu0 0
    %6218 = vmatpush2.bf16.msra.mxu0 %v4888
    %6219 = vmatprep.subr.bf16.mxu0 0
    %6220 = vmatpush2.bf16.msra.mxu0 %v4881
    %6221 = vmatprep.subr.bf16.mxu0 0
    %6222 = vmatpush2.bf16.msra.mxu0 %v4874
    %6223 = vmatprep.subr.bf16.mxu0 0
    %6224 = vmatpush2.bf16.msra.mxu0 %v4867
    %6225 = vmatprep.mubr.bf16.mxu0 %v2841
    %6226 = vmatmul.mubr.bf16.gmra.mxu0 %v2840
    %v6227 = vpop.f32.mrf.mxu0
    %v6228 = vadd.f32 %v3389, %v6227
    %v6229 = vpop.f32.mrf.mxu0
    %v6230 = vpop.f32.mrf.mxu0
    %v6231 = vpop.f32.mrf.mxu0
    %6232 = vdwg.mxu0
    %6233 = vmatprep.subr.bf16.mxu0 0
    %6234 = vmatpush1.bf16.msra.mxu0 %v4972
    %6235 = vmatprep.subr.bf16.mxu0 0
    %6236 = vmatpush1.bf16.msra.mxu0 %v4965
    %6237 = vmatprep.subr.bf16.mxu0 0
    %6238 = vmatpush1.bf16.msra.mxu0 %v4958
    %6239 = vmatprep.subr.bf16.mxu0 0
    %6240 = vmatpush1.bf16.msra.mxu0 %v4951
    %6241 = vmatprep.subr.bf16.mxu0 0
    %6242 = vmatpush1.bf16.msra.mxu0 %v4944
    %6243 = vmatprep.subr.bf16.mxu0 0
    %6244 = vmatpush1.bf16.msra.mxu0 %v4937
    %6245 = vmatprep.subr.bf16.mxu0 0
    %6246 = vmatpush1.bf16.msra.mxu0 %v4930
    %6247 = vmatprep.subr.bf16.mxu0 0
    %6248 = vmatpush1.bf16.msra.mxu0 %v4923
    %6249 = vmatprep.subr.bf16.mxu0 0
    %6250 = vmatpush2.bf16.msra.mxu0 %v5028
    %6251 = vmatprep.subr.bf16.mxu0 0
    %6252 = vmatpush2.bf16.msra.mxu0 %v5021
    %6253 = vmatprep.subr.bf16.mxu0 0
    %6254 = vmatpush2.bf16.msra.mxu0 %v5014
    %6255 = vmatprep.subr.bf16.mxu0 0
    %6256 = vmatpush2.bf16.msra.mxu0 %v5007
    %6257 = vmatprep.subr.bf16.mxu0 0
    %6258 = vmatpush2.bf16.msra.mxu0 %v5000
    %6259 = vmatprep.subr.bf16.mxu0 0
    %6260 = vmatpush2.bf16.msra.mxu0 %v4993
    %6261 = vmatprep.subr.bf16.mxu0 0
    %6262 = vmatpush2.bf16.msra.mxu0 %v4986
    %6263 = vmatprep.subr.bf16.mxu0 0
    %6264 = vmatpush2.bf16.msra.mxu0 %v4979
    %6265 = vmatprep.mubr.bf16.mxu0 %v2843
    %6266 = vmatmul.mubr.bf16.gmra.mxu0 %v2842
    %v6267 = vpop.f32.mrf.mxu0
    %v6268 = vadd.f32 %v6228, %v6267
    %v6269 = vpop.f32.mrf.mxu0
    %v6270 = vpop.f32.mrf.mxu0
    %v6271 = vpop.f32.mrf.mxu0
    %6272 = vdwg.mxu0
    %6273 = vmatprep.subr.bf16.mxu0 0
    %6274 = vmatpush1.bf16.msra.mxu0 %v5084
    %6275 = vmatprep.subr.bf16.mxu0 0
    %6276 = vmatpush1.bf16.msra.mxu0 %v5077
    %6277 = vmatprep.subr.bf16.mxu0 0
    %6278 = vmatpush1.bf16.msra.mxu0 %v5070
    %6279 = vmatprep.subr.bf16.mxu0 0
    %6280 = vmatpush1.bf16.msra.mxu0 %v5063
    %6281 = vmatprep.subr.bf16.mxu0 0
    %6282 = vmatpush1.bf16.msra.mxu0 %v5056
    %6283 = vmatprep.subr.bf16.mxu0 0
    %6284 = vmatpush1.bf16.msra.mxu0 %v5049
    %6285 = vmatprep.subr.bf16.mxu0 0
    %6286 = vmatpush1.bf16.msra.mxu0 %v5042
    %6287 = vmatprep.subr.bf16.mxu0 0
    %6288 = vmatpush1.bf16.msra.mxu0 %v5035
    %6289 = vmatprep.subr.bf16.mxu0 0
    %6290 = vmatpush2.bf16.msra.mxu0 %v5140
    %6291 = vmatprep.subr.bf16.mxu0 0
    %6292 = vmatpush2.bf16.msra.mxu0 %v5133
    %6293 = vmatprep.subr.bf16.mxu0 0
    %6294 = vmatpush2.bf16.msra.mxu0 %v5126
    %6295 = vmatprep.subr.bf16.mxu0 0
    %6296 = vmatpush2.bf16.msra.mxu0 %v5119
    %6297 = vmatprep.subr.bf16.mxu0 0
    %6298 = vmatpush2.bf16.msra.mxu0 %v5112
    %6299 = vmatprep.subr.bf16.mxu0 0
    %6300 = vmatpush2.bf16.msra.mxu0 %v5105
    %6301 = vmatprep.subr.bf16.mxu0 0
    %6302 = vmatpush2.bf16.msra.mxu0 %v5098
    %6303 = vmatprep.subr.bf16.mxu0 0
    %6304 = vmatpush2.bf16.msra.mxu0 %v5091
    %6305 = vmatprep.mubr.bf16.mxu0 %v2845
    %6306 = vmatmul.mubr.bf16.gmra.mxu0 %v2844
    %v6307 = vpop.f32.mrf.mxu0
    %v6308 = vadd.f32 %v6268, %v6307
    %v6309 = vpop.f32.mrf.mxu0
    %v6310 = vpop.f32.mrf.mxu0
    %v6311 = vpop.f32.mrf.mxu0
    %6312 = vdwg.mxu0
    %6313 = vmatprep.subr.bf16.mxu0 0
    %6314 = vmatpush1.bf16.msra.mxu0 %v5196
    %6315 = vmatprep.subr.bf16.mxu0 0
    %6316 = vmatpush1.bf16.msra.mxu0 %v5189
    %6317 = vmatprep.subr.bf16.mxu0 0
    %6318 = vmatpush1.bf16.msra.mxu0 %v5182
    %6319 = vmatprep.subr.bf16.mxu0 0
    %6320 = vmatpush1.bf16.msra.mxu0 %v5175
    %6321 = vmatprep.subr.bf16.mxu0 0
    %6322 = vmatpush1.bf16.msra.mxu0 %v5168
    %6323 = vmatprep.subr.bf16.mxu0 0
    %6324 = vmatpush1.bf16.msra.mxu0 %v5161
    %6325 = vmatprep.subr.bf16.mxu0 0
    %6326 = vmatpush1.bf16.msra.mxu0 %v5154
    %6327 = vmatprep.subr.bf16.mxu0 0
    %6328 = vmatpush1.bf16.msra.mxu0 %v5147
    %6329 = vmatprep.subr.bf16.mxu0 0
    %6330 = vmatpush2.bf16.msra.mxu0 %v5252
    %6331 = vmatprep.subr.bf16.mxu0 0
    %6332 = vmatpush2.bf16.msra.mxu0 %v5245
    %6333 = vmatprep.subr.bf16.mxu0 0
    %6334 = vmatpush2.bf16.msra.mxu0 %v5238
    %6335 = vmatprep.subr.bf16.mxu0 0
    %6336 = vmatpush2.bf16.msra.mxu0 %v5231
    %6337 = vmatprep.subr.bf16.mxu0 0
    %6338 = vmatpush2.bf16.msra.mxu0 %v5224
    %6339 = vmatprep.subr.bf16.mxu0 0
    %6340 = vmatpush2.bf16.msra.mxu0 %v5217
    %6341 = vmatprep.subr.bf16.mxu0 0
    %6342 = vmatpush2.bf16.msra.mxu0 %v5210
    %6343 = vmatprep.subr.bf16.mxu0 0
    %6344 = vmatpush2.bf16.msra.mxu0 %v5203
    %6345 = vmatprep.mubr.bf16.mxu0 %v2847
    %6346 = vmatmul.mubr.bf16.gmra.mxu0 %v2846
    %v6347 = vpop.f32.mrf.mxu0
    %v6348 = vadd.f32 %v6308, %v6347
    %v6349 = vpop.f32.mrf.mxu0
    %v6350 = vpop.f32.mrf.mxu0
    %v6351 = vpop.f32.mrf.mxu0
    %6352 = vdwg.mxu0
    %v6353 = vtanh.pop %v5859
    %v6354 = vtanh.pop %v5861
    %v6355 = vtanh.pop %v6023
    %v6356 = vtanh.pop %v6025
    %v6357 = vtanh.pop %v6187
    %v6358 = vtanh.pop %v6189
    %v6359 = vtanh.pop %v6348
    %6360 = vst [vmem:[#allocation16] sm:$0xff] %v6353
    %6361 = vst [vmem:[#allocation16 + $0x8] sm:$0xff] %v6354
    %6362 = vst [vmem:[#allocation16 + $0x10] sm:$0xff] %v6355
    %6363 = vst [vmem:[#allocation16 + $0x18] sm:$0xff] %v6356
    %6364 = vst [vmem:[#allocation16 + $0x20] sm:$0xff] %v6357
    %6365 = vst [vmem:[#allocation16 + $0x28] sm:$0xff] %v6358
    %6366 = vst [vmem:[#allocation16 + $0x30] sm:$0xff] %v6359
    // Predicated region
    $region70: #{generator_forward.1} parent=1 // pred_check
      _
    $region71: #{generator_forward.1} parent=1 // pred_check_branch
      %6368 = sbr.rel (0) target = $region73
    $region72: #{generator_forward.1} parent=1 // pred_region
      %s6370 = ssub.s32 896, 896
      %6371 = vsyncadd [#allocation4], %s6370
      %s6373 = sshll.u32 [#allocation16], 4
      %s6374 = int_to_ptr.vmem [resolvable:$true] %s6373
      %6376 = dma.vmem_to_hbm [thread:$0]  %s6374, 896, %s9, [#allocation4]
    $region73: #{generator_forward.1} parent=1 // pred_fallthru
      _
    // Predicated region
    $region74: #{generator_forward.1} parent=1 // pred_check
      _
    $region75: #{generator_forward.1} parent=1 // pred_check_branch
      %6378 = sbr.rel (0) target = $region77
    $region76: #{generator_forward.1} parent=1 // pred_region
      %6379 = dma.done [#allocation4], 896
    $region77: #{generator_forward.1} parent=1 // pred_fallthru
      _
    %6380 = vsyncpa [#allocation3], 1
    %6381 = vsyncpa [#allocation6], 1
    %6382 = vsyncpa [#allocation9], 1
    %6383 = vsyncpa [#allocation12], 1
    %6384 = vsyncpa [#allocation15], 1
    %6385 = vsyncpa [#allocation4], 1

</llo_original>
